<compile_context>
chip_gen: v7x
topology: tpu7x:2x2x1
jax: 0.10.0
libtpu: 0.0.40
codegen_flags: <defaults>
</compile_context>

<pallas_src>
import math

import jax
import jax.numpy as jnp
from jax import lax
from jax.experimental import pallas as pl
from jax.experimental.pallas import tpu as pltpu


def decoder_kernel(x_ref,
                   w_ih1_ref, w_hh1_ref, b1_ref,
                   w_ih2_ref, w_hh2_ref, b2_ref,
                   w_out_ref, b_out_ref,
                   out_ref,
                   h2_all_ref):
    T, B, H = h2_all_ref.shape          # seq_len, batch, hidden_dim (= 2*input_dim)
    D = w_hh1_ref.shape[0]              # input_dim (= layer-1 hidden size)

    # Hoist all ref reads out of the time loop (read once).
    x = x_ref[...]
    w_hh1 = w_hh1_ref[...]
    w_ih2 = w_ih2_ref[...]
    w_hh2 = w_hh2_ref[...]

    # Loop-invariant layer-1 input projection (+ fused bias), computed once.
    x_proj1 = (jnp.dot(x, w_ih1_ref[...], preferred_element_type=jnp.float32)
               + b1_ref[...])                               # (B, 4D)
    # Hoisted bias broadcast for layer 2 (JAX does not CSE broadcast_in_dim).
    b2 = jnp.broadcast_to(b2_ref[...], (B, 4 * H))          # (B, 4H)

    def gates(pre, c, n):
        i = jax.nn.sigmoid(pre[:, 0 * n:1 * n])
        f = jax.nn.sigmoid(pre[:, 1 * n:2 * n])
        g = jnp.tanh(pre[:, 2 * n:3 * n])
        o = jax.nn.sigmoid(pre[:, 3 * n:4 * n])
        c_new = f * c + i * g
        h_new = o * jnp.tanh(c_new)
        return h_new, c_new

    def step(t, carry):
        h1, c1, h2, c2 = carry
        # rnn1: input_dim -> input_dim   (one fused (B,D)x(D,4D) matmul per step)
        pre1 = x_proj1 + jnp.dot(h1, w_hh1, preferred_element_type=jnp.float32)
        h1, c1 = gates(pre1, c1, D)
        # rnn2: input_dim -> 2*input_dim (two fused matmuls -> (B,4H))
        pre2 = (jnp.dot(h1, w_ih2, preferred_element_type=jnp.float32)
                + jnp.dot(h2, w_hh2, preferred_element_type=jnp.float32)
                + b2)
        h2, c2 = gates(pre2, c2, H)
        h2_all_ref[t] = h2
        return h1, c1, h2, c2

    z = lambda n: jnp.zeros((B, n), jnp.float32)   # PyTorch default h0 = c0 = 0
    lax.fori_loop(0, T, step, (z(D), z(D), z(H), z(H)), unroll=True)

    # TimeDistributed(Linear(hidden_dim, n_features)) applied once to all timesteps.
    h2_all = h2_all_ref[...].reshape(T * B, H)
    y = (jnp.dot(h2_all, w_out_ref[...], preferred_element_type=jnp.float32)
         + b_out_ref[...])                                  # (T*B, F)
    out_ref[...] = y.astype(out_ref.dtype)


def decoder_forward(x, params, seq_len):
    D = params['w_hh1'].shape[0]
    H = params['w_hh2'].shape[0]
    F = params['w_out'].shape[1]
    xr = x.reshape(-1, D).astype(jnp.float32)   # matches x.reshape(-1, 1, input_dim)
    B = xr.shape[0]

    out_flat = pl.pallas_call(
        decoder_kernel,
        out_shape=jax.ShapeDtypeStruct((seq_len * B, F), jnp.float32),
        scratch_shapes=[pltpu.VMEM((seq_len, B, H), jnp.float32)],   # per-step h2
    )(xr,
      params['w_ih1'], params['w_hh1'], params['b1'],
      params['w_ih2'], params['w_hh2'], params['b2'],
      params['w_out'], params['b_out'])

    # (T*B, F) -> (T, B, F) -> PyTorch batch-first (B, T, F)
    return out_flat.reshape(seq_len, B, F).transpose(1, 0, 2)


def init_params(key, input_dim, n_features):
    D = input_dim
    H = 2 * D
    ks = jax.random.split(key, 10)

    def u(k, shape, bound):
        return jax.random.uniform(k, shape, jnp.float32, -bound, bound)

    k1 = 1.0 / math.sqrt(D)   # PyTorch LSTM init bound (hidden = D)
    k2 = 1.0 / math.sqrt(H)   # hidden = 2D
    ko = 1.0 / math.sqrt(H)   # Linear fan_in = H
    return {
        'w_ih1': u(ks[0], (D, 4 * D), k1),                     # fused gates i,f,g,o
        'w_hh1': u(ks[1], (D, 4 * D), k1),
        'b1':    u(ks[2], (1, 4 * D), k1) + u(ks[3], (1, 4 * D), k1),   # b_ih + b_hh
        'w_ih2': u(ks[4], (D, 4 * H), k2),
        'w_hh2': u(ks[5], (H, 4 * H), k2),
        'b2':    u(ks[6], (1, 4 * H), k2) + u(ks[7], (1, 4 * H), k2),
        'w_out': u(ks[8], (H, n_features), ko),
        'b_out': u(ks[9], (1, n_features), ko),
    }


def ref_decoder(x, params, seq_len):
    """Pure-JAX reference of the PyTorch Decoder.forward (for validation)."""
    D = params['w_hh1'].shape[0]
    H = params['w_hh2'].shape[0]
    xr = x.reshape(-1, D).astype(jnp.float32)
    B = xr.shape[0]
    h1 = jnp.zeros((B, D), jnp.float32)
    c1 = jnp.zeros((B, D), jnp.float32)
    h2 = jnp.zeros((B, H), jnp.float32)
    c2 = jnp.zeros((B, H), jnp.float32)

    def cell(pre, c, n):
        i = jax.nn.sigmoid(pre[:, 0 * n:1 * n])
        f = jax.nn.sigmoid(pre[:, 1 * n:2 * n])
        g = jnp.tanh(pre[:, 2 * n:3 * n])
        o = jax.nn.sigmoid(pre[:, 3 * n:4 * n])
        c = f * c + i * g
        return o * jnp.tanh(c), c

    ys = []
    for _ in range(seq_len):
        h1, c1 = cell(xr @ params['w_ih1'] + h1 @ params['w_hh1'] + params['b1'], c1, D)
        h2, c2 = cell(h1 @ params['w_ih2'] + h2 @ params['w_hh2'] + params['b2'], c2, H)
        ys.append(h2 @ params['w_out'] + params['b_out'])
    return jnp.stack(ys, axis=1)


if __name__ == "__main__":
    seq_len, input_dim, n_features = 8, 32, 1
    batch = 2

    key = jax.random.PRNGKey(0)
    kx, kp = jax.random.split(key)
    x = jax.random.normal(kx, (batch, input_dim), dtype=jnp.float32)
    params = init_params(kp, input_dim, n_features)

    out = decoder_forward(x, params, seq_len)
    out = jax.block_until_ready(out)

    ref = ref_decoder(x, params, seq_len)
    assert out.shape == (batch, seq_len, n_features), out.shape
    assert jnp.allclose(out, ref, atol=1e-4, rtol=1e-4), float(jnp.max(jnp.abs(out - ref)))

    print("KERNEL_OK")
</pallas_src>

<mosaic_0001>
module attributes {stable_mosaic.version = 11 : i64} {
  func.func @decoder_kernel(%arg0: memref<2x32xf32, #tpu.memory_space<vmem>>, %arg1: memref<32x128xf32, #tpu.memory_space<vmem>>, %arg2: memref<32x128xf32, #tpu.memory_space<vmem>>, %arg3: memref<1x128xf32, #tpu.memory_space<vmem>>, %arg4: memref<32x256xf32, #tpu.memory_space<vmem>>, %arg5: memref<64x256xf32, #tpu.memory_space<vmem>>, %arg6: memref<1x256xf32, #tpu.memory_space<vmem>>, %arg7: memref<64x1xf32, #tpu.memory_space<vmem>>, %arg8: memref<1x1xf32, #tpu.memory_space<vmem>>, %arg9: memref<16x1xf32, #tpu.memory_space<vmem>>, %arg10: memref<8x2x64xf32, #tpu.memory_space<vmem>>) attributes {dimension_semantics = [], scalar_prefetch = 0 : i64, scratch_operands = 1 : i64, tpu.core_type = #tpu.core_type<tc>} {
    %c0 = arith.constant 0 : index
    %c0_0 = arith.constant 0 : index
    %0 = vector.load %arg0[%c0, %c0_0] : memref<2x32xf32, #tpu.memory_space<vmem>>, vector<2x32xf32>
    %c0_1 = arith.constant 0 : index
    %c0_2 = arith.constant 0 : index
    %1 = vector.load %arg2[%c0_1, %c0_2] : memref<32x128xf32, #tpu.memory_space<vmem>>, vector<32x128xf32>
    %c0_3 = arith.constant 0 : index
    %c0_4 = arith.constant 0 : index
    %2 = vector.load %arg4[%c0_3, %c0_4] : memref<32x256xf32, #tpu.memory_space<vmem>>, vector<32x256xf32>
    %c0_5 = arith.constant 0 : index
    %c0_6 = arith.constant 0 : index
    %3 = vector.load %arg5[%c0_5, %c0_6] : memref<64x256xf32, #tpu.memory_space<vmem>>, vector<64x256xf32>
    %c0_7 = arith.constant 0 : index
    %c0_8 = arith.constant 0 : index
    %4 = vector.load %arg1[%c0_7, %c0_8] : memref<32x128xf32, #tpu.memory_space<vmem>>, vector<32x128xf32>
    %cst = arith.constant dense<0.000000e+00> : vector<2x128xf32>
    %5 = tpu.matmul %0, %4, %cst {dimension_numbers = #tpu.dot_dimension_numbers<[1], [0], [0], [1], [0, 0, 1, 1], [], []>} : vector<2x32xf32>, vector<32x128xf32>, vector<2x128xf32> -> vector<2x128xf32>
    %c0_9 = arith.constant 0 : index
    %c0_10 = arith.constant 0 : index
    %6 = vector.load %arg3[%c0_9, %c0_10] : memref<1x128xf32, #tpu.memory_space<vmem>>, vector<1x128xf32>
    %7 = vector.broadcast %6 : vector<1x128xf32> to vector<2x128xf32>
    %8 = arith.addf %5, %7 : vector<2x128xf32>
    %c0_11 = arith.constant 0 : index
    %c0_12 = arith.constant 0 : index
    %9 = vector.load %arg6[%c0_11, %c0_12] : memref<1x256xf32, #tpu.memory_space<vmem>>, vector<1x256xf32>
    %10 = vector.shape_cast %9 : vector<1x256xf32> to vector<1x256xf32>
    %11 = vector.broadcast %10 : vector<1x256xf32> to vector<2x256xf32>
    %cst_13 = arith.constant 0.000000e+00 : f32
    %12 = vector.broadcast %cst_13 : f32 to vector<2x32xf32>
    %cst_14 = arith.constant 0.000000e+00 : f32
    %13 = vector.broadcast %cst_14 : f32 to vector<2x32xf32>
    %cst_15 = arith.constant 0.000000e+00 : f32
    %14 = vector.broadcast %cst_15 : f32 to vector<2x64xf32>
    %cst_16 = arith.constant 0.000000e+00 : f32
    %15 = vector.broadcast %cst_16 : f32 to vector<2x64xf32>
    %c0_i32 = arith.constant 0 : i32
    %cst_17 = arith.constant dense<0.000000e+00> : vector<2x128xf32>
    %16 = tpu.matmul %12, %1, %cst_17 {dimension_numbers = #tpu.dot_dimension_numbers<[1], [0], [0], [1], [0, 0, 1, 1], [], []>} : vector<2x32xf32>, vector<32x128xf32>, vector<2x128xf32> -> vector<2x128xf32>
    %17 = arith.addf %8, %16 : vector<2x128xf32>
    %18 = vector.extract_strided_slice %17 {offsets = [0, 0], sizes = [2, 32], strides = [1, 1]} : vector<2x128xf32> to vector<2x32xf32>
    %19 = arith.negf %18 : vector<2x32xf32>
    %20 = math.exp %19 : vector<2x32xf32>
    %cst_18 = arith.constant 1.000000e+00 : f32
    %21 = vector.broadcast %cst_18 : f32 to vector<2x32xf32>
    %22 = arith.addf %21, %20 : vector<2x32xf32>
    %23 = arith.divf %21, %22 : vector<2x32xf32>
    %24 = vector.extract_strided_slice %17 {offsets = [0, 32], sizes = [2, 32], strides = [1, 1]} : vector<2x128xf32> to vector<2x32xf32>
    %25 = arith.negf %24 : vector<2x32xf32>
    %26 = math.exp %25 : vector<2x32xf32>
    %cst_19 = arith.constant 1.000000e+00 : f32
    %27 = vector.broadcast %cst_19 : f32 to vector<2x32xf32>
    %28 = arith.addf %27, %26 : vector<2x32xf32>
    %29 = arith.divf %27, %28 : vector<2x32xf32>
    %30 = vector.extract_strided_slice %17 {offsets = [0, 64], sizes = [2, 32], strides = [1, 1]} : vector<2x128xf32> to vector<2x32xf32>
    %31 = math.tanh %30 : vector<2x32xf32>
    %32 = vector.extract_strided_slice %17 {offsets = [0, 96], sizes = [2, 32], strides = [1, 1]} : vector<2x128xf32> to vector<2x32xf32>
    %33 = arith.negf %32 : vector<2x32xf32>
    %34 = math.exp %33 : vector<2x32xf32>
    %cst_20 = arith.constant 1.000000e+00 : f32
    %35 = vector.broadcast %cst_20 : f32 to vector<2x32xf32>
    %36 = arith.addf %35, %34 : vector<2x32xf32>
    %37 = arith.divf %35, %36 : vector<2x32xf32>
    %38 = arith.mulf %29, %13 : vector<2x32xf32>
    %39 = arith.mulf %23, %31 : vector<2x32xf32>
    %40 = arith.addf %38, %39 : vector<2x32xf32>
    %41 = math.tanh %40 : vector<2x32xf32>
    %42 = arith.mulf %37, %41 : vector<2x32xf32>
    %cst_21 = arith.constant dense<0.000000e+00> : vector<2x256xf32>
    %43 = tpu.matmul %42, %2, %cst_21 {dimension_numbers = #tpu.dot_dimension_numbers<[1], [0], [0], [1], [0, 0, 1, 1], [], []>} : vector<2x32xf32>, vector<32x256xf32>, vector<2x256xf32> -> vector<2x256xf32>
    %cst_22 = arith.constant dense<0.000000e+00> : vector<2x256xf32>
    %44 = tpu.matmul %14, %3, %cst_22 {dimension_numbers = #tpu.dot_dimension_numbers<[1], [0], [0], [1], [0, 0, 1, 1], [], []>} : vector<2x64xf32>, vector<64x256xf32>, vector<2x256xf32> -> vector<2x256xf32>
    %45 = arith.addf %43, %44 : vector<2x256xf32>
    %46 = arith.addf %45, %11 : vector<2x256xf32>
    %47 = vector.extract_strided_slice %46 {offsets = [0, 0], sizes = [2, 64], strides = [1, 1]} : vector<2x256xf32> to vector<2x64xf32>
    %48 = arith.negf %47 : vector<2x64xf32>
    %49 = math.exp %48 : vector<2x64xf32>
    %cst_23 = arith.constant 1.000000e+00 : f32
    %50 = vector.broadcast %cst_23 : f32 to vector<2x64xf32>
    %51 = arith.addf %50, %49 : vector<2x64xf32>
    %52 = arith.divf %50, %51 : vector<2x64xf32>
    %53 = vector.extract_strided_slice %46 {offsets = [0, 64], sizes = [2, 64], strides = [1, 1]} : vector<2x256xf32> to vector<2x64xf32>
    %54 = arith.negf %53 : vector<2x64xf32>
    %55 = math.exp %54 : vector<2x64xf32>
    %cst_24 = arith.constant 1.000000e+00 : f32
    %56 = vector.broadcast %cst_24 : f32 to vector<2x64xf32>
    %57 = arith.addf %56, %55 : vector<2x64xf32>
    %58 = arith.divf %56, %57 : vector<2x64xf32>
    %59 = vector.extract_strided_slice %46 {offsets = [0, 128], sizes = [2, 64], strides = [1, 1]} : vector<2x256xf32> to vector<2x64xf32>
    %60 = math.tanh %59 : vector<2x64xf32>
    %61 = vector.extract_strided_slice %46 {offsets = [0, 192], sizes = [2, 64], strides = [1, 1]} : vector<2x256xf32> to vector<2x64xf32>
    %62 = arith.negf %61 : vector<2x64xf32>
    %63 = math.exp %62 : vector<2x64xf32>
    %cst_25 = arith.constant 1.000000e+00 : f32
    %64 = vector.broadcast %cst_25 : f32 to vector<2x64xf32>
    %65 = arith.addf %64, %63 : vector<2x64xf32>
    %66 = arith.divf %64, %65 : vector<2x64xf32>
    %67 = arith.mulf %58, %15 : vector<2x64xf32>
    %68 = arith.mulf %52, %60 : vector<2x64xf32>
    %69 = arith.addf %67, %68 : vector<2x64xf32>
    %70 = math.tanh %69 : vector<2x64xf32>
    %71 = arith.mulf %66, %70 : vector<2x64xf32>
    %72 = arith.index_cast %c0_i32 : i32 to index
    %c0_26 = arith.constant 0 : index
    %c0_27 = arith.constant 0 : index
    %73 = vector.load %arg10[%72, %c0_26, %c0_27] : memref<8x2x64xf32, #tpu.memory_space<vmem>>, vector<1x2x64xf32>
    %74 = vector.shape_cast %73 : vector<1x2x64xf32> to vector<2x64xf32>
    %75 = vector.shape_cast %71 : vector<2x64xf32> to vector<1x2x64xf32>
    tpu.vector_store %arg10[%72, %c0_26, %c0_27], %75 {strides = array<i32>} : memref<8x2x64xf32, #tpu.memory_space<vmem>>, vector<1x2x64xf32>,
    %c1_i32 = arith.constant 1 : i32
    %cst_28 = arith.constant dense<0.000000e+00> : vector<2x128xf32>
    %76 = tpu.matmul %42, %1, %cst_28 {dimension_numbers = #tpu.dot_dimension_numbers<[1], [0], [0], [1], [0, 0, 1, 1], [], []>} : vector<2x32xf32>, vector<32x128xf32>, vector<2x128xf32> -> vector<2x128xf32>
    %77 = arith.addf %8, %76 : vector<2x128xf32>
    %78 = vector.extract_strided_slice %77 {offsets = [0, 0], sizes = [2, 32], strides = [1, 1]} : vector<2x128xf32> to vector<2x32xf32>
    %79 = arith.negf %78 : vector<2x32xf32>
    %80 = math.exp %79 : vector<2x32xf32>
    %cst_29 = arith.constant 1.000000e+00 : f32
    %81 = vector.broadcast %cst_29 : f32 to vector<2x32xf32>
    %82 = arith.addf %81, %80 : vector<2x32xf32>
    %83 = arith.divf %81, %82 : vector<2x32xf32>
    %84 = vector.extract_strided_slice %77 {offsets = [0, 32], sizes = [2, 32], strides = [1, 1]} : vector<2x128xf32> to vector<2x32xf32>
    %85 = arith.negf %84 : vector<2x32xf32>
    %86 = math.exp %85 : vector<2x32xf32>
    %cst_30 = arith.constant 1.000000e+00 : f32
    %87 = vector.broadcast %cst_30 : f32 to vector<2x32xf32>
    %88 = arith.addf %87, %86 : vector<2x32xf32>
    %89 = arith.divf %87, %88 : vector<2x32xf32>
    %90 = vector.extract_strided_slice %77 {offsets = [0, 64], sizes = [2, 32], strides = [1, 1]} : vector<2x128xf32> to vector<2x32xf32>
    %91 = math.tanh %90 : vector<2x32xf32>
    %92 = vector.extract_strided_slice %77 {offsets = [0, 96], sizes = [2, 32], strides = [1, 1]} : vector<2x128xf32> to vector<2x32xf32>
    %93 = arith.negf %92 : vector<2x32xf32>
    %94 = math.exp %93 : vector<2x32xf32>
    %cst_31 = arith.constant 1.000000e+00 : f32
    %95 = vector.broadcast %cst_31 : f32 to vector<2x32xf32>
    %96 = arith.addf %95, %94 : vector<2x32xf32>
    %97 = arith.divf %95, %96 : vector<2x32xf32>
    %98 = arith.mulf %89, %40 : vector<2x32xf32>
    %99 = arith.mulf %83, %91 : vector<2x32xf32>
    %100 = arith.addf %98, %99 : vector<2x32xf32>
    %101 = math.tanh %100 : vector<2x32xf32>
    %102 = arith.mulf %97, %101 : vector<2x32xf32>
    %cst_32 = arith.constant dense<0.000000e+00> : vector<2x256xf32>
    %103 = tpu.matmul %102, %2, %cst_32 {dimension_numbers = #tpu.dot_dimension_numbers<[1], [0], [0], [1], [0, 0, 1, 1], [], []>} : vector<2x32xf32>, vector<32x256xf32>, vector<2x256xf32> -> vector<2x256xf32>
    %cst_33 = arith.constant dense<0.000000e+00> : vector<2x256xf32>
    %104 = tpu.matmul %71, %3, %cst_33 {dimension_numbers = #tpu.dot_dimension_numbers<[1], [0], [0], [1], [0, 0, 1, 1], [], []>} : vector<2x64xf32>, vector<64x256xf32>, vector<2x256xf32> -> vector<2x256xf32>
    %105 = arith.addf %103, %104 : vector<2x256xf32>
    %106 = arith.addf %105, %11 : vector<2x256xf32>
    %107 = vector.extract_strided_slice %106 {offsets = [0, 0], sizes = [2, 64], strides = [1, 1]} : vector<2x256xf32> to vector<2x64xf32>
    %108 = arith.negf %107 : vector<2x64xf32>
    %109 = math.exp %108 : vector<2x64xf32>
    %cst_34 = arith.constant 1.000000e+00 : f32
    %110 = vector.broadcast %cst_34 : f32 to vector<2x64xf32>
    %111 = arith.addf %110, %109 : vector<2x64xf32>
    %112 = arith.divf %110, %111 : vector<2x64xf32>
    %113 = vector.extract_strided_slice %106 {offsets = [0, 64], sizes = [2, 64], strides = [1, 1]} : vector<2x256xf32> to vector<2x64xf32>
    %114 = arith.negf %113 : vector<2x64xf32>
    %115 = math.exp %114 : vector<2x64xf32>
    %cst_35 = arith.constant 1.000000e+00 : f32
    %116 = vector.broadcast %cst_35 : f32 to vector<2x64xf32>
    %117 = arith.addf %116, %115 : vector<2x64xf32>
    %118 = arith.divf %116, %117 : vector<2x64xf32>
    %119 = vector.extract_strided_slice %106 {offsets = [0, 128], sizes = [2, 64], strides = [1, 1]} : vector<2x256xf32> to vector<2x64xf32>
    %120 = math.tanh %119 : vector<2x64xf32>
    %121 = vector.extract_strided_slice %106 {offsets = [0, 192], sizes = [2, 64], strides = [1, 1]} : vector<2x256xf32> to vector<2x64xf32>
    %122 = arith.negf %121 : vector<2x64xf32>
    %123 = math.exp %122 : vector<2x64xf32>
    %cst_36 = arith.constant 1.000000e+00 : f32
    %124 = vector.broadcast %cst_36 : f32 to vector<2x64xf32>
    %125 = arith.addf %124, %123 : vector<2x64xf32>
    %126 = arith.divf %124, %125 : vector<2x64xf32>
    %127 = arith.mulf %118, %69 : vector<2x64xf32>
    %128 = arith.mulf %112, %120 : vector<2x64xf32>
    %129 = arith.addf %127, %128 : vector<2x64xf32>
    %130 = math.tanh %129 : vector<2x64xf32>
    %131 = arith.mulf %126, %130 : vector<2x64xf32>
    %132 = arith.index_cast %c1_i32 : i32 to index
    %c0_37 = arith.constant 0 : index
    %c0_38 = arith.constant 0 : index
    %133 = vector.load %arg10[%132, %c0_37, %c0_38] : memref<8x2x64xf32, #tpu.memory_space<vmem>>, vector<1x2x64xf32>
    %134 = vector.shape_cast %133 : vector<1x2x64xf32> to vector<2x64xf32>
    %135 = vector.shape_cast %131 : vector<2x64xf32> to vector<1x2x64xf32>
    tpu.vector_store %arg10[%132, %c0_37, %c0_38], %135 {strides = array<i32>} : memref<8x2x64xf32, #tpu.memory_space<vmem>>, vector<1x2x64xf32>,
    %c2_i32 = arith.constant 2 : i32
    %cst_39 = arith.constant dense<0.000000e+00> : vector<2x128xf32>
    %136 = tpu.matmul %102, %1, %cst_39 {dimension_numbers = #tpu.dot_dimension_numbers<[1], [0], [0], [1], [0, 0, 1, 1], [], []>} : vector<2x32xf32>, vector<32x128xf32>, vector<2x128xf32> -> vector<2x128xf32>
    %137 = arith.addf %8, %136 : vector<2x128xf32>
    %138 = vector.extract_strided_slice %137 {offsets = [0, 0], sizes = [2, 32], strides = [1, 1]} : vector<2x128xf32> to vector<2x32xf32>
    %139 = arith.negf %138 : vector<2x32xf32>
    %140 = math.exp %139 : vector<2x32xf32>
    %cst_40 = arith.constant 1.000000e+00 : f32
    %141 = vector.broadcast %cst_40 : f32 to vector<2x32xf32>
    %142 = arith.addf %141, %140 : vector<2x32xf32>
    %143 = arith.divf %141, %142 : vector<2x32xf32>
    %144 = vector.extract_strided_slice %137 {offsets = [0, 32], sizes = [2, 32], strides = [1, 1]} : vector<2x128xf32> to vector<2x32xf32>
    %145 = arith.negf %144 : vector<2x32xf32>
    %146 = math.exp %145 : vector<2x32xf32>
    %cst_41 = arith.constant 1.000000e+00 : f32
    %147 = vector.broadcast %cst_41 : f32 to vector<2x32xf32>
    %148 = arith.addf %147, %146 : vector<2x32xf32>
    %149 = arith.divf %147, %148 : vector<2x32xf32>
    %150 = vector.extract_strided_slice %137 {offsets = [0, 64], sizes = [2, 32], strides = [1, 1]} : vector<2x128xf32> to vector<2x32xf32>
    %151 = math.tanh %150 : vector<2x32xf32>
    %152 = vector.extract_strided_slice %137 {offsets = [0, 96], sizes = [2, 32], strides = [1, 1]} : vector<2x128xf32> to vector<2x32xf32>
    %153 = arith.negf %152 : vector<2x32xf32>
    %154 = math.exp %153 : vector<2x32xf32>
    %cst_42 = arith.constant 1.000000e+00 : f32
    %155 = vector.broadcast %cst_42 : f32 to vector<2x32xf32>
    %156 = arith.addf %155, %154 : vector<2x32xf32>
    %157 = arith.divf %155, %156 : vector<2x32xf32>
    %158 = arith.mulf %149, %100 : vector<2x32xf32>
    %159 = arith.mulf %143, %151 : vector<2x32xf32>
    %160 = arith.addf %158, %159 : vector<2x32xf32>
    %161 = math.tanh %160 : vector<2x32xf32>
    %162 = arith.mulf %157, %161 : vector<2x32xf32>
    %cst_43 = arith.constant dense<0.000000e+00> : vector<2x256xf32>
    %163 = tpu.matmul %162, %2, %cst_43 {dimension_numbers = #tpu.dot_dimension_numbers<[1], [0], [0], [1], [0, 0, 1, 1], [], []>} : vector<2x32xf32>, vector<32x256xf32>, vector<2x256xf32> -> vector<2x256xf32>
    %cst_44 = arith.constant dense<0.000000e+00> : vector<2x256xf32>
    %164 = tpu.matmul %131, %3, %cst_44 {dimension_numbers = #tpu.dot_dimension_numbers<[1], [0], [0], [1], [0, 0, 1, 1], [], []>} : vector<2x64xf32>, vector<64x256xf32>, vector<2x256xf32> -> vector<2x256xf32>
    %165 = arith.addf %163, %164 : vector<2x256xf32>
    %166 = arith.addf %165, %11 : vector<2x256xf32>
    %167 = vector.extract_strided_slice %166 {offsets = [0, 0], sizes = [2, 64], strides = [1, 1]} : vector<2x256xf32> to vector<2x64xf32>
    %168 = arith.negf %167 : vector<2x64xf32>
    %169 = math.exp %168 : vector<2x64xf32>
    %cst_45 = arith.constant 1.000000e+00 : f32
    %170 = vector.broadcast %cst_45 : f32 to vector<2x64xf32>
    %171 = arith.addf %170, %169 : vector<2x64xf32>
    %172 = arith.divf %170, %171 : vector<2x64xf32>
    %173 = vector.extract_strided_slice %166 {offsets = [0, 64], sizes = [2, 64], strides = [1, 1]} : vector<2x256xf32> to vector<2x64xf32>
    %174 = arith.negf %173 : vector<2x64xf32>
    %175 = math.exp %174 : vector<2x64xf32>
    %cst_46 = arith.constant 1.000000e+00 : f32
    %176 = vector.broadcast %cst_46 : f32 to vector<2x64xf32>
    %177 = arith.addf %176, %175 : vector<2x64xf32>
    %178 = arith.divf %176, %177 : vector<2x64xf32>
    %179 = vector.extract_strided_slice %166 {offsets = [0, 128], sizes = [2, 64], strides = [1, 1]} : vector<2x256xf32> to vector<2x64xf32>
    %180 = math.tanh %179 : vector<2x64xf32>
    %181 = vector.extract_strided_slice %166 {offsets = [0, 192], sizes = [2, 64], strides = [1, 1]} : vector<2x256xf32> to vector<2x64xf32>
    %182 = arith.negf %181 : vector<2x64xf32>
    %183 = math.exp %182 : vector<2x64xf32>
    %cst_47 = arith.constant 1.000000e+00 : f32
    %184 = vector.broadcast %cst_47 : f32 to vector<2x64xf32>
    %185 = arith.addf %184, %183 : vector<2x64xf32>
    %186 = arith.divf %184, %185 : vector<2x64xf32>
    %187 = arith.mulf %178, %129 : vector<2x64xf32>
    %188 = arith.mulf %172, %180 : vector<2x64xf32>
    %189 = arith.addf %187, %188 : vector<2x64xf32>
    %190 = math.tanh %189 : vector<2x64xf32>
    %191 = arith.mulf %186, %190 : vector<2x64xf32>
    %192 = arith.index_cast %c2_i32 : i32 to index
    %c0_48 = arith.constant 0 : index
    %c0_49 = arith.constant 0 : index
    %193 = vector.load %arg10[%192, %c0_48, %c0_49] : memref<8x2x64xf32, #tpu.memory_space<vmem>>, vector<1x2x64xf32>
    %194 = vector.shape_cast %193 : vector<1x2x64xf32> to vector<2x64xf32>
    %195 = vector.shape_cast %191 : vector<2x64xf32> to vector<1x2x64xf32>
    tpu.vector_store %arg10[%192, %c0_48, %c0_49], %195 {strides = array<i32>} : memref<8x2x64xf32, #tpu.memory_space<vmem>>, vector<1x2x64xf32>,
    %c3_i32 = arith.constant 3 : i32
    %cst_50 = arith.constant dense<0.000000e+00> : vector<2x128xf32>
    %196 = tpu.matmul %162, %1, %cst_50 {dimension_numbers = #tpu.dot_dimension_numbers<[1], [0], [0], [1], [0, 0, 1, 1], [], []>} : vector<2x32xf32>, vector<32x128xf32>, vector<2x128xf32> -> vector<2x128xf32>
    %197 = arith.addf %8, %196 : vector<2x128xf32>
    %198 = vector.extract_strided_slice %197 {offsets = [0, 0], sizes = [2, 32], strides = [1, 1]} : vector<2x128xf32> to vector<2x32xf32>
    %199 = arith.negf %198 : vector<2x32xf32>
    %200 = math.exp %199 : vector<2x32xf32>
    %cst_51 = arith.constant 1.000000e+00 : f32
    %201 = vector.broadcast %cst_51 : f32 to vector<2x32xf32>
    %202 = arith.addf %201, %200 : vector<2x32xf32>
    %203 = arith.divf %201, %202 : vector<2x32xf32>
    %204 = vector.extract_strided_slice %197 {offsets = [0, 32], sizes = [2, 32], strides = [1, 1]} : vector<2x128xf32> to vector<2x32xf32>
    %205 = arith.negf %204 : vector<2x32xf32>
    %206 = math.exp %205 : vector<2x32xf32>
    %cst_52 = arith.constant 1.000000e+00 : f32
    %207 = vector.broadcast %cst_52 : f32 to vector<2x32xf32>
    %208 = arith.addf %207, %206 : vector<2x32xf32>
    %209 = arith.divf %207, %208 : vector<2x32xf32>
    %210 = vector.extract_strided_slice %197 {offsets = [0, 64], sizes = [2, 32], strides = [1, 1]} : vector<2x128xf32> to vector<2x32xf32>
    %211 = math.tanh %210 : vector<2x32xf32>
    %212 = vector.extract_strided_slice %197 {offsets = [0, 96], sizes = [2, 32], strides = [1, 1]} : vector<2x128xf32> to vector<2x32xf32>
    %213 = arith.negf %212 : vector<2x32xf32>
    %214 = math.exp %213 : vector<2x32xf32>
    %cst_53 = arith.constant 1.000000e+00 : f32
    %215 = vector.broadcast %cst_53 : f32 to vector<2x32xf32>
    %216 = arith.addf %215, %214 : vector<2x32xf32>
    %217 = arith.divf %215, %216 : vector<2x32xf32>
    %218 = arith.mulf %209, %160 : vector<2x32xf32>
    %219 = arith.mulf %203, %211 : vector<2x32xf32>
    %220 = arith.addf %218, %219 : vector<2x32xf32>
    %221 = math.tanh %220 : vector<2x32xf32>
    %222 = arith.mulf %217, %221 : vector<2x32xf32>
    %cst_54 = arith.constant dense<0.000000e+00> : vector<2x256xf32>
    %223 = tpu.matmul %222, %2, %cst_54 {dimension_numbers = #tpu.dot_dimension_numbers<[1], [0], [0], [1], [0, 0, 1, 1], [], []>} : vector<2x32xf32>, vector<32x256xf32>, vector<2x256xf32> -> vector<2x256xf32>
    %cst_55 = arith.constant dense<0.000000e+00> : vector<2x256xf32>
    %224 = tpu.matmul %191, %3, %cst_55 {dimension_numbers = #tpu.dot_dimension_numbers<[1], [0], [0], [1], [0, 0, 1, 1], [], []>} : vector<2x64xf32>, vector<64x256xf32>, vector<2x256xf32> -> vector<2x256xf32>
    %225 = arith.addf %223, %224 : vector<2x256xf32>
    %226 = arith.addf %225, %11 : vector<2x256xf32>
    %227 = vector.extract_strided_slice %226 {offsets = [0, 0], sizes = [2, 64], strides = [1, 1]} : vector<2x256xf32> to vector<2x64xf32>
    %228 = arith.negf %227 : vector<2x64xf32>
    %229 = math.exp %228 : vector<2x64xf32>
    %cst_56 = arith.constant 1.000000e+00 : f32
    %230 = vector.broadcast %cst_56 : f32 to vector<2x64xf32>
    %231 = arith.addf %230, %229 : vector<2x64xf32>
    %232 = arith.divf %230, %231 : vector<2x64xf32>
    %233 = vector.extract_strided_slice %226 {offsets = [0, 64], sizes = [2, 64], strides = [1, 1]} : vector<2x256xf32> to vector<2x64xf32>
    %234 = arith.negf %233 : vector<2x64xf32>
    %235 = math.exp %234 : vector<2x64xf32>
    %cst_57 = arith.constant 1.000000e+00 : f32
    %236 = vector.broadcast %cst_57 : f32 to vector<2x64xf32>
    %237 = arith.addf %236, %235 : vector<2x64xf32>
    %238 = arith.divf %236, %237 : vector<2x64xf32>
    %239 = vector.extract_strided_slice %226 {offsets = [0, 128], sizes = [2, 64], strides = [1, 1]} : vector<2x256xf32> to vector<2x64xf32>
    %240 = math.tanh %239 : vector<2x64xf32>
    %241 = vector.extract_strided_slice %226 {offsets = [0, 192], sizes = [2, 64], strides = [1, 1]} : vector<2x256xf32> to vector<2x64xf32>
    %242 = arith.negf %241 : vector<2x64xf32>
    %243 = math.exp %242 : vector<2x64xf32>
    %cst_58 = arith.constant 1.000000e+00 : f32
    %244 = vector.broadcast %cst_58 : f32 to vector<2x64xf32>
    %245 = arith.addf %244, %243 : vector<2x64xf32>
    %246 = arith.divf %244, %245 : vector<2x64xf32>
    %247 = arith.mulf %238, %189 : vector<2x64xf32>
    %248 = arith.mulf %232, %240 : vector<2x64xf32>
    %249 = arith.addf %247, %248 : vector<2x64xf32>
    %250 = math.tanh %249 : vector<2x64xf32>
    %251 = arith.mulf %246, %250 : vector<2x64xf32>
    %252 = arith.index_cast %c3_i32 : i32 to index
    %c0_59 = arith.constant 0 : index
    %c0_60 = arith.constant 0 : index
    %253 = vector.load %arg10[%252, %c0_59, %c0_60] : memref<8x2x64xf32, #tpu.memory_space<vmem>>, vector<1x2x64xf32>
    %254 = vector.shape_cast %253 : vector<1x2x64xf32> to vector<2x64xf32>
    %255 = vector.shape_cast %251 : vector<2x64xf32> to vector<1x2x64xf32>
    tpu.vector_store %arg10[%252, %c0_59, %c0_60], %255 {strides = array<i32>} : memref<8x2x64xf32, #tpu.memory_space<vmem>>, vector<1x2x64xf32>,
    %c4_i32 = arith.constant 4 : i32
    %cst_61 = arith.constant dense<0.000000e+00> : vector<2x128xf32>
    %256 = tpu.matmul %222, %1, %cst_61 {dimension_numbers = #tpu.dot_dimension_numbers<[1], [0], [0], [1], [0, 0, 1, 1], [], []>} : vector<2x32xf32>, vector<32x128xf32>, vector<2x128xf32> -> vector<2x128xf32>
    %257 = arith.addf %8, %256 : vector<2x128xf32>
    %258 = vector.extract_strided_slice %257 {offsets = [0, 0], sizes = [2, 32], strides = [1, 1]} : vector<2x128xf32> to vector<2x32xf32>
    %259 = arith.negf %258 : vector<2x32xf32>
    %260 = math.exp %259 : vector<2x32xf32>
    %cst_62 = arith.constant 1.000000e+00 : f32
    %261 = vector.broadcast %cst_62 : f32 to vector<2x32xf32>
    %262 = arith.addf %261, %260 : vector<2x32xf32>
    %263 = arith.divf %261, %262 : vector<2x32xf32>
    %264 = vector.extract_strided_slice %257 {offsets = [0, 32], sizes = [2, 32], strides = [1, 1]} : vector<2x128xf32> to vector<2x32xf32>
    %265 = arith.negf %264 : vector<2x32xf32>
    %266 = math.exp %265 : vector<2x32xf32>
    %cst_63 = arith.constant 1.000000e+00 : f32
    %267 = vector.broadcast %cst_63 : f32 to vector<2x32xf32>
    %268 = arith.addf %267, %266 : vector<2x32xf32>
    %269 = arith.divf %267, %268 : vector<2x32xf32>
    %270 = vector.extract_strided_slice %257 {offsets = [0, 64], sizes = [2, 32], strides = [1, 1]} : vector<2x128xf32> to vector<2x32xf32>
    %271 = math.tanh %270 : vector<2x32xf32>
    %272 = vector.extract_strided_slice %257 {offsets = [0, 96], sizes = [2, 32], strides = [1, 1]} : vector<2x128xf32> to vector<2x32xf32>
    %273 = arith.negf %272 : vector<2x32xf32>
    %274 = math.exp %273 : vector<2x32xf32>
    %cst_64 = arith.constant 1.000000e+00 : f32
    %275 = vector.broadcast %cst_64 : f32 to vector<2x32xf32>
    %276 = arith.addf %275, %274 : vector<2x32xf32>
    %277 = arith.divf %275, %276 : vector<2x32xf32>
    %278 = arith.mulf %269, %220 : vector<2x32xf32>
    %279 = arith.mulf %263, %271 : vector<2x32xf32>
    %280 = arith.addf %278, %279 : vector<2x32xf32>
    %281 = math.tanh %280 : vector<2x32xf32>
    %282 = arith.mulf %277, %281 : vector<2x32xf32>
    %cst_65 = arith.constant dense<0.000000e+00> : vector<2x256xf32>
    %283 = tpu.matmul %282, %2, %cst_65 {dimension_numbers = #tpu.dot_dimension_numbers<[1], [0], [0], [1], [0, 0, 1, 1], [], []>} : vector<2x32xf32>, vector<32x256xf32>, vector<2x256xf32> -> vector<2x256xf32>
    %cst_66 = arith.constant dense<0.000000e+00> : vector<2x256xf32>
    %284 = tpu.matmul %251, %3, %cst_66 {dimension_numbers = #tpu.dot_dimension_numbers<[1], [0], [0], [1], [0, 0, 1, 1], [], []>} : vector<2x64xf32>, vector<64x256xf32>, vector<2x256xf32> -> vector<2x256xf32>
    %285 = arith.addf %283, %284 : vector<2x256xf32>
    %286 = arith.addf %285, %11 : vector<2x256xf32>
    %287 = vector.extract_strided_slice %286 {offsets = [0, 0], sizes = [2, 64], strides = [1, 1]} : vector<2x256xf32> to vector<2x64xf32>
    %288 = arith.negf %287 : vector<2x64xf32>
    %289 = math.exp %288 : vector<2x64xf32>
    %cst_67 = arith.constant 1.000000e+00 : f32
    %290 = vector.broadcast %cst_67 : f32 to vector<2x64xf32>
    %291 = arith.addf %290, %289 : vector<2x64xf32>
    %292 = arith.divf %290, %291 : vector<2x64xf32>
    %293 = vector.extract_strided_slice %286 {offsets = [0, 64], sizes = [2, 64], strides = [1, 1]} : vector<2x256xf32> to vector<2x64xf32>
    %294 = arith.negf %293 : vector<2x64xf32>
    %295 = math.exp %294 : vector<2x64xf32>
    %cst_68 = arith.constant 1.000000e+00 : f32
    %296 = vector.broadcast %cst_68 : f32 to vector<2x64xf32>
    %297 = arith.addf %296, %295 : vector<2x64xf32>
    %298 = arith.divf %296, %297 : vector<2x64xf32>
    %299 = vector.extract_strided_slice %286 {offsets = [0, 128], sizes = [2, 64], strides = [1, 1]} : vector<2x256xf32> to vector<2x64xf32>
    %300 = math.tanh %299 : vector<2x64xf32>
    %301 = vector.extract_strided_slice %286 {offsets = [0, 192], sizes = [2, 64], strides = [1, 1]} : vector<2x256xf32> to vector<2x64xf32>
    %302 = arith.negf %301 : vector<2x64xf32>
    %303 = math.exp %302 : vector<2x64xf32>
    %cst_69 = arith.constant 1.000000e+00 : f32
    %304 = vector.broadcast %cst_69 : f32 to vector<2x64xf32>
    %305 = arith.addf %304, %303 : vector<2x64xf32>
    %306 = arith.divf %304, %305 : vector<2x64xf32>
    %307 = arith.mulf %298, %249 : vector<2x64xf32>
    %308 = arith.mulf %292, %300 : vector<2x64xf32>
    %309 = arith.addf %307, %308 : vector<2x64xf32>
    %310 = math.tanh %309 : vector<2x64xf32>
    %311 = arith.mulf %306, %310 : vector<2x64xf32>
    %312 = arith.index_cast %c4_i32 : i32 to index
    %c0_70 = arith.constant 0 : index
    %c0_71 = arith.constant 0 : index
    %313 = vector.load %arg10[%312, %c0_70, %c0_71] : memref<8x2x64xf32, #tpu.memory_space<vmem>>, vector<1x2x64xf32>
    %314 = vector.shape_cast %313 : vector<1x2x64xf32> to vector<2x64xf32>
    %315 = vector.shape_cast %311 : vector<2x64xf32> to vector<1x2x64xf32>
    tpu.vector_store %arg10[%312, %c0_70, %c0_71], %315 {strides = array<i32>} : memref<8x2x64xf32, #tpu.memory_space<vmem>>, vector<1x2x64xf32>,
    %c5_i32 = arith.constant 5 : i32
    %cst_72 = arith.constant dense<0.000000e+00> : vector<2x128xf32>
    %316 = tpu.matmul %282, %1, %cst_72 {dimension_numbers = #tpu.dot_dimension_numbers<[1], [0], [0], [1], [0, 0, 1, 1], [], []>} : vector<2x32xf32>, vector<32x128xf32>, vector<2x128xf32> -> vector<2x128xf32>
    %317 = arith.addf %8, %316 : vector<2x128xf32>
    %318 = vector.extract_strided_slice %317 {offsets = [0, 0], sizes = [2, 32], strides = [1, 1]} : vector<2x128xf32> to vector<2x32xf32>
    %319 = arith.negf %318 : vector<2x32xf32>
    %320 = math.exp %319 : vector<2x32xf32>
    %cst_73 = arith.constant 1.000000e+00 : f32
    %321 = vector.broadcast %cst_73 : f32 to vector<2x32xf32>
    %322 = arith.addf %321, %320 : vector<2x32xf32>
    %323 = arith.divf %321, %322 : vector<2x32xf32>
    %324 = vector.extract_strided_slice %317 {offsets = [0, 32], sizes = [2, 32], strides = [1, 1]} : vector<2x128xf32> to vector<2x32xf32>
    %325 = arith.negf %324 : vector<2x32xf32>
    %326 = math.exp %325 : vector<2x32xf32>
    %cst_74 = arith.constant 1.000000e+00 : f32
    %327 = vector.broadcast %cst_74 : f32 to vector<2x32xf32>
    %328 = arith.addf %327, %326 : vector<2x32xf32>
    %329 = arith.divf %327, %328 : vector<2x32xf32>
    %330 = vector.extract_strided_slice %317 {offsets = [0, 64], sizes = [2, 32], strides = [1, 1]} : vector<2x128xf32> to vector<2x32xf32>
    %331 = math.tanh %330 : vector<2x32xf32>
    %332 = vector.extract_strided_slice %317 {offsets = [0, 96], sizes = [2, 32], strides = [1, 1]} : vector<2x128xf32> to vector<2x32xf32>
    %333 = arith.negf %332 : vector<2x32xf32>
    %334 = math.exp %333 : vector<2x32xf32>
    %cst_75 = arith.constant 1.000000e+00 : f32
    %335 = vector.broadcast %cst_75 : f32 to vector<2x32xf32>
    %336 = arith.addf %335, %334 : vector<2x32xf32>
    %337 = arith.divf %335, %336 : vector<2x32xf32>
    %338 = arith.mulf %329, %280 : vector<2x32xf32>
    %339 = arith.mulf %323, %331 : vector<2x32xf32>
    %340 = arith.addf %338, %339 : vector<2x32xf32>
    %341 = math.tanh %340 : vector<2x32xf32>
    %342 = arith.mulf %337, %341 : vector<2x32xf32>
    %cst_76 = arith.constant dense<0.000000e+00> : vector<2x256xf32>
    %343 = tpu.matmul %342, %2, %cst_76 {dimension_numbers = #tpu.dot_dimension_numbers<[1], [0], [0], [1], [0, 0, 1, 1], [], []>} : vector<2x32xf32>, vector<32x256xf32>, vector<2x256xf32> -> vector<2x256xf32>
    %cst_77 = arith.constant dense<0.000000e+00> : vector<2x256xf32>
    %344 = tpu.matmul %311, %3, %cst_77 {dimension_numbers = #tpu.dot_dimension_numbers<[1], [0], [0], [1], [0, 0, 1, 1], [], []>} : vector<2x64xf32>, vector<64x256xf32>, vector<2x256xf32> -> vector<2x256xf32>
    %345 = arith.addf %343, %344 : vector<2x256xf32>
    %346 = arith.addf %345, %11 : vector<2x256xf32>
    %347 = vector.extract_strided_slice %346 {offsets = [0, 0], sizes = [2, 64], strides = [1, 1]} : vector<2x256xf32> to vector<2x64xf32>
    %348 = arith.negf %347 : vector<2x64xf32>
    %349 = math.exp %348 : vector<2x64xf32>
    %cst_78 = arith.constant 1.000000e+00 : f32
    %350 = vector.broadcast %cst_78 : f32 to vector<2x64xf32>
    %351 = arith.addf %350, %349 : vector<2x64xf32>
    %352 = arith.divf %350, %351 : vector<2x64xf32>
    %353 = vector.extract_strided_slice %346 {offsets = [0, 64], sizes = [2, 64], strides = [1, 1]} : vector<2x256xf32> to vector<2x64xf32>
    %354 = arith.negf %353 : vector<2x64xf32>
    %355 = math.exp %354 : vector<2x64xf32>
    %cst_79 = arith.constant 1.000000e+00 : f32
    %356 = vector.broadcast %cst_79 : f32 to vector<2x64xf32>
    %357 = arith.addf %356, %355 : vector<2x64xf32>
    %358 = arith.divf %356, %357 : vector<2x64xf32>
    %359 = vector.extract_strided_slice %346 {offsets = [0, 128], sizes = [2, 64], strides = [1, 1]} : vector<2x256xf32> to vector<2x64xf32>
    %360 = math.tanh %359 : vector<2x64xf32>
    %361 = vector.extract_strided_slice %346 {offsets = [0, 192], sizes = [2, 64], strides = [1, 1]} : vector<2x256xf32> to vector<2x64xf32>
    %362 = arith.negf %361 : vector<2x64xf32>
    %363 = math.exp %362 : vector<2x64xf32>
    %cst_80 = arith.constant 1.000000e+00 : f32
    %364 = vector.broadcast %cst_80 : f32 to vector<2x64xf32>
    %365 = arith.addf %364, %363 : vector<2x64xf32>
    %366 = arith.divf %364, %365 : vector<2x64xf32>
    %367 = arith.mulf %358, %309 : vector<2x64xf32>
    %368 = arith.mulf %352, %360 : vector<2x64xf32>
    %369 = arith.addf %367, %368 : vector<2x64xf32>
    %370 = math.tanh %369 : vector<2x64xf32>
    %371 = arith.mulf %366, %370 : vector<2x64xf32>
    %372 = arith.index_cast %c5_i32 : i32 to index
    %c0_81 = arith.constant 0 : index
    %c0_82 = arith.constant 0 : index
    %373 = vector.load %arg10[%372, %c0_81, %c0_82] : memref<8x2x64xf32, #tpu.memory_space<vmem>>, vector<1x2x64xf32>
    %374 = vector.shape_cast %373 : vector<1x2x64xf32> to vector<2x64xf32>
    %375 = vector.shape_cast %371 : vector<2x64xf32> to vector<1x2x64xf32>
    tpu.vector_store %arg10[%372, %c0_81, %c0_82], %375 {strides = array<i32>} : memref<8x2x64xf32, #tpu.memory_space<vmem>>, vector<1x2x64xf32>,
    %c6_i32 = arith.constant 6 : i32
    %cst_83 = arith.constant dense<0.000000e+00> : vector<2x128xf32>
    %376 = tpu.matmul %342, %1, %cst_83 {dimension_numbers = #tpu.dot_dimension_numbers<[1], [0], [0], [1], [0, 0, 1, 1], [], []>} : vector<2x32xf32>, vector<32x128xf32>, vector<2x128xf32> -> vector<2x128xf32>
    %377 = arith.addf %8, %376 : vector<2x128xf32>
    %378 = vector.extract_strided_slice %377 {offsets = [0, 0], sizes = [2, 32], strides = [1, 1]} : vector<2x128xf32> to vector<2x32xf32>
    %379 = arith.negf %378 : vector<2x32xf32>
    %380 = math.exp %379 : vector<2x32xf32>
    %cst_84 = arith.constant 1.000000e+00 : f32
    %381 = vector.broadcast %cst_84 : f32 to vector<2x32xf32>
    %382 = arith.addf %381, %380 : vector<2x32xf32>
    %383 = arith.divf %381, %382 : vector<2x32xf32>
    %384 = vector.extract_strided_slice %377 {offsets = [0, 32], sizes = [2, 32], strides = [1, 1]} : vector<2x128xf32> to vector<2x32xf32>
    %385 = arith.negf %384 : vector<2x32xf32>
    %386 = math.exp %385 : vector<2x32xf32>
    %cst_85 = arith.constant 1.000000e+00 : f32
    %387 = vector.broadcast %cst_85 : f32 to vector<2x32xf32>
    %388 = arith.addf %387, %386 : vector<2x32xf32>
    %389 = arith.divf %387, %388 : vector<2x32xf32>
    %390 = vector.extract_strided_slice %377 {offsets = [0, 64], sizes = [2, 32], strides = [1, 1]} : vector<2x128xf32> to vector<2x32xf32>
    %391 = math.tanh %390 : vector<2x32xf32>
    %392 = vector.extract_strided_slice %377 {offsets = [0, 96], sizes = [2, 32], strides = [1, 1]} : vector<2x128xf32> to vector<2x32xf32>
    %393 = arith.negf %392 : vector<2x32xf32>
    %394 = math.exp %393 : vector<2x32xf32>
    %cst_86 = arith.constant 1.000000e+00 : f32
    %395 = vector.broadcast %cst_86 : f32 to vector<2x32xf32>
    %396 = arith.addf %395, %394 : vector<2x32xf32>
    %397 = arith.divf %395, %396 : vector<2x32xf32>
    %398 = arith.mulf %389, %340 : vector<2x32xf32>
    %399 = arith.mulf %383, %391 : vector<2x32xf32>
    %400 = arith.addf %398, %399 : vector<2x32xf32>
    %401 = math.tanh %400 : vector<2x32xf32>
    %402 = arith.mulf %397, %401 : vector<2x32xf32>
    %cst_87 = arith.constant dense<0.000000e+00> : vector<2x256xf32>
    %403 = tpu.matmul %402, %2, %cst_87 {dimension_numbers = #tpu.dot_dimension_numbers<[1], [0], [0], [1], [0, 0, 1, 1], [], []>} : vector<2x32xf32>, vector<32x256xf32>, vector<2x256xf32> -> vector<2x256xf32>
    %cst_88 = arith.constant dense<0.000000e+00> : vector<2x256xf32>
    %404 = tpu.matmul %371, %3, %cst_88 {dimension_numbers = #tpu.dot_dimension_numbers<[1], [0], [0], [1], [0, 0, 1, 1], [], []>} : vector<2x64xf32>, vector<64x256xf32>, vector<2x256xf32> -> vector<2x256xf32>
    %405 = arith.addf %403, %404 : vector<2x256xf32>
    %406 = arith.addf %405, %11 : vector<2x256xf32>
    %407 = vector.extract_strided_slice %406 {offsets = [0, 0], sizes = [2, 64], strides = [1, 1]} : vector<2x256xf32> to vector<2x64xf32>
    %408 = arith.negf %407 : vector<2x64xf32>
    %409 = math.exp %408 : vector<2x64xf32>
    %cst_89 = arith.constant 1.000000e+00 : f32
    %410 = vector.broadcast %cst_89 : f32 to vector<2x64xf32>
    %411 = arith.addf %410, %409 : vector<2x64xf32>
    %412 = arith.divf %410, %411 : vector<2x64xf32>
    %413 = vector.extract_strided_slice %406 {offsets = [0, 64], sizes = [2, 64], strides = [1, 1]} : vector<2x256xf32> to vector<2x64xf32>
    %414 = arith.negf %413 : vector<2x64xf32>
    %415 = math.exp %414 : vector<2x64xf32>
    %cst_90 = arith.constant 1.000000e+00 : f32
    %416 = vector.broadcast %cst_90 : f32 to vector<2x64xf32>
    %417 = arith.addf %416, %415 : vector<2x64xf32>
    %418 = arith.divf %416, %417 : vector<2x64xf32>
    %419 = vector.extract_strided_slice %406 {offsets = [0, 128], sizes = [2, 64], strides = [1, 1]} : vector<2x256xf32> to vector<2x64xf32>
    %420 = math.tanh %419 : vector<2x64xf32>
    %421 = vector.extract_strided_slice %406 {offsets = [0, 192], sizes = [2, 64], strides = [1, 1]} : vector<2x256xf32> to vector<2x64xf32>
    %422 = arith.negf %421 : vector<2x64xf32>
    %423 = math.exp %422 : vector<2x64xf32>
    %cst_91 = arith.constant 1.000000e+00 : f32
    %424 = vector.broadcast %cst_91 : f32 to vector<2x64xf32>
    %425 = arith.addf %424, %423 : vector<2x64xf32>
    %426 = arith.divf %424, %425 : vector<2x64xf32>
    %427 = arith.mulf %418, %369 : vector<2x64xf32>
    %428 = arith.mulf %412, %420 : vector<2x64xf32>
    %429 = arith.addf %427, %428 : vector<2x64xf32>
    %430 = math.tanh %429 : vector<2x64xf32>
    %431 = arith.mulf %426, %430 : vector<2x64xf32>
    %432 = arith.index_cast %c6_i32 : i32 to index
    %c0_92 = arith.constant 0 : index
    %c0_93 = arith.constant 0 : index
    %433 = vector.load %arg10[%432, %c0_92, %c0_93] : memref<8x2x64xf32, #tpu.memory_space<vmem>>, vector<1x2x64xf32>
    %434 = vector.shape_cast %433 : vector<1x2x64xf32> to vector<2x64xf32>
    %435 = vector.shape_cast %431 : vector<2x64xf32> to vector<1x2x64xf32>
    tpu.vector_store %arg10[%432, %c0_92, %c0_93], %435 {strides = array<i32>} : memref<8x2x64xf32, #tpu.memory_space<vmem>>, vector<1x2x64xf32>,
    %c7_i32 = arith.constant 7 : i32
    %cst_94 = arith.constant dense<0.000000e+00> : vector<2x128xf32>
    %436 = tpu.matmul %402, %1, %cst_94 {dimension_numbers = #tpu.dot_dimension_numbers<[1], [0], [0], [1], [0, 0, 1, 1], [], []>} : vector<2x32xf32>, vector<32x128xf32>, vector<2x128xf32> -> vector<2x128xf32>
    %437 = arith.addf %8, %436 : vector<2x128xf32>
    %438 = vector.extract_strided_slice %437 {offsets = [0, 0], sizes = [2, 32], strides = [1, 1]} : vector<2x128xf32> to vector<2x32xf32>
    %439 = arith.negf %438 : vector<2x32xf32>
    %440 = math.exp %439 : vector<2x32xf32>
    %cst_95 = arith.constant 1.000000e+00 : f32
    %441 = vector.broadcast %cst_95 : f32 to vector<2x32xf32>
    %442 = arith.addf %441, %440 : vector<2x32xf32>
    %443 = arith.divf %441, %442 : vector<2x32xf32>
    %444 = vector.extract_strided_slice %437 {offsets = [0, 32], sizes = [2, 32], strides = [1, 1]} : vector<2x128xf32> to vector<2x32xf32>
    %445 = arith.negf %444 : vector<2x32xf32>
    %446 = math.exp %445 : vector<2x32xf32>
    %cst_96 = arith.constant 1.000000e+00 : f32
    %447 = vector.broadcast %cst_96 : f32 to vector<2x32xf32>
    %448 = arith.addf %447, %446 : vector<2x32xf32>
    %449 = arith.divf %447, %448 : vector<2x32xf32>
    %450 = vector.extract_strided_slice %437 {offsets = [0, 64], sizes = [2, 32], strides = [1, 1]} : vector<2x128xf32> to vector<2x32xf32>
    %451 = math.tanh %450 : vector<2x32xf32>
    %452 = vector.extract_strided_slice %437 {offsets = [0, 96], sizes = [2, 32], strides = [1, 1]} : vector<2x128xf32> to vector<2x32xf32>
    %453 = arith.negf %452 : vector<2x32xf32>
    %454 = math.exp %453 : vector<2x32xf32>
    %cst_97 = arith.constant 1.000000e+00 : f32
    %455 = vector.broadcast %cst_97 : f32 to vector<2x32xf32>
    %456 = arith.addf %455, %454 : vector<2x32xf32>
    %457 = arith.divf %455, %456 : vector<2x32xf32>
    %458 = arith.mulf %449, %400 : vector<2x32xf32>
    %459 = arith.mulf %443, %451 : vector<2x32xf32>
    %460 = arith.addf %458, %459 : vector<2x32xf32>
    %461 = math.tanh %460 : vector<2x32xf32>
    %462 = arith.mulf %457, %461 : vector<2x32xf32>
    %cst_98 = arith.constant dense<0.000000e+00> : vector<2x256xf32>
    %463 = tpu.matmul %462, %2, %cst_98 {dimension_numbers = #tpu.dot_dimension_numbers<[1], [0], [0], [1], [0, 0, 1, 1], [], []>} : vector<2x32xf32>, vector<32x256xf32>, vector<2x256xf32> -> vector<2x256xf32>
    %cst_99 = arith.constant dense<0.000000e+00> : vector<2x256xf32>
    %464 = tpu.matmul %431, %3, %cst_99 {dimension_numbers = #tpu.dot_dimension_numbers<[1], [0], [0], [1], [0, 0, 1, 1], [], []>} : vector<2x64xf32>, vector<64x256xf32>, vector<2x256xf32> -> vector<2x256xf32>
    %465 = arith.addf %463, %464 : vector<2x256xf32>
    %466 = arith.addf %465, %11 : vector<2x256xf32>
    %467 = vector.extract_strided_slice %466 {offsets = [0, 0], sizes = [2, 64], strides = [1, 1]} : vector<2x256xf32> to vector<2x64xf32>
    %468 = arith.negf %467 : vector<2x64xf32>
    %469 = math.exp %468 : vector<2x64xf32>
    %cst_100 = arith.constant 1.000000e+00 : f32
    %470 = vector.broadcast %cst_100 : f32 to vector<2x64xf32>
    %471 = arith.addf %470, %469 : vector<2x64xf32>
    %472 = arith.divf %470, %471 : vector<2x64xf32>
    %473 = vector.extract_strided_slice %466 {offsets = [0, 64], sizes = [2, 64], strides = [1, 1]} : vector<2x256xf32> to vector<2x64xf32>
    %474 = arith.negf %473 : vector<2x64xf32>
    %475 = math.exp %474 : vector<2x64xf32>
    %cst_101 = arith.constant 1.000000e+00 : f32
    %476 = vector.broadcast %cst_101 : f32 to vector<2x64xf32>
    %477 = arith.addf %476, %475 : vector<2x64xf32>
    %478 = arith.divf %476, %477 : vector<2x64xf32>
    %479 = vector.extract_strided_slice %466 {offsets = [0, 128], sizes = [2, 64], strides = [1, 1]} : vector<2x256xf32> to vector<2x64xf32>
    %480 = math.tanh %479 : vector<2x64xf32>
    %481 = vector.extract_strided_slice %466 {offsets = [0, 192], sizes = [2, 64], strides = [1, 1]} : vector<2x256xf32> to vector<2x64xf32>
    %482 = arith.negf %481 : vector<2x64xf32>
    %483 = math.exp %482 : vector<2x64xf32>
    %cst_102 = arith.constant 1.000000e+00 : f32
    %484 = vector.broadcast %cst_102 : f32 to vector<2x64xf32>
    %485 = arith.addf %484, %483 : vector<2x64xf32>
    %486 = arith.divf %484, %485 : vector<2x64xf32>
    %487 = arith.mulf %478, %429 : vector<2x64xf32>
    %488 = arith.mulf %472, %480 : vector<2x64xf32>
    %489 = arith.addf %487, %488 : vector<2x64xf32>
    %490 = math.tanh %489 : vector<2x64xf32>
    %491 = arith.mulf %486, %490 : vector<2x64xf32>
    %492 = arith.index_cast %c7_i32 : i32 to index
    %c0_103 = arith.constant 0 : index
    %c0_104 = arith.constant 0 : index
    %493 = vector.load %arg10[%492, %c0_103, %c0_104] : memref<8x2x64xf32, #tpu.memory_space<vmem>>, vector<1x2x64xf32>
    %494 = vector.shape_cast %493 : vector<1x2x64xf32> to vector<2x64xf32>
    %495 = vector.shape_cast %491 : vector<2x64xf32> to vector<1x2x64xf32>
    tpu.vector_store %arg10[%492, %c0_103, %c0_104], %495 {strides = array<i32>} : memref<8x2x64xf32, #tpu.memory_space<vmem>>, vector<1x2x64xf32>,
    %c8_i32 = arith.constant 8 : i32
    %c0_105 = arith.constant 0 : index
    %c0_106 = arith.constant 0 : index
    %c0_107 = arith.constant 0 : index
    %496 = vector.load %arg10[%c0_105, %c0_106, %c0_107] : memref<8x2x64xf32, #tpu.memory_space<vmem>>, vector<8x2x64xf32>
    %497 = vector.shape_cast %496 : vector<8x2x64xf32> to vector<16x64xf32>
    %c0_108 = arith.constant 0 : index
    %c0_109 = arith.constant 0 : index
    %498 = vector.load %arg7[%c0_108, %c0_109] : memref<64x1xf32, #tpu.memory_space<vmem>>, vector<64x1xf32>
    %cst_110 = arith.constant dense<0.000000e+00> : vector<16x1xf32>
    %499 = tpu.matmul %497, %498, %cst_110 {dimension_numbers = #tpu.dot_dimension_numbers<[1], [0], [0], [1], [0, 0, 1, 1], [], []>} : vector<16x64xf32>, vector<64x1xf32>, vector<16x1xf32> -> vector<16x1xf32>
    %c0_111 = arith.constant 0 : index
    %c0_112 = arith.constant 0 : index
    %500 = vector.load %arg8[%c0_111, %c0_112] : memref<1x1xf32, #tpu.memory_space<vmem>>, vector<1x1xf32>
    %501 = vector.broadcast %500 : vector<1x1xf32> to vector<16x1xf32>
    %502 = arith.addf %499, %501 : vector<16x1xf32>
    %c0_113 = arith.constant 0 : index
    %c0_114 = arith.constant 0 : index
    %503 = vector.load %arg9[%c0_113, %c0_114] : memref<16x1xf32, #tpu.memory_space<vmem>>, vector<16x1xf32>
    tpu.vector_store %arg9[%c0_113, %c0_114], %502 {strides = array<i32>} : memref<16x1xf32, #tpu.memory_space<vmem>>, vector<16x1xf32>,
    return
  }
}

</mosaic_0001>

<llo_original>
// kernel: tpu_custom_call.1
$region0: #{tpu_custom_call.1}
  #allocation0 [shape = 'u32[]', space=smem, size = 0x4, offset = 0x4, fixed_abs, tag = 'smem constant byte address 0x4 - core index']
  #allocation1 [shape = 'u32[144,128]{1,0:T(1,128)}', space=vmem, size = 0x12000, scoped, tag = 'internal scratch']
  #allocation2 [shape = 'f32[8,2,64]{2,1,0:T(2,128)}', space=vmem, size = 0x2000, scoped, tag = 'scratch operand']
  #allocation3 [shape = 'f32[1,1]{1,0:T(1,128)S(1)}', space=vmem, size = 0x200, scoped, tag = 'scoped memory for tpu_custom_call.1']
  %s0 = inlined_call_operand.vmem [shape: f32[2,32], index: 0, kind: input, shape index: {}]
  %s1 = inlined_call_operand.hbm [shape: f32[32,128], index: 1, kind: input, shape index: {}]
  %s2 = inlined_call_operand.hbm [shape: f32[32,128], index: 2, kind: input, shape index: {}]
  %s3 = inlined_call_operand.vmem [shape: f32[1,128], index: 3, kind: input, shape index: {}]
  %s4 = inlined_call_operand.vmem [shape: f32[32,256], index: 4, kind: input, shape index: {}]
  %s5 = inlined_call_operand.hbm [shape: f32[64,256], index: 5, kind: input, shape index: {}]
  %s6 = inlined_call_operand.vmem [shape: f32[1,256], index: 6, kind: input, shape index: {}]
  %s7 = inlined_call_operand.vmem [shape: f32[64,1], index: 7, kind: input, shape index: {}]
  %s8 = inlined_call_operand.<no memory space> [shape: f32[1,1], index: 8, kind: input, shape index: {}]
  %s9 = inlined_call_operand.vmem [shape: f32[16,1], index: 9, kind: output, shape index: {}]
  %s10 = sld [smem:[#allocation0]]
  $region58: #{tpu_custom_call.1} parent=0
    _
  %s12 = ssub.s32 1, %s10
  %s13 = scalar_select 0, %s12, %s10
  %v14 = vstv %s8
  %15 = vst [vmem:[#allocation3] sm:$0x1] %v14
  $region1: #{tpu_custom_call.1} parent=0
    #allocation4 [shape = 'u8[16384]{0}', space=vmem, size = 0x4000, scoped, tag = 'input window, operand 1, single buffered']
    #allocation5 [shape = 's32[1]{0}', space=sflag, size = 0x4, scoped, tag = 'scoped memory for tpu_custom_call.1']
    #allocation6 [shape = 'u8[16384]{0}', space=vmem, size = 0x4000, scoped, tag = 'input window, operand 2, single buffered']
    #allocation7 [shape = 's32[1]{0}', space=sflag, size = 0x4, scoped, tag = 'scoped memory for tpu_custom_call.1']
    #allocation8 [shape = 'u8[65536]{0}', space=vmem, size = 0x10000, scoped, tag = 'input window, operand 5, single buffered']
    %16 = vsyncpa [#allocation5], 0
    %17 = vsyncpa [#allocation7], 0
    // Predicated region
    $region2: #{tpu_custom_call.1} parent=1 // pred_check
      _
    $region3: #{tpu_custom_call.1} parent=1 // pred_check_branch
      %19 = sbr.rel (0) target = $region5
    $region4: #{tpu_custom_call.1} parent=1 // pred_region
      _
    $region5: #{tpu_custom_call.1} parent=1 // pred_fallthru
      _
    // Predicated region
    $region6: #{tpu_custom_call.1} parent=1 // pred_check
      _
    $region7: #{tpu_custom_call.1} parent=1 // pred_check_branch
      %21 = sbr.rel (0) target = $region9
    $region8: #{tpu_custom_call.1} parent=1 // pred_region
      %s23 = ssub.s32 512, 512
      %24 = vsyncadd [#allocation5], %s23
      %s25 = sshll.u32 [#allocation4], 4
      %s26 = int_to_ptr.vmem [resolvable:$true] %s25
      %31 = dma.hbm_to_vmem [thread:$0]  %s1, 512, %s26, [#allocation5], 128, 128, 8
    $region9: #{tpu_custom_call.1} parent=1 // pred_fallthru
      _
    // Predicated region
    $region10: #{tpu_custom_call.1} parent=1 // pred_check
      _
    $region11: #{tpu_custom_call.1} parent=1 // pred_check_branch
      %33 = sbr.rel (0) target = $region13
    $region12: #{tpu_custom_call.1} parent=1 // pred_region
      %s35 = ssub.s32 512, 512
      %36 = vsyncadd [#allocation7], %s35
      %s37 = sshll.u32 [#allocation6], 4
      %s38 = int_to_ptr.vmem [resolvable:$true] %s37
      %43 = dma.hbm_to_vmem [thread:$0]  %s2, 512, %s38, [#allocation7], 128, 128, 8
    $region13: #{tpu_custom_call.1} parent=1 // pred_fallthru
      _
    // Predicated region
    $region14: #{tpu_custom_call.1} parent=1 // pred_check
      _
    $region15: #{tpu_custom_call.1} parent=1 // pred_check_branch
      %45 = sbr.rel (0) target = $region17
    $region16: #{tpu_custom_call.1} parent=1 // pred_region
      _
    $region17: #{tpu_custom_call.1} parent=1 // pred_fallthru
      _
    // Predicated region
    $region18: #{tpu_custom_call.1} parent=1 // pred_check
      _
    $region19: #{tpu_custom_call.1} parent=1 // pred_check_branch
      %47 = sbr.rel (0) target = $region21
    $region20: #{tpu_custom_call.1} parent=1 // pred_region
      _
    $region21: #{tpu_custom_call.1} parent=1 // pred_fallthru
      _
    // Predicated region
    $region22: #{tpu_custom_call.1} parent=1 // pred_check
      _
    $region23: #{tpu_custom_call.1} parent=1 // pred_check_branch
      %49 = sbr.rel (0) target = $region25
    $region24: #{tpu_custom_call.1} parent=1 // pred_region
      %s51 = ssub.s32 2048, 2048
      %52 = vsyncadd [#allocation7], %s51
      %s53 = sshll.u32 [#allocation8], 4
      %s54 = int_to_ptr.vmem [resolvable:$true] %s53
      %59 = dma.hbm_to_vmem [thread:$0]  %s5, 2048, %s54, [#allocation7], 256, 256, 16
    $region25: #{tpu_custom_call.1} parent=1 // pred_fallthru
      _
    // Predicated region
    $region26: #{tpu_custom_call.1} parent=1 // pred_check
      _
    $region27: #{tpu_custom_call.1} parent=1 // pred_check_branch
      %61 = sbr.rel (0) target = $region29
    $region28: #{tpu_custom_call.1} parent=1 // pred_region
      _
    $region29: #{tpu_custom_call.1} parent=1 // pred_fallthru
      _
    // Predicated region
    $region30: #{tpu_custom_call.1} parent=1 // pred_check
      _
    $region31: #{tpu_custom_call.1} parent=1 // pred_check_branch
      %63 = sbr.rel (0) target = $region33
    $region32: #{tpu_custom_call.1} parent=1 // pred_region
      _
    $region33: #{tpu_custom_call.1} parent=1 // pred_fallthru
      _
    // Predicated region
    $region34: #{tpu_custom_call.1} parent=1 // pred_check
      _
    $region35: #{tpu_custom_call.1} parent=1 // pred_check_branch
      %65 = sbr.rel (0) target = $region37
    $region36: #{tpu_custom_call.1} parent=1 // pred_region
      _
    $region37: #{tpu_custom_call.1} parent=1 // pred_fallthru
      _
    // Predicated region
    $region38: #{tpu_custom_call.1} parent=1 // pred_check
      _
    $region39: #{tpu_custom_call.1} parent=1 // pred_check_branch
      %67 = sbr.rel (0) target = $region41
    $region40: #{tpu_custom_call.1} parent=1 // pred_region
      %68 = dma.done [#allocation5], 512
    $region41: #{tpu_custom_call.1} parent=1 // pred_fallthru
      _
    // Predicated region
    $region42: #{tpu_custom_call.1} parent=1 // pred_check
      _
    $region43: #{tpu_custom_call.1} parent=1 // pred_check_branch
      %70 = sbr.rel (0) target = $region45
    $region44: #{tpu_custom_call.1} parent=1 // pred_region
      %71 = dma.done [#allocation7], 512
    $region45: #{tpu_custom_call.1} parent=1 // pred_fallthru
      _
    // Predicated region
    $region46: #{tpu_custom_call.1} parent=1 // pred_check
      _
    $region47: #{tpu_custom_call.1} parent=1 // pred_check_branch
      %73 = sbr.rel (0) target = $region49
    $region48: #{tpu_custom_call.1} parent=1 // pred_region
      %74 = dma.done [#allocation7], 2048
    $region49: #{tpu_custom_call.1} parent=1 // pred_fallthru
      _
    %v75 = vld [vmem:[%s0] sm:$0x3]
    %v76 = vld [vmem:[#allocation6] sm:$0xff]
    %v77 = vld [vmem:[#allocation6 + $0x8] sm:$0xff]
    %v78 = vld [vmem:[#allocation6 + $0x10] sm:$0xff]
    %v79 = vld [vmem:[#allocation6 + $0x18] sm:$0xff]
    %v80 = vld [vmem:[%s4] sm:$0xff]
    %v81 = vld [vmem:[%s4 + $0x8] sm:$0xff]
    %v82 = vld [vmem:[%s4 + $0x10] sm:$0xff]
    %v83 = vld [vmem:[%s4 + $0x18] sm:$0xff]
    %v84 = vld [vmem:[%s4 + $0x20] sm:$0xff]
    %v85 = vld [vmem:[%s4 + $0x28] sm:$0xff]
    %v86 = vld [vmem:[%s4 + $0x30] sm:$0xff]
    %v87 = vld [vmem:[%s4 + $0x38] sm:$0xff]
    %v88 = vld [vmem:[#allocation8] sm:$0xff]
    %v89 = vld [vmem:[#allocation8 + $0x8] sm:$0xff]
    %v90 = vld [vmem:[#allocation8 + $0x10] sm:$0xff]
    %v91 = vld [vmem:[#allocation8 + $0x18] sm:$0xff]
    %v92 = vld [vmem:[#allocation8 + $0x20] sm:$0xff]
    %v93 = vld [vmem:[#allocation8 + $0x28] sm:$0xff]
    %v94 = vld [vmem:[#allocation8 + $0x30] sm:$0xff]
    %v95 = vld [vmem:[#allocation8 + $0x38] sm:$0xff]
    %v96 = vld [vmem:[#allocation8 + $0x40] sm:$0xff]
    %v97 = vld [vmem:[#allocation8 + $0x48] sm:$0xff]
    %v98 = vld [vmem:[#allocation8 + $0x50] sm:$0xff]
    %v99 = vld [vmem:[#allocation8 + $0x58] sm:$0xff]
    %v100 = vld [vmem:[#allocation8 + $0x60] sm:$0xff]
    %v101 = vld [vmem:[#allocation8 + $0x68] sm:$0xff]
    %v102 = vld [vmem:[#allocation8 + $0x70] sm:$0xff]
    %v103 = vld [vmem:[#allocation8 + $0x78] sm:$0xff]
    %v104 = vld [vmem:[#allocation4] sm:$0xff]
    %v105 = vld [vmem:[#allocation4 + $0x8] sm:$0xff]
    %v106 = vld [vmem:[#allocation4 + $0x10] sm:$0xff]
    %v107 = vld [vmem:[#allocation4 + $0x18] sm:$0xff]
    %v108 = vld [vmem:[%s3] sm:$0x1]
    %v110 = vlaneseq
    %v111 = vshrl.u32 %v110, 7
    %v112 = vsub.s32 0, %v111
    %v113 = vrot.slane %v108, %v112
    %vm115 = vcmask 261120
    %v117 = vsel %vm115, %v75, 0
    %119 = vmatprep.subr.mxu0 0.0
    %120 = vmatpush1.msra.mxu0 %v104
    %121 = vmatprep.subr.mxu0 0.0
    %122 = vmatpush1.msra.mxu0 %v105
    %123 = vmatprep.subr.mxu0 0.0
    %124 = vmatpush1.msra.mxu0 %v106
    %125 = vmatprep.subr.mxu0 0.0
    %126 = vmatpush1.msra.mxu0 %v107
    %127 = vmatprep.subr.mxu0 0.0
    %128 = vmatpush1.msra.mxu0 0.0
    %129 = vmatprep.subr.mxu0 0.0
    %130 = vmatpush1.msra.mxu0 0.0
    %131 = vmatprep.subr.mxu0 0.0
    %132 = vmatpush1.msra.mxu0 0.0
    %133 = vmatprep.subr.mxu0 0.0
    %134 = vmatpush1.msra.mxu0 0.0
    %135 = vmatprep.subr.mxu0 0.0
    %136 = vmatpush1.msra.mxu0 0.0
    %137 = vmatprep.subr.mxu0 0.0
    %138 = vmatpush1.msra.mxu0 0.0
    %139 = vmatprep.subr.mxu0 0.0
    %140 = vmatpush1.msra.mxu0 0.0
    %141 = vmatprep.subr.mxu0 0.0
    %142 = vmatpush1.msra.mxu0 0.0
    %143 = vmatprep.subr.mxu0 0.0
    %144 = vmatpush1.msra.mxu0 0.0
    %145 = vmatprep.subr.mxu0 0.0
    %146 = vmatpush1.msra.mxu0 0.0
    %147 = vmatprep.subr.mxu0 0.0
    %148 = vmatpush1.msra.mxu0 0.0
    %149 = vmatprep.subr.mxu0 0.0
    %150 = vmatpush1.msra.mxu0 0.0
    %151 = vmatprep.subr.mxu0 0.0
    %152 = vmatpush1.msra.mxu0 0.0
    %153 = vmatprep.subr.mxu0 0.0
    %154 = vmatpush1.msra.mxu0 0.0
    %155 = vmatprep.subr.mxu0 0.0
    %156 = vmatpush1.msra.mxu0 0.0
    %157 = vmatprep.subr.mxu0 0.0
    %158 = vmatpush1.msra.mxu0 0.0
    %159 = vmatprep.subr.mxu0 0.0
    %160 = vmatpush1.msra.mxu0 0.0
    %161 = vmatprep.subr.mxu0 0.0
    %162 = vmatpush1.msra.mxu0 0.0
    %163 = vmatprep.subr.mxu0 0.0
    %164 = vmatpush1.msra.mxu0 0.0
    %165 = vmatprep.subr.mxu0 0.0
    %166 = vmatpush1.msra.mxu0 0.0
    %167 = vmatprep.subr.mxu0 0.0
    %168 = vmatpush1.msra.mxu0 0.0
    %169 = vmatprep.subr.mxu0 0.0
    %170 = vmatpush1.msra.mxu0 0.0
    %171 = vmatprep.subr.mxu0 0.0
    %172 = vmatpush1.msra.mxu0 0.0
    %173 = vmatprep.subr.mxu0 0.0
    %174 = vmatpush1.msra.mxu0 0.0
    %175 = vmatprep.subr.mxu0 0.0
    %176 = vmatpush1.msra.mxu0 0.0
    %177 = vmatprep.subr.mxu0 0.0
    %178 = vmatpush1.msra.mxu0 0.0
    %179 = vmatprep.subr.mxu0 0.0
    %180 = vmatpush1.msra.mxu0 0.0
    %181 = vmatprep.subr.mxu0 0.0
    %182 = vmatpush1.msra.mxu0 0.0
    %183 = vmatprep.mubr.f32.mxu0 0.0
    %184 = vmatmul.mubr.f32.gmra.mrb[0].mxu0 %v117
    %v185 = vpop.f32.mrb[0].mxu0
    %v186 = vadd.f32 %v113, %v185
    %v187 = vpop.f32.mrb[0].mxu0
    %188 = vdwg.mxu0
    %v189 = vld [vmem:[%s6] sm:$0x3]
    %v191 = vlaneseq
    %v192 = vshrl.u32 %v191, 7
    %v193 = vsub.s32 0, %v192
    %v194 = vrot.slane %v189, %v193
    %v195 = vlaneseq
    %v196 = vshrl.u32 %v195, 7
    %v197 = vsub.s32 1, %v196
    %v198 = vrot.slane %v189, %v197
    %v202 = vsel %vm115, 0.0, 0
    %204 = vmatprep.subr.mxu0 0.0
    %205 = vmatpush1.msra.mxu0 %v76
    %206 = vmatprep.subr.mxu0 0.0
    %207 = vmatpush1.msra.mxu0 %v77
    %208 = vmatprep.subr.mxu0 0.0
    %209 = vmatpush1.msra.mxu0 %v78
    %210 = vmatprep.subr.mxu0 0.0
    %211 = vmatpush1.msra.mxu0 %v79
    %212 = vmatprep.subr.mxu0 0.0
    %213 = vmatpush1.msra.mxu0 0.0
    %214 = vmatprep.subr.mxu0 0.0
    %215 = vmatpush1.msra.mxu0 0.0
    %216 = vmatprep.subr.mxu0 0.0
    %217 = vmatpush1.msra.mxu0 0.0
    %218 = vmatprep.subr.mxu0 0.0
    %219 = vmatpush1.msra.mxu0 0.0
    %220 = vmatprep.subr.mxu0 0.0
    %221 = vmatpush1.msra.mxu0 0.0
    %222 = vmatprep.subr.mxu0 0.0
    %223 = vmatpush1.msra.mxu0 0.0
    %224 = vmatprep.subr.mxu0 0.0
    %225 = vmatpush1.msra.mxu0 0.0
    %226 = vmatprep.subr.mxu0 0.0
    %227 = vmatpush1.msra.mxu0 0.0
    %228 = vmatprep.subr.mxu0 0.0
    %229 = vmatpush1.msra.mxu0 0.0
    %230 = vmatprep.subr.mxu0 0.0
    %231 = vmatpush1.msra.mxu0 0.0
    %232 = vmatprep.subr.mxu0 0.0
    %233 = vmatpush1.msra.mxu0 0.0
    %234 = vmatprep.subr.mxu0 0.0
    %235 = vmatpush1.msra.mxu0 0.0
    %236 = vmatprep.subr.mxu0 0.0
    %237 = vmatpush1.msra.mxu0 0.0
    %238 = vmatprep.subr.mxu0 0.0
    %239 = vmatpush1.msra.mxu0 0.0
    %240 = vmatprep.subr.mxu0 0.0
    %241 = vmatpush1.msra.mxu0 0.0
    %242 = vmatprep.subr.mxu0 0.0
    %243 = vmatpush1.msra.mxu0 0.0
    %244 = vmatprep.subr.mxu0 0.0
    %245 = vmatpush1.msra.mxu0 0.0
    %246 = vmatprep.subr.mxu0 0.0
    %247 = vmatpush1.msra.mxu0 0.0
    %248 = vmatprep.subr.mxu0 0.0
    %249 = vmatpush1.msra.mxu0 0.0
    %250 = vmatprep.subr.mxu0 0.0
    %251 = vmatpush1.msra.mxu0 0.0
    %252 = vmatprep.subr.mxu0 0.0
    %253 = vmatpush1.msra.mxu0 0.0
    %254 = vmatprep.subr.mxu0 0.0
    %255 = vmatpush1.msra.mxu0 0.0
    %256 = vmatprep.subr.mxu0 0.0
    %257 = vmatpush1.msra.mxu0 0.0
    %258 = vmatprep.subr.mxu0 0.0
    %259 = vmatpush1.msra.mxu0 0.0
    %260 = vmatprep.subr.mxu0 0.0
    %261 = vmatpush1.msra.mxu0 0.0
    %262 = vmatprep.subr.mxu0 0.0
    %263 = vmatpush1.msra.mxu0 0.0
    %264 = vmatprep.subr.mxu0 0.0
    %265 = vmatpush1.msra.mxu0 0.0
    %266 = vmatprep.subr.mxu0 0.0
    %267 = vmatpush1.msra.mxu0 0.0
    %268 = vmatprep.mubr.f32.mxu0 0.0
    %269 = vmatmul.mubr.f32.gmra.mrb[0].mxu0 %v202
    %v270 = vpop.f32.mrb[0].mxu0
    %v271 = vadd.f32 0.0, %v270
    %v272 = vpop.f32.mrb[0].mxu0
    %273 = vdwg.mxu0
    %v274 = vadd.f32 %v186, %v271
    %v275 = vxor.u32 %v274, 2147483648
    %v276 = vmul.f32 %v275, 1.442695
    %v277 = vpow.pop %v276
    %v278 = vadd.f32 %v277, 1.0
    %v279 = vrcp.pop %v278
    %v280 = vmul.f32 1.0, %v279
    %v281 = vtanh.pop %v274
    %v282 = vmul.f32 %v280, 0.0
    %284 = vrot.lane.b32.xlu0 %v281, 64
    %v285 = vpop.permute.xlu0 %284
    %v287 = vmul.f32 %v280, %v285
    %289 = vrot.lane.b32.xlu0 %v287, 32
    %v290 = vpop.permute.xlu0 %289
    %v292 = vadd.f32 %v282, %v290
    %v293 = vtanh.pop %v292
    %295 = vrot.lane.b32.xlu0 %v293, 64
    %v296 = vpop.permute.xlu0 %295
    %v298 = vmul.f32 %v280, %v296
    %vm299 = vcmask 523264
    %v300 = vsel %vm299, 0.0, 0
    %302 = vmatprep.subr.mxu0 %v89
    %303 = vmatpush1.msra.mxu0 %v88
    %304 = vmatprep.subr.mxu0 %v91
    %305 = vmatpush1.msra.mxu0 %v90
    %306 = vmatprep.subr.mxu0 %v93
    %307 = vmatpush1.msra.mxu0 %v92
    %308 = vmatprep.subr.mxu0 %v95
    %309 = vmatpush1.msra.mxu0 %v94
    %310 = vmatprep.subr.mxu0 %v97
    %311 = vmatpush1.msra.mxu0 %v96
    %312 = vmatprep.subr.mxu0 %v99
    %313 = vmatpush1.msra.mxu0 %v98
    %314 = vmatprep.subr.mxu0 %v101
    %315 = vmatpush1.msra.mxu0 %v100
    %316 = vmatprep.subr.mxu0 %v103
    %317 = vmatpush1.msra.mxu0 %v102
    %318 = vmatprep.subr.mxu0 0.0
    %319 = vmatpush1.msra.mxu0 0.0
    %320 = vmatprep.subr.mxu0 0.0
    %321 = vmatpush1.msra.mxu0 0.0
    %322 = vmatprep.subr.mxu0 0.0
    %323 = vmatpush1.msra.mxu0 0.0
    %324 = vmatprep.subr.mxu0 0.0
    %325 = vmatpush1.msra.mxu0 0.0
    %326 = vmatprep.subr.mxu0 0.0
    %327 = vmatpush1.msra.mxu0 0.0
    %328 = vmatprep.subr.mxu0 0.0
    %329 = vmatpush1.msra.mxu0 0.0
    %330 = vmatprep.subr.mxu0 0.0
    %331 = vmatpush1.msra.mxu0 0.0
    %332 = vmatprep.subr.mxu0 0.0
    %333 = vmatpush1.msra.mxu0 0.0
    %334 = vmatprep.subr.mxu0 0.0
    %335 = vmatpush1.msra.mxu0 0.0
    %336 = vmatprep.subr.mxu0 0.0
    %337 = vmatpush1.msra.mxu0 0.0
    %338 = vmatprep.subr.mxu0 0.0
    %339 = vmatpush1.msra.mxu0 0.0
    %340 = vmatprep.subr.mxu0 0.0
    %341 = vmatpush1.msra.mxu0 0.0
    %342 = vmatprep.subr.mxu0 0.0
    %343 = vmatpush1.msra.mxu0 0.0
    %344 = vmatprep.subr.mxu0 0.0
    %345 = vmatpush1.msra.mxu0 0.0
    %346 = vmatprep.subr.mxu0 0.0
    %347 = vmatpush1.msra.mxu0 0.0
    %348 = vmatprep.subr.mxu0 0.0
    %349 = vmatpush1.msra.mxu0 0.0
    %350 = vmatprep.subr.mxu0 0.0
    %351 = vmatpush1.msra.mxu0 0.0
    %352 = vmatprep.subr.mxu0 0.0
    %353 = vmatpush1.msra.mxu0 0.0
    %354 = vmatprep.subr.mxu0 0.0
    %355 = vmatpush1.msra.mxu0 0.0
    %356 = vmatprep.subr.mxu0 0.0
    %357 = vmatpush1.msra.mxu0 0.0
    %358 = vmatprep.subr.mxu0 0.0
    %359 = vmatpush1.msra.mxu0 0.0
    %360 = vmatprep.subr.mxu0 0.0
    %361 = vmatpush1.msra.mxu0 0.0
    %362 = vmatprep.subr.mxu0 0.0
    %363 = vmatpush1.msra.mxu0 0.0
    %364 = vmatprep.subr.mxu0 0.0
    %365 = vmatpush1.msra.mxu0 0.0
    %366 = vmatprep.mubr.f32.mxu0 0.0
    %367 = vmatmul.mubr.f32.gmra.mrb[0].mxu0 %v300
    %v368 = vpop.f32.mrb[0].mxu0
    %v369 = vadd.f32 0.0, %v368
    %v370 = vpop.f32.mrb[0].mxu0
    %v371 = vadd.f32 0.0, %v370
    %372 = vdwg.mxu0
    %374 = vrot.lane.b32.xlu0 %v298, 32
    %v375 = vpop.permute.xlu0 %374
    %v376 = vsel %vm115, %v375, 0
    %378 = vmatprep.subr.mxu0 %v81
    %379 = vmatpush1.msra.mxu0 %v80
    %380 = vmatprep.subr.mxu0 %v83
    %381 = vmatpush1.msra.mxu0 %v82
    %382 = vmatprep.subr.mxu0 %v85
    %383 = vmatpush1.msra.mxu0 %v84
    %384 = vmatprep.subr.mxu0 %v87
    %385 = vmatpush1.msra.mxu0 %v86
    %386 = vmatprep.subr.mxu0 0.0
    %387 = vmatpush1.msra.mxu0 0.0
    %388 = vmatprep.subr.mxu0 0.0
    %389 = vmatpush1.msra.mxu0 0.0
    %390 = vmatprep.subr.mxu0 0.0
    %391 = vmatpush1.msra.mxu0 0.0
    %392 = vmatprep.subr.mxu0 0.0
    %393 = vmatpush1.msra.mxu0 0.0
    %394 = vmatprep.subr.mxu0 0.0
    %395 = vmatpush1.msra.mxu0 0.0
    %396 = vmatprep.subr.mxu0 0.0
    %397 = vmatpush1.msra.mxu0 0.0
    %398 = vmatprep.subr.mxu0 0.0
    %399 = vmatpush1.msra.mxu0 0.0
    %400 = vmatprep.subr.mxu0 0.0
    %401 = vmatpush1.msra.mxu0 0.0
    %402 = vmatprep.subr.mxu0 0.0
    %403 = vmatpush1.msra.mxu0 0.0
    %404 = vmatprep.subr.mxu0 0.0
    %405 = vmatpush1.msra.mxu0 0.0
    %406 = vmatprep.subr.mxu0 0.0
    %407 = vmatpush1.msra.mxu0 0.0
    %408 = vmatprep.subr.mxu0 0.0
    %409 = vmatpush1.msra.mxu0 0.0
    %410 = vmatprep.subr.mxu0 0.0
    %411 = vmatpush1.msra.mxu0 0.0
    %412 = vmatprep.subr.mxu0 0.0
    %413 = vmatpush1.msra.mxu0 0.0
    %414 = vmatprep.subr.mxu0 0.0
    %415 = vmatpush1.msra.mxu0 0.0
    %416 = vmatprep.subr.mxu0 0.0
    %417 = vmatpush1.msra.mxu0 0.0
    %418 = vmatprep.subr.mxu0 0.0
    %419 = vmatpush1.msra.mxu0 0.0
    %420 = vmatprep.subr.mxu0 0.0
    %421 = vmatpush1.msra.mxu0 0.0
    %422 = vmatprep.subr.mxu0 0.0
    %423 = vmatpush1.msra.mxu0 0.0
    %424 = vmatprep.subr.mxu0 0.0
    %425 = vmatpush1.msra.mxu0 0.0
    %426 = vmatprep.subr.mxu0 0.0
    %427 = vmatpush1.msra.mxu0 0.0
    %428 = vmatprep.subr.mxu0 0.0
    %429 = vmatpush1.msra.mxu0 0.0
    %430 = vmatprep.subr.mxu0 0.0
    %431 = vmatpush1.msra.mxu0 0.0
    %432 = vmatprep.subr.mxu0 0.0
    %433 = vmatpush1.msra.mxu0 0.0
    %434 = vmatprep.subr.mxu0 0.0
    %435 = vmatpush1.msra.mxu0 0.0
    %436 = vmatprep.subr.mxu0 0.0
    %437 = vmatpush1.msra.mxu0 0.0
    %438 = vmatprep.subr.mxu0 0.0
    %439 = vmatpush1.msra.mxu0 0.0
    %440 = vmatprep.subr.mxu0 0.0
    %441 = vmatpush1.msra.mxu0 0.0
    %442 = vmatprep.mubr.f32.mxu0 0.0
    %443 = vmatmul.mubr.f32.gmra.mrb[0].mxu0 %v376
    %v444 = vpop.f32.mrb[0].mxu0
    %v445 = vadd.f32 %v369, %v444
    %v446 = vpop.f32.mrb[0].mxu0
    %v447 = vadd.f32 %v371, %v446
    %448 = vdwg.mxu0
    %v449 = vadd.f32 %v445, %v194
    %v450 = vadd.f32 %v447, %v198
    %v451 = vxor.u32 %v449, 2147483648
    %v452 = vmul.f32 %v451, 1.442695
    %v453 = vpow.pop %v452
    %v454 = vadd.f32 %v453, 1.0
    %v455 = vrcp.pop %v454
    %v456 = vmul.f32 1.0, %v455
    %v457 = vtanh.pop %v450
    %v458 = vxor.u32 %v450, 2147483648
    %v459 = vmul.f32 %v458, 1.442695
    %v460 = vpow.pop %v459
    %v461 = vadd.f32 %v460, 1.0
    %v462 = vrcp.pop %v461
    %v463 = vmul.f32 1.0, %v462
    %v464 = vmul.f32 %v456, 0.0
    %v465 = vmul.f32 %v456, %v457
    %467 = vrot.lane.b32.xlu0 %v465, 64
    %v468 = vpop.permute.xlu0 %467
    %v470 = vadd.f32 %v464, %v468
    %v471 = vtanh.pop %v470
    %v472 = vmul.f32 %v463, %v471
    %474 = vrot.lane.b32.xlu0 %v472, 64
    %v475 = vpop.permute.xlu0 %474
    %vm477 = vcmask 517120
    %478 = vst.msk [vmem:[#allocation2] sm:$0x3] %vm477, %v475
    %479 = vmatprep.subr.mxu0 0.0
    %480 = vmatpush1.msra.mxu0 %v76
    %481 = vmatprep.subr.mxu0 0.0
    %482 = vmatpush1.msra.mxu0 %v77
    %483 = vmatprep.subr.mxu0 0.0
    %484 = vmatpush1.msra.mxu0 %v78
    %485 = vmatprep.subr.mxu0 0.0
    %486 = vmatpush1.msra.mxu0 %v79
    %487 = vmatprep.subr.mxu0 0.0
    %488 = vmatpush1.msra.mxu0 0.0
    %489 = vmatprep.subr.mxu0 0.0
    %490 = vmatpush1.msra.mxu0 0.0
    %491 = vmatprep.subr.mxu0 0.0
    %492 = vmatpush1.msra.mxu0 0.0
    %493 = vmatprep.subr.mxu0 0.0
    %494 = vmatpush1.msra.mxu0 0.0
    %495 = vmatprep.subr.mxu0 0.0
    %496 = vmatpush1.msra.mxu0 0.0
    %497 = vmatprep.subr.mxu0 0.0
    %498 = vmatpush1.msra.mxu0 0.0
    %499 = vmatprep.subr.mxu0 0.0
    %500 = vmatpush1.msra.mxu0 0.0
    %501 = vmatprep.subr.mxu0 0.0
    %502 = vmatpush1.msra.mxu0 0.0
    %503 = vmatprep.subr.mxu0 0.0
    %504 = vmatpush1.msra.mxu0 0.0
    %505 = vmatprep.subr.mxu0 0.0
    %506 = vmatpush1.msra.mxu0 0.0
    %507 = vmatprep.subr.mxu0 0.0
    %508 = vmatpush1.msra.mxu0 0.0
    %509 = vmatprep.subr.mxu0 0.0
    %510 = vmatpush1.msra.mxu0 0.0
    %511 = vmatprep.subr.mxu0 0.0
    %512 = vmatpush1.msra.mxu0 0.0
    %513 = vmatprep.subr.mxu0 0.0
    %514 = vmatpush1.msra.mxu0 0.0
    %515 = vmatprep.subr.mxu0 0.0
    %516 = vmatpush1.msra.mxu0 0.0
    %517 = vmatprep.subr.mxu0 0.0
    %518 = vmatpush1.msra.mxu0 0.0
    %519 = vmatprep.subr.mxu0 0.0
    %520 = vmatpush1.msra.mxu0 0.0
    %521 = vmatprep.subr.mxu0 0.0
    %522 = vmatpush1.msra.mxu0 0.0
    %523 = vmatprep.subr.mxu0 0.0
    %524 = vmatpush1.msra.mxu0 0.0
    %525 = vmatprep.subr.mxu0 0.0
    %526 = vmatpush1.msra.mxu0 0.0
    %527 = vmatprep.subr.mxu0 0.0
    %528 = vmatpush1.msra.mxu0 0.0
    %529 = vmatprep.subr.mxu0 0.0
    %530 = vmatpush1.msra.mxu0 0.0
    %531 = vmatprep.subr.mxu0 0.0
    %532 = vmatpush1.msra.mxu0 0.0
    %533 = vmatprep.subr.mxu0 0.0
    %534 = vmatpush1.msra.mxu0 0.0
    %535 = vmatprep.subr.mxu0 0.0
    %536 = vmatpush1.msra.mxu0 0.0
    %537 = vmatprep.subr.mxu0 0.0
    %538 = vmatpush1.msra.mxu0 0.0
    %539 = vmatprep.subr.mxu0 0.0
    %540 = vmatpush1.msra.mxu0 0.0
    %541 = vmatprep.subr.mxu0 0.0
    %542 = vmatpush1.msra.mxu0 0.0
    %543 = vmatprep.mubr.f32.mxu0 0.0
    %544 = vmatmul.mubr.f32.gmra.mrb[0].mxu0 %v376
    %v545 = vpop.f32.mrb[0].mxu0
    %v546 = vadd.f32 0.0, %v545
    %v547 = vpop.f32.mrb[0].mxu0
    %548 = vdwg.mxu0
    %v549 = vadd.f32 %v186, %v546
    %v550 = vxor.u32 %v549, 2147483648
    %v551 = vmul.f32 %v550, 1.442695
    %v552 = vpow.pop %v551
    %v553 = vadd.f32 %v552, 1.0
    %v554 = vrcp.pop %v553
    %v555 = vmul.f32 1.0, %v554
    %v556 = vtanh.pop %v549
    %v557 = vmul.f32 %v555, %v292
    %559 = vrot.lane.b32.xlu0 %v556, 64
    %v560 = vpop.permute.xlu0 %559
    %v562 = vmul.f32 %v555, %v560
    %564 = vrot.lane.b32.xlu0 %v562, 32
    %v565 = vpop.permute.xlu0 %564
    %v567 = vadd.f32 %v557, %v565
    %v568 = vtanh.pop %v567
    %570 = vrot.lane.b32.xlu0 %v568, 64
    %v571 = vpop.permute.xlu0 %570
    %v573 = vmul.f32 %v555, %v571
    %v574 = vsel %vm299, %v475, 0
    %576 = vmatprep.subr.mxu0 %v89
    %577 = vmatpush1.msra.mxu0 %v88
    %578 = vmatprep.subr.mxu0 %v91
    %579 = vmatpush1.msra.mxu0 %v90
    %580 = vmatprep.subr.mxu0 %v93
    %581 = vmatpush1.msra.mxu0 %v92
    %582 = vmatprep.subr.mxu0 %v95
    %583 = vmatpush1.msra.mxu0 %v94
    %584 = vmatprep.subr.mxu0 %v97
    %585 = vmatpush1.msra.mxu0 %v96
    %586 = vmatprep.subr.mxu0 %v99
    %587 = vmatpush1.msra.mxu0 %v98
    %588 = vmatprep.subr.mxu0 %v101
    %589 = vmatpush1.msra.mxu0 %v100
    %590 = vmatprep.subr.mxu0 %v103
    %591 = vmatpush1.msra.mxu0 %v102
    %592 = vmatprep.subr.mxu0 0.0
    %593 = vmatpush1.msra.mxu0 0.0
    %594 = vmatprep.subr.mxu0 0.0
    %595 = vmatpush1.msra.mxu0 0.0
    %596 = vmatprep.subr.mxu0 0.0
    %597 = vmatpush1.msra.mxu0 0.0
    %598 = vmatprep.subr.mxu0 0.0
    %599 = vmatpush1.msra.mxu0 0.0
    %600 = vmatprep.subr.mxu0 0.0
    %601 = vmatpush1.msra.mxu0 0.0
    %602 = vmatprep.subr.mxu0 0.0
    %603 = vmatpush1.msra.mxu0 0.0
    %604 = vmatprep.subr.mxu0 0.0
    %605 = vmatpush1.msra.mxu0 0.0
    %606 = vmatprep.subr.mxu0 0.0
    %607 = vmatpush1.msra.mxu0 0.0
    %608 = vmatprep.subr.mxu0 0.0
    %609 = vmatpush1.msra.mxu0 0.0
    %610 = vmatprep.subr.mxu0 0.0
    %611 = vmatpush1.msra.mxu0 0.0
    %612 = vmatprep.subr.mxu0 0.0
    %613 = vmatpush1.msra.mxu0 0.0
    %614 = vmatprep.subr.mxu0 0.0
    %615 = vmatpush1.msra.mxu0 0.0
    %616 = vmatprep.subr.mxu0 0.0
    %617 = vmatpush1.msra.mxu0 0.0
    %618 = vmatprep.subr.mxu0 0.0
    %619 = vmatpush1.msra.mxu0 0.0
    %620 = vmatprep.subr.mxu0 0.0
    %621 = vmatpush1.msra.mxu0 0.0
    %622 = vmatprep.subr.mxu0 0.0
    %623 = vmatpush1.msra.mxu0 0.0
    %624 = vmatprep.subr.mxu0 0.0
    %625 = vmatpush1.msra.mxu0 0.0
    %626 = vmatprep.subr.mxu0 0.0
    %627 = vmatpush1.msra.mxu0 0.0
    %628 = vmatprep.subr.mxu0 0.0
    %629 = vmatpush1.msra.mxu0 0.0
    %630 = vmatprep.subr.mxu0 0.0
    %631 = vmatpush1.msra.mxu0 0.0
    %632 = vmatprep.subr.mxu0 0.0
    %633 = vmatpush1.msra.mxu0 0.0
    %634 = vmatprep.subr.mxu0 0.0
    %635 = vmatpush1.msra.mxu0 0.0
    %636 = vmatprep.subr.mxu0 0.0
    %637 = vmatpush1.msra.mxu0 0.0
    %638 = vmatprep.subr.mxu0 0.0
    %639 = vmatpush1.msra.mxu0 0.0
    %640 = vmatprep.mubr.f32.mxu0 0.0
    %641 = vmatmul.mubr.f32.gmra.mrb[0].mxu0 %v574
    %v642 = vpop.f32.mrb[0].mxu0
    %v643 = vadd.f32 0.0, %v642
    %v644 = vpop.f32.mrb[0].mxu0
    %v645 = vadd.f32 0.0, %v644
    %646 = vdwg.mxu0
    %648 = vrot.lane.b32.xlu0 %v573, 32
    %v649 = vpop.permute.xlu0 %648
    %v650 = vsel %vm115, %v649, 0
    %652 = vmatprep.subr.mxu0 %v81
    %653 = vmatpush1.msra.mxu0 %v80
    %654 = vmatprep.subr.mxu0 %v83
    %655 = vmatpush1.msra.mxu0 %v82
    %656 = vmatprep.subr.mxu0 %v85
    %657 = vmatpush1.msra.mxu0 %v84
    %658 = vmatprep.subr.mxu0 %v87
    %659 = vmatpush1.msra.mxu0 %v86
    %660 = vmatprep.subr.mxu0 0.0
    %661 = vmatpush1.msra.mxu0 0.0
    %662 = vmatprep.subr.mxu0 0.0
    %663 = vmatpush1.msra.mxu0 0.0
    %664 = vmatprep.subr.mxu0 0.0
    %665 = vmatpush1.msra.mxu0 0.0
    %666 = vmatprep.subr.mxu0 0.0
    %667 = vmatpush1.msra.mxu0 0.0
    %668 = vmatprep.subr.mxu0 0.0
    %669 = vmatpush1.msra.mxu0 0.0
    %670 = vmatprep.subr.mxu0 0.0
    %671 = vmatpush1.msra.mxu0 0.0
    %672 = vmatprep.subr.mxu0 0.0
    %673 = vmatpush1.msra.mxu0 0.0
    %674 = vmatprep.subr.mxu0 0.0
    %675 = vmatpush1.msra.mxu0 0.0
    %676 = vmatprep.subr.mxu0 0.0
    %677 = vmatpush1.msra.mxu0 0.0
    %678 = vmatprep.subr.mxu0 0.0
    %679 = vmatpush1.msra.mxu0 0.0
    %680 = vmatprep.subr.mxu0 0.0
    %681 = vmatpush1.msra.mxu0 0.0
    %682 = vmatprep.subr.mxu0 0.0
    %683 = vmatpush1.msra.mxu0 0.0
    %684 = vmatprep.subr.mxu0 0.0
    %685 = vmatpush1.msra.mxu0 0.0
    %686 = vmatprep.subr.mxu0 0.0
    %687 = vmatpush1.msra.mxu0 0.0
    %688 = vmatprep.subr.mxu0 0.0
    %689 = vmatpush1.msra.mxu0 0.0
    %690 = vmatprep.subr.mxu0 0.0
    %691 = vmatpush1.msra.mxu0 0.0
    %692 = vmatprep.subr.mxu0 0.0
    %693 = vmatpush1.msra.mxu0 0.0
    %694 = vmatprep.subr.mxu0 0.0
    %695 = vmatpush1.msra.mxu0 0.0
    %696 = vmatprep.subr.mxu0 0.0
    %697 = vmatpush1.msra.mxu0 0.0
    %698 = vmatprep.subr.mxu0 0.0
    %699 = vmatpush1.msra.mxu0 0.0
    %700 = vmatprep.subr.mxu0 0.0
    %701 = vmatpush1.msra.mxu0 0.0
    %702 = vmatprep.subr.mxu0 0.0
    %703 = vmatpush1.msra.mxu0 0.0
    %704 = vmatprep.subr.mxu0 0.0
    %705 = vmatpush1.msra.mxu0 0.0
    %706 = vmatprep.subr.mxu0 0.0
    %707 = vmatpush1.msra.mxu0 0.0
    %708 = vmatprep.subr.mxu0 0.0
    %709 = vmatpush1.msra.mxu0 0.0
    %710 = vmatprep.subr.mxu0 0.0
    %711 = vmatpush1.msra.mxu0 0.0
    %712 = vmatprep.subr.mxu0 0.0
    %713 = vmatpush1.msra.mxu0 0.0
    %714 = vmatprep.subr.mxu0 0.0
    %715 = vmatpush1.msra.mxu0 0.0
    %716 = vmatprep.mubr.f32.mxu0 0.0
    %717 = vmatmul.mubr.f32.gmra.mrb[0].mxu0 %v650
    %v718 = vpop.f32.mrb[0].mxu0
    %v719 = vadd.f32 %v643, %v718
    %v720 = vpop.f32.mrb[0].mxu0
    %v721 = vadd.f32 %v645, %v720
    %722 = vdwg.mxu0
    %v723 = vadd.f32 %v719, %v194
    %v724 = vadd.f32 %v721, %v198
    %v725 = vxor.u32 %v723, 2147483648
    %v726 = vmul.f32 %v725, 1.442695
    %v727 = vpow.pop %v726
    %v728 = vadd.f32 %v727, 1.0
    %v729 = vrcp.pop %v728
    %v730 = vmul.f32 1.0, %v729
    %v731 = vtanh.pop %v724
    %v732 = vxor.u32 %v724, 2147483648
    %v733 = vmul.f32 %v732, 1.442695
    %v734 = vpow.pop %v733
    %v735 = vadd.f32 %v734, 1.0
    %v736 = vrcp.pop %v735
    %v737 = vmul.f32 1.0, %v736
    %v738 = vmul.f32 %v730, %v470
    %v739 = vmul.f32 %v730, %v731
    %741 = vrot.lane.b32.xlu0 %v739, 64
    %v742 = vpop.permute.xlu0 %741
    %v744 = vadd.f32 %v738, %v742
    %v745 = vtanh.pop %v744
    %v746 = vmul.f32 %v737, %v745
    %748 = vrot.lane.b32.xlu0 %v746, 64
    %v749 = vpop.permute.xlu0 %748
    %s751 = scalar_lea.vmem [#allocation2], 2
    %752 = vst.msk [vmem:[%s751] sm:$0x3] %vm477, %v749
    %753 = vmatprep.subr.mxu0 0.0
    %754 = vmatpush1.msra.mxu0 %v76
    %755 = vmatprep.subr.mxu0 0.0
    %756 = vmatpush1.msra.mxu0 %v77
    %757 = vmatprep.subr.mxu0 0.0
    %758 = vmatpush1.msra.mxu0 %v78
    %759 = vmatprep.subr.mxu0 0.0
    %760 = vmatpush1.msra.mxu0 %v79
    %761 = vmatprep.subr.mxu0 0.0
    %762 = vmatpush1.msra.mxu0 0.0
    %763 = vmatprep.subr.mxu0 0.0
    %764 = vmatpush1.msra.mxu0 0.0
    %765 = vmatprep.subr.mxu0 0.0
    %766 = vmatpush1.msra.mxu0 0.0
    %767 = vmatprep.subr.mxu0 0.0
    %768 = vmatpush1.msra.mxu0 0.0
    %769 = vmatprep.subr.mxu0 0.0
    %770 = vmatpush1.msra.mxu0 0.0
    %771 = vmatprep.subr.mxu0 0.0
    %772 = vmatpush1.msra.mxu0 0.0
    %773 = vmatprep.subr.mxu0 0.0
    %774 = vmatpush1.msra.mxu0 0.0
    %775 = vmatprep.subr.mxu0 0.0
    %776 = vmatpush1.msra.mxu0 0.0
    %777 = vmatprep.subr.mxu0 0.0
    %778 = vmatpush1.msra.mxu0 0.0
    %779 = vmatprep.subr.mxu0 0.0
    %780 = vmatpush1.msra.mxu0 0.0
    %781 = vmatprep.subr.mxu0 0.0
    %782 = vmatpush1.msra.mxu0 0.0
    %783 = vmatprep.subr.mxu0 0.0
    %784 = vmatpush1.msra.mxu0 0.0
    %785 = vmatprep.subr.mxu0 0.0
    %786 = vmatpush1.msra.mxu0 0.0
    %787 = vmatprep.subr.mxu0 0.0
    %788 = vmatpush1.msra.mxu0 0.0
    %789 = vmatprep.subr.mxu0 0.0
    %790 = vmatpush1.msra.mxu0 0.0
    %791 = vmatprep.subr.mxu0 0.0
    %792 = vmatpush1.msra.mxu0 0.0
    %793 = vmatprep.subr.mxu0 0.0
    %794 = vmatpush1.msra.mxu0 0.0
    %795 = vmatprep.subr.mxu0 0.0
    %796 = vmatpush1.msra.mxu0 0.0
    %797 = vmatprep.subr.mxu0 0.0
    %798 = vmatpush1.msra.mxu0 0.0
    %799 = vmatprep.subr.mxu0 0.0
    %800 = vmatpush1.msra.mxu0 0.0
    %801 = vmatprep.subr.mxu0 0.0
    %802 = vmatpush1.msra.mxu0 0.0
    %803 = vmatprep.subr.mxu0 0.0
    %804 = vmatpush1.msra.mxu0 0.0
    %805 = vmatprep.subr.mxu0 0.0
    %806 = vmatpush1.msra.mxu0 0.0
    %807 = vmatprep.subr.mxu0 0.0
    %808 = vmatpush1.msra.mxu0 0.0
    %809 = vmatprep.subr.mxu0 0.0
    %810 = vmatpush1.msra.mxu0 0.0
    %811 = vmatprep.subr.mxu0 0.0
    %812 = vmatpush1.msra.mxu0 0.0
    %813 = vmatprep.subr.mxu0 0.0
    %814 = vmatpush1.msra.mxu0 0.0
    %815 = vmatprep.subr.mxu0 0.0
    %816 = vmatpush1.msra.mxu0 0.0
    %817 = vmatprep.mubr.f32.mxu0 0.0
    %818 = vmatmul.mubr.f32.gmra.mrb[0].mxu0 %v650
    %v819 = vpop.f32.mrb[0].mxu0
    %v820 = vadd.f32 0.0, %v819
    %v821 = vpop.f32.mrb[0].mxu0
    %822 = vdwg.mxu0
    %v823 = vadd.f32 %v186, %v820
    %v824 = vxor.u32 %v823, 2147483648
    %v825 = vmul.f32 %v824, 1.442695
    %v826 = vpow.pop %v825
    %v827 = vadd.f32 %v826, 1.0
    %v828 = vrcp.pop %v827
    %v829 = vmul.f32 1.0, %v828
    %v830 = vtanh.pop %v823
    %v831 = vmul.f32 %v829, %v567
    %833 = vrot.lane.b32.xlu0 %v830, 64
    %v834 = vpop.permute.xlu0 %833
    %v836 = vmul.f32 %v829, %v834
    %838 = vrot.lane.b32.xlu0 %v836, 32
    %v839 = vpop.permute.xlu0 %838
    %v841 = vadd.f32 %v831, %v839
    %v842 = vtanh.pop %v841
    %844 = vrot.lane.b32.xlu0 %v842, 64
    %v845 = vpop.permute.xlu0 %844
    %v847 = vmul.f32 %v829, %v845
    %v848 = vsel %vm299, %v749, 0
    %850 = vmatprep.subr.mxu0 %v89
    %851 = vmatpush1.msra.mxu0 %v88
    %852 = vmatprep.subr.mxu0 %v91
    %853 = vmatpush1.msra.mxu0 %v90
    %854 = vmatprep.subr.mxu0 %v93
    %855 = vmatpush1.msra.mxu0 %v92
    %856 = vmatprep.subr.mxu0 %v95
    %857 = vmatpush1.msra.mxu0 %v94
    %858 = vmatprep.subr.mxu0 %v97
    %859 = vmatpush1.msra.mxu0 %v96
    %860 = vmatprep.subr.mxu0 %v99
    %861 = vmatpush1.msra.mxu0 %v98
    %862 = vmatprep.subr.mxu0 %v101
    %863 = vmatpush1.msra.mxu0 %v100
    %864 = vmatprep.subr.mxu0 %v103
    %865 = vmatpush1.msra.mxu0 %v102
    %866 = vmatprep.subr.mxu0 0.0
    %867 = vmatpush1.msra.mxu0 0.0
    %868 = vmatprep.subr.mxu0 0.0
    %869 = vmatpush1.msra.mxu0 0.0
    %870 = vmatprep.subr.mxu0 0.0
    %871 = vmatpush1.msra.mxu0 0.0
    %872 = vmatprep.subr.mxu0 0.0
    %873 = vmatpush1.msra.mxu0 0.0
    %874 = vmatprep.subr.mxu0 0.0
    %875 = vmatpush1.msra.mxu0 0.0
    %876 = vmatprep.subr.mxu0 0.0
    %877 = vmatpush1.msra.mxu0 0.0
    %878 = vmatprep.subr.mxu0 0.0
    %879 = vmatpush1.msra.mxu0 0.0
    %880 = vmatprep.subr.mxu0 0.0
    %881 = vmatpush1.msra.mxu0 0.0
    %882 = vmatprep.subr.mxu0 0.0
    %883 = vmatpush1.msra.mxu0 0.0
    %884 = vmatprep.subr.mxu0 0.0
    %885 = vmatpush1.msra.mxu0 0.0
    %886 = vmatprep.subr.mxu0 0.0
    %887 = vmatpush1.msra.mxu0 0.0
    %888 = vmatprep.subr.mxu0 0.0
    %889 = vmatpush1.msra.mxu0 0.0
    %890 = vmatprep.subr.mxu0 0.0
    %891 = vmatpush1.msra.mxu0 0.0
    %892 = vmatprep.subr.mxu0 0.0
    %893 = vmatpush1.msra.mxu0 0.0
    %894 = vmatprep.subr.mxu0 0.0
    %895 = vmatpush1.msra.mxu0 0.0
    %896 = vmatprep.subr.mxu0 0.0
    %897 = vmatpush1.msra.mxu0 0.0
    %898 = vmatprep.subr.mxu0 0.0
    %899 = vmatpush1.msra.mxu0 0.0
    %900 = vmatprep.subr.mxu0 0.0
    %901 = vmatpush1.msra.mxu0 0.0
    %902 = vmatprep.subr.mxu0 0.0
    %903 = vmatpush1.msra.mxu0 0.0
    %904 = vmatprep.subr.mxu0 0.0
    %905 = vmatpush1.msra.mxu0 0.0
    %906 = vmatprep.subr.mxu0 0.0
    %907 = vmatpush1.msra.mxu0 0.0
    %908 = vmatprep.subr.mxu0 0.0
    %909 = vmatpush1.msra.mxu0 0.0
    %910 = vmatprep.subr.mxu0 0.0
    %911 = vmatpush1.msra.mxu0 0.0
    %912 = vmatprep.subr.mxu0 0.0
    %913 = vmatpush1.msra.mxu0 0.0
    %914 = vmatprep.mubr.f32.mxu0 0.0
    %915 = vmatmul.mubr.f32.gmra.mrb[0].mxu0 %v848
    %v916 = vpop.f32.mrb[0].mxu0
    %v917 = vadd.f32 0.0, %v916
    %v918 = vpop.f32.mrb[0].mxu0
    %v919 = vadd.f32 0.0, %v918
    %920 = vdwg.mxu0
    %922 = vrot.lane.b32.xlu0 %v847, 32
    %v923 = vpop.permute.xlu0 %922
    %v924 = vsel %vm115, %v923, 0
    %926 = vmatprep.subr.mxu0 %v81
    %927 = vmatpush1.msra.mxu0 %v80
    %928 = vmatprep.subr.mxu0 %v83
    %929 = vmatpush1.msra.mxu0 %v82
    %930 = vmatprep.subr.mxu0 %v85
    %931 = vmatpush1.msra.mxu0 %v84
    %932 = vmatprep.subr.mxu0 %v87
    %933 = vmatpush1.msra.mxu0 %v86
    %934 = vmatprep.subr.mxu0 0.0
    %935 = vmatpush1.msra.mxu0 0.0
    %936 = vmatprep.subr.mxu0 0.0
    %937 = vmatpush1.msra.mxu0 0.0
    %938 = vmatprep.subr.mxu0 0.0
    %939 = vmatpush1.msra.mxu0 0.0
    %940 = vmatprep.subr.mxu0 0.0
    %941 = vmatpush1.msra.mxu0 0.0
    %942 = vmatprep.subr.mxu0 0.0
    %943 = vmatpush1.msra.mxu0 0.0
    %944 = vmatprep.subr.mxu0 0.0
    %945 = vmatpush1.msra.mxu0 0.0
    %946 = vmatprep.subr.mxu0 0.0
    %947 = vmatpush1.msra.mxu0 0.0
    %948 = vmatprep.subr.mxu0 0.0
    %949 = vmatpush1.msra.mxu0 0.0
    %950 = vmatprep.subr.mxu0 0.0
    %951 = vmatpush1.msra.mxu0 0.0
    %952 = vmatprep.subr.mxu0 0.0
    %953 = vmatpush1.msra.mxu0 0.0
    %954 = vmatprep.subr.mxu0 0.0
    %955 = vmatpush1.msra.mxu0 0.0
    %956 = vmatprep.subr.mxu0 0.0
    %957 = vmatpush1.msra.mxu0 0.0
    %958 = vmatprep.subr.mxu0 0.0
    %959 = vmatpush1.msra.mxu0 0.0
    %960 = vmatprep.subr.mxu0 0.0
    %961 = vmatpush1.msra.mxu0 0.0
    %962 = vmatprep.subr.mxu0 0.0
    %963 = vmatpush1.msra.mxu0 0.0
    %964 = vmatprep.subr.mxu0 0.0
    %965 = vmatpush1.msra.mxu0 0.0
    %966 = vmatprep.subr.mxu0 0.0
    %967 = vmatpush1.msra.mxu0 0.0
    %968 = vmatprep.subr.mxu0 0.0
    %969 = vmatpush1.msra.mxu0 0.0
    %970 = vmatprep.subr.mxu0 0.0
    %971 = vmatpush1.msra.mxu0 0.0
    %972 = vmatprep.subr.mxu0 0.0
    %973 = vmatpush1.msra.mxu0 0.0
    %974 = vmatprep.subr.mxu0 0.0
    %975 = vmatpush1.msra.mxu0 0.0
    %976 = vmatprep.subr.mxu0 0.0
    %977 = vmatpush1.msra.mxu0 0.0
    %978 = vmatprep.subr.mxu0 0.0
    %979 = vmatpush1.msra.mxu0 0.0
    %980 = vmatprep.subr.mxu0 0.0
    %981 = vmatpush1.msra.mxu0 0.0
    %982 = vmatprep.subr.mxu0 0.0
    %983 = vmatpush1.msra.mxu0 0.0
    %984 = vmatprep.subr.mxu0 0.0
    %985 = vmatpush1.msra.mxu0 0.0
    %986 = vmatprep.subr.mxu0 0.0
    %987 = vmatpush1.msra.mxu0 0.0
    %988 = vmatprep.subr.mxu0 0.0
    %989 = vmatpush1.msra.mxu0 0.0
    %990 = vmatprep.mubr.f32.mxu0 0.0
    %991 = vmatmul.mubr.f32.gmra.mrb[0].mxu0 %v924
    %v992 = vpop.f32.mrb[0].mxu0
    %v993 = vadd.f32 %v917, %v992
    %v994 = vpop.f32.mrb[0].mxu0
    %v995 = vadd.f32 %v919, %v994
    %996 = vdwg.mxu0
    %v997 = vadd.f32 %v993, %v194
    %v998 = vadd.f32 %v995, %v198
    %v999 = vxor.u32 %v997, 2147483648
    %v1000 = vmul.f32 %v999, 1.442695
    %v1001 = vpow.pop %v1000
    %v1002 = vadd.f32 %v1001, 1.0
    %v1003 = vrcp.pop %v1002
    %v1004 = vmul.f32 1.0, %v1003
    %v1005 = vtanh.pop %v998
    %v1006 = vxor.u32 %v998, 2147483648
    %v1007 = vmul.f32 %v1006, 1.442695
    %v1008 = vpow.pop %v1007
    %v1009 = vadd.f32 %v1008, 1.0
    %v1010 = vrcp.pop %v1009
    %v1011 = vmul.f32 1.0, %v1010
    %v1012 = vmul.f32 %v1004, %v744
    %v1013 = vmul.f32 %v1004, %v1005
    %1015 = vrot.lane.b32.xlu0 %v1013, 64
    %v1016 = vpop.permute.xlu0 %1015
    %v1018 = vadd.f32 %v1012, %v1016
    %v1019 = vtanh.pop %v1018
    %v1020 = vmul.f32 %v1011, %v1019
    %1022 = vrot.lane.b32.xlu0 %v1020, 64
    %v1023 = vpop.permute.xlu0 %1022
    %s1025 = scalar_lea.vmem [#allocation2], 4
    %1026 = vst.msk [vmem:[%s1025] sm:$0x3] %vm477, %v1023
    %1027 = vmatprep.subr.mxu0 0.0
    %1028 = vmatpush1.msra.mxu0 %v76
    %1029 = vmatprep.subr.mxu0 0.0
    %1030 = vmatpush1.msra.mxu0 %v77
    %1031 = vmatprep.subr.mxu0 0.0
    %1032 = vmatpush1.msra.mxu0 %v78
    %1033 = vmatprep.subr.mxu0 0.0
    %1034 = vmatpush1.msra.mxu0 %v79
    %1035 = vmatprep.subr.mxu0 0.0
    %1036 = vmatpush1.msra.mxu0 0.0
    %1037 = vmatprep.subr.mxu0 0.0
    %1038 = vmatpush1.msra.mxu0 0.0
    %1039 = vmatprep.subr.mxu0 0.0
    %1040 = vmatpush1.msra.mxu0 0.0
    %1041 = vmatprep.subr.mxu0 0.0
    %1042 = vmatpush1.msra.mxu0 0.0
    %1043 = vmatprep.subr.mxu0 0.0
    %1044 = vmatpush1.msra.mxu0 0.0
    %1045 = vmatprep.subr.mxu0 0.0
    %1046 = vmatpush1.msra.mxu0 0.0
    %1047 = vmatprep.subr.mxu0 0.0
    %1048 = vmatpush1.msra.mxu0 0.0
    %1049 = vmatprep.subr.mxu0 0.0
    %1050 = vmatpush1.msra.mxu0 0.0
    %1051 = vmatprep.subr.mxu0 0.0
    %1052 = vmatpush1.msra.mxu0 0.0
    %1053 = vmatprep.subr.mxu0 0.0
    %1054 = vmatpush1.msra.mxu0 0.0
    %1055 = vmatprep.subr.mxu0 0.0
    %1056 = vmatpush1.msra.mxu0 0.0
    %1057 = vmatprep.subr.mxu0 0.0
    %1058 = vmatpush1.msra.mxu0 0.0
    %1059 = vmatprep.subr.mxu0 0.0
    %1060 = vmatpush1.msra.mxu0 0.0
    %1061 = vmatprep.subr.mxu0 0.0
    %1062 = vmatpush1.msra.mxu0 0.0
    %1063 = vmatprep.subr.mxu0 0.0
    %1064 = vmatpush1.msra.mxu0 0.0
    %1065 = vmatprep.subr.mxu0 0.0
    %1066 = vmatpush1.msra.mxu0 0.0
    %1067 = vmatprep.subr.mxu0 0.0
    %1068 = vmatpush1.msra.mxu0 0.0
    %1069 = vmatprep.subr.mxu0 0.0
    %1070 = vmatpush1.msra.mxu0 0.0
    %1071 = vmatprep.subr.mxu0 0.0
    %1072 = vmatpush1.msra.mxu0 0.0
    %1073 = vmatprep.subr.mxu0 0.0
    %1074 = vmatpush1.msra.mxu0 0.0
    %1075 = vmatprep.subr.mxu0 0.0
    %1076 = vmatpush1.msra.mxu0 0.0
    %1077 = vmatprep.subr.mxu0 0.0
    %1078 = vmatpush1.msra.mxu0 0.0
    %1079 = vmatprep.subr.mxu0 0.0
    %1080 = vmatpush1.msra.mxu0 0.0
    %1081 = vmatprep.subr.mxu0 0.0
    %1082 = vmatpush1.msra.mxu0 0.0
    %1083 = vmatprep.subr.mxu0 0.0
    %1084 = vmatpush1.msra.mxu0 0.0
    %1085 = vmatprep.subr.mxu0 0.0
    %1086 = vmatpush1.msra.mxu0 0.0
    %1087 = vmatprep.subr.mxu0 0.0
    %1088 = vmatpush1.msra.mxu0 0.0
    %1089 = vmatprep.subr.mxu0 0.0
    %1090 = vmatpush1.msra.mxu0 0.0
    %1091 = vmatprep.mubr.f32.mxu0 0.0
    %1092 = vmatmul.mubr.f32.gmra.mrb[0].mxu0 %v924
    %v1093 = vpop.f32.mrb[0].mxu0
    %v1094 = vadd.f32 0.0, %v1093
    %v1095 = vpop.f32.mrb[0].mxu0
    %1096 = vdwg.mxu0
    %v1097 = vadd.f32 %v186, %v1094
    %v1098 = vxor.u32 %v1097, 2147483648
    %v1099 = vmul.f32 %v1098, 1.442695
    %v1100 = vpow.pop %v1099
    %v1101 = vadd.f32 %v1100, 1.0
    %v1102 = vrcp.pop %v1101
    %v1103 = vmul.f32 1.0, %v1102
    %v1104 = vtanh.pop %v1097
    %v1105 = vmul.f32 %v1103, %v841
    %1107 = vrot.lane.b32.xlu0 %v1104, 64
    %v1108 = vpop.permute.xlu0 %1107
    %v1110 = vmul.f32 %v1103, %v1108
    %1112 = vrot.lane.b32.xlu0 %v1110, 32
    %v1113 = vpop.permute.xlu0 %1112
    %v1115 = vadd.f32 %v1105, %v1113
    %v1116 = vtanh.pop %v1115
    %1118 = vrot.lane.b32.xlu0 %v1116, 64
    %v1119 = vpop.permute.xlu0 %1118
    %v1121 = vmul.f32 %v1103, %v1119
    %v1122 = vsel %vm299, %v1023, 0
    %1124 = vmatprep.subr.mxu0 %v89
    %1125 = vmatpush1.msra.mxu0 %v88
    %1126 = vmatprep.subr.mxu0 %v91
    %1127 = vmatpush1.msra.mxu0 %v90
    %1128 = vmatprep.subr.mxu0 %v93
    %1129 = vmatpush1.msra.mxu0 %v92
    %1130 = vmatprep.subr.mxu0 %v95
    %1131 = vmatpush1.msra.mxu0 %v94
    %1132 = vmatprep.subr.mxu0 %v97
    %1133 = vmatpush1.msra.mxu0 %v96
    %1134 = vmatprep.subr.mxu0 %v99
    %1135 = vmatpush1.msra.mxu0 %v98
    %1136 = vmatprep.subr.mxu0 %v101
    %1137 = vmatpush1.msra.mxu0 %v100
    %1138 = vmatprep.subr.mxu0 %v103
    %1139 = vmatpush1.msra.mxu0 %v102
    %1140 = vmatprep.subr.mxu0 0.0
    %1141 = vmatpush1.msra.mxu0 0.0
    %1142 = vmatprep.subr.mxu0 0.0
    %1143 = vmatpush1.msra.mxu0 0.0
    %1144 = vmatprep.subr.mxu0 0.0
    %1145 = vmatpush1.msra.mxu0 0.0
    %1146 = vmatprep.subr.mxu0 0.0
    %1147 = vmatpush1.msra.mxu0 0.0
    %1148 = vmatprep.subr.mxu0 0.0
    %1149 = vmatpush1.msra.mxu0 0.0
    %1150 = vmatprep.subr.mxu0 0.0
    %1151 = vmatpush1.msra.mxu0 0.0
    %1152 = vmatprep.subr.mxu0 0.0
    %1153 = vmatpush1.msra.mxu0 0.0
    %1154 = vmatprep.subr.mxu0 0.0
    %1155 = vmatpush1.msra.mxu0 0.0
    %1156 = vmatprep.subr.mxu0 0.0
    %1157 = vmatpush1.msra.mxu0 0.0
    %1158 = vmatprep.subr.mxu0 0.0
    %1159 = vmatpush1.msra.mxu0 0.0
    %1160 = vmatprep.subr.mxu0 0.0
    %1161 = vmatpush1.msra.mxu0 0.0
    %1162 = vmatprep.subr.mxu0 0.0
    %1163 = vmatpush1.msra.mxu0 0.0
    %1164 = vmatprep.subr.mxu0 0.0
    %1165 = vmatpush1.msra.mxu0 0.0
    %1166 = vmatprep.subr.mxu0 0.0
    %1167 = vmatpush1.msra.mxu0 0.0
    %1168 = vmatprep.subr.mxu0 0.0
    %1169 = vmatpush1.msra.mxu0 0.0
    %1170 = vmatprep.subr.mxu0 0.0
    %1171 = vmatpush1.msra.mxu0 0.0
    %1172 = vmatprep.subr.mxu0 0.0
    %1173 = vmatpush1.msra.mxu0 0.0
    %1174 = vmatprep.subr.mxu0 0.0
    %1175 = vmatpush1.msra.mxu0 0.0
    %1176 = vmatprep.subr.mxu0 0.0
    %1177 = vmatpush1.msra.mxu0 0.0
    %1178 = vmatprep.subr.mxu0 0.0
    %1179 = vmatpush1.msra.mxu0 0.0
    %1180 = vmatprep.subr.mxu0 0.0
    %1181 = vmatpush1.msra.mxu0 0.0
    %1182 = vmatprep.subr.mxu0 0.0
    %1183 = vmatpush1.msra.mxu0 0.0
    %1184 = vmatprep.subr.mxu0 0.0
    %1185 = vmatpush1.msra.mxu0 0.0
    %1186 = vmatprep.subr.mxu0 0.0
    %1187 = vmatpush1.msra.mxu0 0.0
    %1188 = vmatprep.mubr.f32.mxu0 0.0
    %1189 = vmatmul.mubr.f32.gmra.mrb[0].mxu0 %v1122
    %v1190 = vpop.f32.mrb[0].mxu0
    %v1191 = vadd.f32 0.0, %v1190
    %v1192 = vpop.f32.mrb[0].mxu0
    %v1193 = vadd.f32 0.0, %v1192
    %1194 = vdwg.mxu0
    %1196 = vrot.lane.b32.xlu0 %v1121, 32
    %v1197 = vpop.permute.xlu0 %1196
    %v1198 = vsel %vm115, %v1197, 0
    %1200 = vmatprep.subr.mxu0 %v81
    %1201 = vmatpush1.msra.mxu0 %v80
    %1202 = vmatprep.subr.mxu0 %v83
    %1203 = vmatpush1.msra.mxu0 %v82
    %1204 = vmatprep.subr.mxu0 %v85
    %1205 = vmatpush1.msra.mxu0 %v84
    %1206 = vmatprep.subr.mxu0 %v87
    %1207 = vmatpush1.msra.mxu0 %v86
    %1208 = vmatprep.subr.mxu0 0.0
    %1209 = vmatpush1.msra.mxu0 0.0
    %1210 = vmatprep.subr.mxu0 0.0
    %1211 = vmatpush1.msra.mxu0 0.0
    %1212 = vmatprep.subr.mxu0 0.0
    %1213 = vmatpush1.msra.mxu0 0.0
    %1214 = vmatprep.subr.mxu0 0.0
    %1215 = vmatpush1.msra.mxu0 0.0
    %1216 = vmatprep.subr.mxu0 0.0
    %1217 = vmatpush1.msra.mxu0 0.0
    %1218 = vmatprep.subr.mxu0 0.0
    %1219 = vmatpush1.msra.mxu0 0.0
    %1220 = vmatprep.subr.mxu0 0.0
    %1221 = vmatpush1.msra.mxu0 0.0
    %1222 = vmatprep.subr.mxu0 0.0
    %1223 = vmatpush1.msra.mxu0 0.0
    %1224 = vmatprep.subr.mxu0 0.0
    %1225 = vmatpush1.msra.mxu0 0.0
    %1226 = vmatprep.subr.mxu0 0.0
    %1227 = vmatpush1.msra.mxu0 0.0
    %1228 = vmatprep.subr.mxu0 0.0
    %1229 = vmatpush1.msra.mxu0 0.0
    %1230 = vmatprep.subr.mxu0 0.0
    %1231 = vmatpush1.msra.mxu0 0.0
    %1232 = vmatprep.subr.mxu0 0.0
    %1233 = vmatpush1.msra.mxu0 0.0
    %1234 = vmatprep.subr.mxu0 0.0
    %1235 = vmatpush1.msra.mxu0 0.0
    %1236 = vmatprep.subr.mxu0 0.0
    %1237 = vmatpush1.msra.mxu0 0.0
    %1238 = vmatprep.subr.mxu0 0.0
    %1239 = vmatpush1.msra.mxu0 0.0
    %1240 = vmatprep.subr.mxu0 0.0
    %1241 = vmatpush1.msra.mxu0 0.0
    %1242 = vmatprep.subr.mxu0 0.0
    %1243 = vmatpush1.msra.mxu0 0.0
    %1244 = vmatprep.subr.mxu0 0.0
    %1245 = vmatpush1.msra.mxu0 0.0
    %1246 = vmatprep.subr.mxu0 0.0
    %1247 = vmatpush1.msra.mxu0 0.0
    %1248 = vmatprep.subr.mxu0 0.0
    %1249 = vmatpush1.msra.mxu0 0.0
    %1250 = vmatprep.subr.mxu0 0.0
    %1251 = vmatpush1.msra.mxu0 0.0
    %1252 = vmatprep.subr.mxu0 0.0
    %1253 = vmatpush1.msra.mxu0 0.0
    %1254 = vmatprep.subr.mxu0 0.0
    %1255 = vmatpush1.msra.mxu0 0.0
    %1256 = vmatprep.subr.mxu0 0.0
    %1257 = vmatpush1.msra.mxu0 0.0
    %1258 = vmatprep.subr.mxu0 0.0
    %1259 = vmatpush1.msra.mxu0 0.0
    %1260 = vmatprep.subr.mxu0 0.0
    %1261 = vmatpush1.msra.mxu0 0.0
    %1262 = vmatprep.subr.mxu0 0.0
    %1263 = vmatpush1.msra.mxu0 0.0
    %1264 = vmatprep.mubr.f32.mxu0 0.0
    %1265 = vmatmul.mubr.f32.gmra.mrb[0].mxu0 %v1198
    %v1266 = vpop.f32.mrb[0].mxu0
    %v1267 = vadd.f32 %v1191, %v1266
    %v1268 = vpop.f32.mrb[0].mxu0
    %v1269 = vadd.f32 %v1193, %v1268
    %1270 = vdwg.mxu0
    %v1271 = vadd.f32 %v1267, %v194
    %v1272 = vadd.f32 %v1269, %v198
    %v1273 = vxor.u32 %v1271, 2147483648
    %v1274 = vmul.f32 %v1273, 1.442695
    %v1275 = vpow.pop %v1274
    %v1276 = vadd.f32 %v1275, 1.0
    %v1277 = vrcp.pop %v1276
    %v1278 = vmul.f32 1.0, %v1277
    %v1279 = vtanh.pop %v1272
    %v1280 = vxor.u32 %v1272, 2147483648
    %v1281 = vmul.f32 %v1280, 1.442695
    %v1282 = vpow.pop %v1281
    %v1283 = vadd.f32 %v1282, 1.0
    %v1284 = vrcp.pop %v1283
    %v1285 = vmul.f32 1.0, %v1284
    %v1286 = vmul.f32 %v1278, %v1018
    %v1287 = vmul.f32 %v1278, %v1279
    %1289 = vrot.lane.b32.xlu0 %v1287, 64
    %v1290 = vpop.permute.xlu0 %1289
    %v1292 = vadd.f32 %v1286, %v1290
    %v1293 = vtanh.pop %v1292
    %v1294 = vmul.f32 %v1285, %v1293
    %1296 = vrot.lane.b32.xlu0 %v1294, 64
    %v1297 = vpop.permute.xlu0 %1296
    %s1299 = scalar_lea.vmem [#allocation2], 6
    %1300 = vst.msk [vmem:[%s1299] sm:$0x3] %vm477, %v1297
    %1301 = vmatprep.subr.mxu0 0.0
    %1302 = vmatpush1.msra.mxu0 %v76
    %1303 = vmatprep.subr.mxu0 0.0
    %1304 = vmatpush1.msra.mxu0 %v77
    %1305 = vmatprep.subr.mxu0 0.0
    %1306 = vmatpush1.msra.mxu0 %v78
    %1307 = vmatprep.subr.mxu0 0.0
    %1308 = vmatpush1.msra.mxu0 %v79
    %1309 = vmatprep.subr.mxu0 0.0
    %1310 = vmatpush1.msra.mxu0 0.0
    %1311 = vmatprep.subr.mxu0 0.0
    %1312 = vmatpush1.msra.mxu0 0.0
    %1313 = vmatprep.subr.mxu0 0.0
    %1314 = vmatpush1.msra.mxu0 0.0
    %1315 = vmatprep.subr.mxu0 0.0
    %1316 = vmatpush1.msra.mxu0 0.0
    %1317 = vmatprep.subr.mxu0 0.0
    %1318 = vmatpush1.msra.mxu0 0.0
    %1319 = vmatprep.subr.mxu0 0.0
    %1320 = vmatpush1.msra.mxu0 0.0
    %1321 = vmatprep.subr.mxu0 0.0
    %1322 = vmatpush1.msra.mxu0 0.0
    %1323 = vmatprep.subr.mxu0 0.0
    %1324 = vmatpush1.msra.mxu0 0.0
    %1325 = vmatprep.subr.mxu0 0.0
    %1326 = vmatpush1.msra.mxu0 0.0
    %1327 = vmatprep.subr.mxu0 0.0
    %1328 = vmatpush1.msra.mxu0 0.0
    %1329 = vmatprep.subr.mxu0 0.0
    %1330 = vmatpush1.msra.mxu0 0.0
    %1331 = vmatprep.subr.mxu0 0.0
    %1332 = vmatpush1.msra.mxu0 0.0
    %1333 = vmatprep.subr.mxu0 0.0
    %1334 = vmatpush1.msra.mxu0 0.0
    %1335 = vmatprep.subr.mxu0 0.0
    %1336 = vmatpush1.msra.mxu0 0.0
    %1337 = vmatprep.subr.mxu0 0.0
    %1338 = vmatpush1.msra.mxu0 0.0
    %1339 = vmatprep.subr.mxu0 0.0
    %1340 = vmatpush1.msra.mxu0 0.0
    %1341 = vmatprep.subr.mxu0 0.0
    %1342 = vmatpush1.msra.mxu0 0.0
    %1343 = vmatprep.subr.mxu0 0.0
    %1344 = vmatpush1.msra.mxu0 0.0
    %1345 = vmatprep.subr.mxu0 0.0
    %1346 = vmatpush1.msra.mxu0 0.0
    %1347 = vmatprep.subr.mxu0 0.0
    %1348 = vmatpush1.msra.mxu0 0.0
    %1349 = vmatprep.subr.mxu0 0.0
    %1350 = vmatpush1.msra.mxu0 0.0
    %1351 = vmatprep.subr.mxu0 0.0
    %1352 = vmatpush1.msra.mxu0 0.0
    %1353 = vmatprep.subr.mxu0 0.0
    %1354 = vmatpush1.msra.mxu0 0.0
    %1355 = vmatprep.subr.mxu0 0.0
    %1356 = vmatpush1.msra.mxu0 0.0
    %1357 = vmatprep.subr.mxu0 0.0
    %1358 = vmatpush1.msra.mxu0 0.0
    %1359 = vmatprep.subr.mxu0 0.0
    %1360 = vmatpush1.msra.mxu0 0.0
    %1361 = vmatprep.subr.mxu0 0.0
    %1362 = vmatpush1.msra.mxu0 0.0
    %1363 = vmatprep.subr.mxu0 0.0
    %1364 = vmatpush1.msra.mxu0 0.0
    %1365 = vmatprep.mubr.f32.mxu0 0.0
    %1366 = vmatmul.mubr.f32.gmra.mrb[0].mxu0 %v1198
    %v1367 = vpop.f32.mrb[0].mxu0
    %v1368 = vadd.f32 0.0, %v1367
    %v1369 = vpop.f32.mrb[0].mxu0
    %1370 = vdwg.mxu0
    %v1371 = vadd.f32 %v186, %v1368
    %v1372 = vxor.u32 %v1371, 2147483648
    %v1373 = vmul.f32 %v1372, 1.442695
    %v1374 = vpow.pop %v1373
    %v1375 = vadd.f32 %v1374, 1.0
    %v1376 = vrcp.pop %v1375
    %v1377 = vmul.f32 1.0, %v1376
    %v1378 = vtanh.pop %v1371
    %v1379 = vmul.f32 %v1377, %v1115
    %1381 = vrot.lane.b32.xlu0 %v1378, 64
    %v1382 = vpop.permute.xlu0 %1381
    %v1384 = vmul.f32 %v1377, %v1382
    %1386 = vrot.lane.b32.xlu0 %v1384, 32
    %v1387 = vpop.permute.xlu0 %1386
    %v1389 = vadd.f32 %v1379, %v1387
    %v1390 = vtanh.pop %v1389
    %1392 = vrot.lane.b32.xlu0 %v1390, 64
    %v1393 = vpop.permute.xlu0 %1392
    %v1395 = vmul.f32 %v1377, %v1393
    %v1396 = vsel %vm299, %v1297, 0
    %1398 = vmatprep.subr.mxu0 %v89
    %1399 = vmatpush1.msra.mxu0 %v88
    %1400 = vmatprep.subr.mxu0 %v91
    %1401 = vmatpush1.msra.mxu0 %v90
    %1402 = vmatprep.subr.mxu0 %v93
    %1403 = vmatpush1.msra.mxu0 %v92
    %1404 = vmatprep.subr.mxu0 %v95
    %1405 = vmatpush1.msra.mxu0 %v94
    %1406 = vmatprep.subr.mxu0 %v97
    %1407 = vmatpush1.msra.mxu0 %v96
    %1408 = vmatprep.subr.mxu0 %v99
    %1409 = vmatpush1.msra.mxu0 %v98
    %1410 = vmatprep.subr.mxu0 %v101
    %1411 = vmatpush1.msra.mxu0 %v100
    %1412 = vmatprep.subr.mxu0 %v103
    %1413 = vmatpush1.msra.mxu0 %v102
    %1414 = vmatprep.subr.mxu0 0.0
    %1415 = vmatpush1.msra.mxu0 0.0
    %1416 = vmatprep.subr.mxu0 0.0
    %1417 = vmatpush1.msra.mxu0 0.0
    %1418 = vmatprep.subr.mxu0 0.0
    %1419 = vmatpush1.msra.mxu0 0.0
    %1420 = vmatprep.subr.mxu0 0.0
    %1421 = vmatpush1.msra.mxu0 0.0
    %1422 = vmatprep.subr.mxu0 0.0
    %1423 = vmatpush1.msra.mxu0 0.0
    %1424 = vmatprep.subr.mxu0 0.0
    %1425 = vmatpush1.msra.mxu0 0.0
    %1426 = vmatprep.subr.mxu0 0.0
    %1427 = vmatpush1.msra.mxu0 0.0
    %1428 = vmatprep.subr.mxu0 0.0
    %1429 = vmatpush1.msra.mxu0 0.0
    %1430 = vmatprep.subr.mxu0 0.0
    %1431 = vmatpush1.msra.mxu0 0.0
    %1432 = vmatprep.subr.mxu0 0.0
    %1433 = vmatpush1.msra.mxu0 0.0
    %1434 = vmatprep.subr.mxu0 0.0
    %1435 = vmatpush1.msra.mxu0 0.0
    %1436 = vmatprep.subr.mxu0 0.0
    %1437 = vmatpush1.msra.mxu0 0.0
    %1438 = vmatprep.subr.mxu0 0.0
    %1439 = vmatpush1.msra.mxu0 0.0
    %1440 = vmatprep.subr.mxu0 0.0
    %1441 = vmatpush1.msra.mxu0 0.0
    %1442 = vmatprep.subr.mxu0 0.0
    %1443 = vmatpush1.msra.mxu0 0.0
    %1444 = vmatprep.subr.mxu0 0.0
    %1445 = vmatpush1.msra.mxu0 0.0
    %1446 = vmatprep.subr.mxu0 0.0
    %1447 = vmatpush1.msra.mxu0 0.0
    %1448 = vmatprep.subr.mxu0 0.0
    %1449 = vmatpush1.msra.mxu0 0.0
    %1450 = vmatprep.subr.mxu0 0.0
    %1451 = vmatpush1.msra.mxu0 0.0
    %1452 = vmatprep.subr.mxu0 0.0
    %1453 = vmatpush1.msra.mxu0 0.0
    %1454 = vmatprep.subr.mxu0 0.0
    %1455 = vmatpush1.msra.mxu0 0.0
    %1456 = vmatprep.subr.mxu0 0.0
    %1457 = vmatpush1.msra.mxu0 0.0
    %1458 = vmatprep.subr.mxu0 0.0
    %1459 = vmatpush1.msra.mxu0 0.0
    %1460 = vmatprep.subr.mxu0 0.0
    %1461 = vmatpush1.msra.mxu0 0.0
    %1462 = vmatprep.mubr.f32.mxu0 0.0
    %1463 = vmatmul.mubr.f32.gmra.mrb[0].mxu0 %v1396
    %v1464 = vpop.f32.mrb[0].mxu0
    %v1465 = vadd.f32 0.0, %v1464
    %v1466 = vpop.f32.mrb[0].mxu0
    %v1467 = vadd.f32 0.0, %v1466
    %1468 = vdwg.mxu0
    %1470 = vrot.lane.b32.xlu0 %v1395, 32
    %v1471 = vpop.permute.xlu0 %1470
    %v1472 = vsel %vm115, %v1471, 0
    %1474 = vmatprep.subr.mxu0 %v81
    %1475 = vmatpush1.msra.mxu0 %v80
    %1476 = vmatprep.subr.mxu0 %v83
    %1477 = vmatpush1.msra.mxu0 %v82
    %1478 = vmatprep.subr.mxu0 %v85
    %1479 = vmatpush1.msra.mxu0 %v84
    %1480 = vmatprep.subr.mxu0 %v87
    %1481 = vmatpush1.msra.mxu0 %v86
    %1482 = vmatprep.subr.mxu0 0.0
    %1483 = vmatpush1.msra.mxu0 0.0
    %1484 = vmatprep.subr.mxu0 0.0
    %1485 = vmatpush1.msra.mxu0 0.0
    %1486 = vmatprep.subr.mxu0 0.0
    %1487 = vmatpush1.msra.mxu0 0.0
    %1488 = vmatprep.subr.mxu0 0.0
    %1489 = vmatpush1.msra.mxu0 0.0
    %1490 = vmatprep.subr.mxu0 0.0
    %1491 = vmatpush1.msra.mxu0 0.0
    %1492 = vmatprep.subr.mxu0 0.0
    %1493 = vmatpush1.msra.mxu0 0.0
    %1494 = vmatprep.subr.mxu0 0.0
    %1495 = vmatpush1.msra.mxu0 0.0
    %1496 = vmatprep.subr.mxu0 0.0
    %1497 = vmatpush1.msra.mxu0 0.0
    %1498 = vmatprep.subr.mxu0 0.0
    %1499 = vmatpush1.msra.mxu0 0.0
    %1500 = vmatprep.subr.mxu0 0.0
    %1501 = vmatpush1.msra.mxu0 0.0
    %1502 = vmatprep.subr.mxu0 0.0
    %1503 = vmatpush1.msra.mxu0 0.0
    %1504 = vmatprep.subr.mxu0 0.0
    %1505 = vmatpush1.msra.mxu0 0.0
    %1506 = vmatprep.subr.mxu0 0.0
    %1507 = vmatpush1.msra.mxu0 0.0
    %1508 = vmatprep.subr.mxu0 0.0
    %1509 = vmatpush1.msra.mxu0 0.0
    %1510 = vmatprep.subr.mxu0 0.0
    %1511 = vmatpush1.msra.mxu0 0.0
    %1512 = vmatprep.subr.mxu0 0.0
    %1513 = vmatpush1.msra.mxu0 0.0
    %1514 = vmatprep.subr.mxu0 0.0
    %1515 = vmatpush1.msra.mxu0 0.0
    %1516 = vmatprep.subr.mxu0 0.0
    %1517 = vmatpush1.msra.mxu0 0.0
    %1518 = vmatprep.subr.mxu0 0.0
    %1519 = vmatpush1.msra.mxu0 0.0
    %1520 = vmatprep.subr.mxu0 0.0
    %1521 = vmatpush1.msra.mxu0 0.0
    %1522 = vmatprep.subr.mxu0 0.0
    %1523 = vmatpush1.msra.mxu0 0.0
    %1524 = vmatprep.subr.mxu0 0.0
    %1525 = vmatpush1.msra.mxu0 0.0
    %1526 = vmatprep.subr.mxu0 0.0
    %1527 = vmatpush1.msra.mxu0 0.0
    %1528 = vmatprep.subr.mxu0 0.0
    %1529 = vmatpush1.msra.mxu0 0.0
    %1530 = vmatprep.subr.mxu0 0.0
    %1531 = vmatpush1.msra.mxu0 0.0
    %1532 = vmatprep.subr.mxu0 0.0
    %1533 = vmatpush1.msra.mxu0 0.0
    %1534 = vmatprep.subr.mxu0 0.0
    %1535 = vmatpush1.msra.mxu0 0.0
    %1536 = vmatprep.subr.mxu0 0.0
    %1537 = vmatpush1.msra.mxu0 0.0
    %1538 = vmatprep.mubr.f32.mxu0 0.0
    %1539 = vmatmul.mubr.f32.gmra.mrb[0].mxu0 %v1472
    %v1540 = vpop.f32.mrb[0].mxu0
    %v1541 = vadd.f32 %v1465, %v1540
    %v1542 = vpop.f32.mrb[0].mxu0
    %v1543 = vadd.f32 %v1467, %v1542
    %1544 = vdwg.mxu0
    %v1545 = vadd.f32 %v1541, %v194
    %v1546 = vadd.f32 %v1543, %v198
    %v1547 = vxor.u32 %v1545, 2147483648
    %v1548 = vmul.f32 %v1547, 1.442695
    %v1549 = vpow.pop %v1548
    %v1550 = vadd.f32 %v1549, 1.0
    %v1551 = vrcp.pop %v1550
    %v1552 = vmul.f32 1.0, %v1551
    %v1553 = vtanh.pop %v1546
    %v1554 = vxor.u32 %v1546, 2147483648
    %v1555 = vmul.f32 %v1554, 1.442695
    %v1556 = vpow.pop %v1555
    %v1557 = vadd.f32 %v1556, 1.0
    %v1558 = vrcp.pop %v1557
    %v1559 = vmul.f32 1.0, %v1558
    %v1560 = vmul.f32 %v1552, %v1292
    %v1561 = vmul.f32 %v1552, %v1553
    %1563 = vrot.lane.b32.xlu0 %v1561, 64
    %v1564 = vpop.permute.xlu0 %1563
    %v1566 = vadd.f32 %v1560, %v1564
    %v1567 = vtanh.pop %v1566
    %v1568 = vmul.f32 %v1559, %v1567
    %1570 = vrot.lane.b32.xlu0 %v1568, 64
    %v1571 = vpop.permute.xlu0 %1570
    %s1573 = scalar_lea.vmem [#allocation2], 8
    %1574 = vst.msk [vmem:[%s1573] sm:$0x3] %vm477, %v1571
    %1575 = vmatprep.subr.mxu0 0.0
    %1576 = vmatpush1.msra.mxu0 %v76
    %1577 = vmatprep.subr.mxu0 0.0
    %1578 = vmatpush1.msra.mxu0 %v77
    %1579 = vmatprep.subr.mxu0 0.0
    %1580 = vmatpush1.msra.mxu0 %v78
    %1581 = vmatprep.subr.mxu0 0.0
    %1582 = vmatpush1.msra.mxu0 %v79
    %1583 = vmatprep.subr.mxu0 0.0
    %1584 = vmatpush1.msra.mxu0 0.0
    %1585 = vmatprep.subr.mxu0 0.0
    %1586 = vmatpush1.msra.mxu0 0.0
    %1587 = vmatprep.subr.mxu0 0.0
    %1588 = vmatpush1.msra.mxu0 0.0
    %1589 = vmatprep.subr.mxu0 0.0
    %1590 = vmatpush1.msra.mxu0 0.0
    %1591 = vmatprep.subr.mxu0 0.0
    %1592 = vmatpush1.msra.mxu0 0.0
    %1593 = vmatprep.subr.mxu0 0.0
    %1594 = vmatpush1.msra.mxu0 0.0
    %1595 = vmatprep.subr.mxu0 0.0
    %1596 = vmatpush1.msra.mxu0 0.0
    %1597 = vmatprep.subr.mxu0 0.0
    %1598 = vmatpush1.msra.mxu0 0.0
    %1599 = vmatprep.subr.mxu0 0.0
    %1600 = vmatpush1.msra.mxu0 0.0
    %1601 = vmatprep.subr.mxu0 0.0
    %1602 = vmatpush1.msra.mxu0 0.0
    %1603 = vmatprep.subr.mxu0 0.0
    %1604 = vmatpush1.msra.mxu0 0.0
    %1605 = vmatprep.subr.mxu0 0.0
    %1606 = vmatpush1.msra.mxu0 0.0
    %1607 = vmatprep.subr.mxu0 0.0
    %1608 = vmatpush1.msra.mxu0 0.0
    %1609 = vmatprep.subr.mxu0 0.0
    %1610 = vmatpush1.msra.mxu0 0.0
    %1611 = vmatprep.subr.mxu0 0.0
    %1612 = vmatpush1.msra.mxu0 0.0
    %1613 = vmatprep.subr.mxu0 0.0
    %1614 = vmatpush1.msra.mxu0 0.0
    %1615 = vmatprep.subr.mxu0 0.0
    %1616 = vmatpush1.msra.mxu0 0.0
    %1617 = vmatprep.subr.mxu0 0.0
    %1618 = vmatpush1.msra.mxu0 0.0
    %1619 = vmatprep.subr.mxu0 0.0
    %1620 = vmatpush1.msra.mxu0 0.0
    %1621 = vmatprep.subr.mxu0 0.0
    %1622 = vmatpush1.msra.mxu0 0.0
    %1623 = vmatprep.subr.mxu0 0.0
    %1624 = vmatpush1.msra.mxu0 0.0
    %1625 = vmatprep.subr.mxu0 0.0
    %1626 = vmatpush1.msra.mxu0 0.0
    %1627 = vmatprep.subr.mxu0 0.0
    %1628 = vmatpush1.msra.mxu0 0.0
    %1629 = vmatprep.subr.mxu0 0.0
    %1630 = vmatpush1.msra.mxu0 0.0
    %1631 = vmatprep.subr.mxu0 0.0
    %1632 = vmatpush1.msra.mxu0 0.0
    %1633 = vmatprep.subr.mxu0 0.0
    %1634 = vmatpush1.msra.mxu0 0.0
    %1635 = vmatprep.subr.mxu0 0.0
    %1636 = vmatpush1.msra.mxu0 0.0
    %1637 = vmatprep.subr.mxu0 0.0
    %1638 = vmatpush1.msra.mxu0 0.0
    %1639 = vmatprep.mubr.f32.mxu0 0.0
    %1640 = vmatmul.mubr.f32.gmra.mrb[0].mxu0 %v1472
    %v1641 = vpop.f32.mrb[0].mxu0
    %v1642 = vadd.f32 0.0, %v1641
    %v1643 = vpop.f32.mrb[0].mxu0
    %1644 = vdwg.mxu0
    %v1645 = vadd.f32 %v186, %v1642
    %v1646 = vxor.u32 %v1645, 2147483648
    %v1647 = vmul.f32 %v1646, 1.442695
    %v1648 = vpow.pop %v1647
    %v1649 = vadd.f32 %v1648, 1.0
    %v1650 = vrcp.pop %v1649
    %v1651 = vmul.f32 1.0, %v1650
    %v1652 = vtanh.pop %v1645
    %v1653 = vmul.f32 %v1651, %v1389
    %1655 = vrot.lane.b32.xlu0 %v1652, 64
    %v1656 = vpop.permute.xlu0 %1655
    %v1658 = vmul.f32 %v1651, %v1656
    %1660 = vrot.lane.b32.xlu0 %v1658, 32
    %v1661 = vpop.permute.xlu0 %1660
    %v1663 = vadd.f32 %v1653, %v1661
    %v1664 = vtanh.pop %v1663
    %1666 = vrot.lane.b32.xlu0 %v1664, 64
    %v1667 = vpop.permute.xlu0 %1666
    %v1669 = vmul.f32 %v1651, %v1667
    %v1670 = vsel %vm299, %v1571, 0
    %1672 = vmatprep.subr.mxu0 %v89
    %1673 = vmatpush1.msra.mxu0 %v88
    %1674 = vmatprep.subr.mxu0 %v91
    %1675 = vmatpush1.msra.mxu0 %v90
    %1676 = vmatprep.subr.mxu0 %v93
    %1677 = vmatpush1.msra.mxu0 %v92
    %1678 = vmatprep.subr.mxu0 %v95
    %1679 = vmatpush1.msra.mxu0 %v94
    %1680 = vmatprep.subr.mxu0 %v97
    %1681 = vmatpush1.msra.mxu0 %v96
    %1682 = vmatprep.subr.mxu0 %v99
    %1683 = vmatpush1.msra.mxu0 %v98
    %1684 = vmatprep.subr.mxu0 %v101
    %1685 = vmatpush1.msra.mxu0 %v100
    %1686 = vmatprep.subr.mxu0 %v103
    %1687 = vmatpush1.msra.mxu0 %v102
    %1688 = vmatprep.subr.mxu0 0.0
    %1689 = vmatpush1.msra.mxu0 0.0
    %1690 = vmatprep.subr.mxu0 0.0
    %1691 = vmatpush1.msra.mxu0 0.0
    %1692 = vmatprep.subr.mxu0 0.0
    %1693 = vmatpush1.msra.mxu0 0.0
    %1694 = vmatprep.subr.mxu0 0.0
    %1695 = vmatpush1.msra.mxu0 0.0
    %1696 = vmatprep.subr.mxu0 0.0
    %1697 = vmatpush1.msra.mxu0 0.0
    %1698 = vmatprep.subr.mxu0 0.0
    %1699 = vmatpush1.msra.mxu0 0.0
    %1700 = vmatprep.subr.mxu0 0.0
    %1701 = vmatpush1.msra.mxu0 0.0
    %1702 = vmatprep.subr.mxu0 0.0
    %1703 = vmatpush1.msra.mxu0 0.0
    %1704 = vmatprep.subr.mxu0 0.0
    %1705 = vmatpush1.msra.mxu0 0.0
    %1706 = vmatprep.subr.mxu0 0.0
    %1707 = vmatpush1.msra.mxu0 0.0
    %1708 = vmatprep.subr.mxu0 0.0
    %1709 = vmatpush1.msra.mxu0 0.0
    %1710 = vmatprep.subr.mxu0 0.0
    %1711 = vmatpush1.msra.mxu0 0.0
    %1712 = vmatprep.subr.mxu0 0.0
    %1713 = vmatpush1.msra.mxu0 0.0
    %1714 = vmatprep.subr.mxu0 0.0
    %1715 = vmatpush1.msra.mxu0 0.0
    %1716 = vmatprep.subr.mxu0 0.0
    %1717 = vmatpush1.msra.mxu0 0.0
    %1718 = vmatprep.subr.mxu0 0.0
    %1719 = vmatpush1.msra.mxu0 0.0
    %1720 = vmatprep.subr.mxu0 0.0
    %1721 = vmatpush1.msra.mxu0 0.0
    %1722 = vmatprep.subr.mxu0 0.0
    %1723 = vmatpush1.msra.mxu0 0.0
    %1724 = vmatprep.subr.mxu0 0.0
    %1725 = vmatpush1.msra.mxu0 0.0
    %1726 = vmatprep.subr.mxu0 0.0
    %1727 = vmatpush1.msra.mxu0 0.0
    %1728 = vmatprep.subr.mxu0 0.0
    %1729 = vmatpush1.msra.mxu0 0.0
    %1730 = vmatprep.subr.mxu0 0.0
    %1731 = vmatpush1.msra.mxu0 0.0
    %1732 = vmatprep.subr.mxu0 0.0
    %1733 = vmatpush1.msra.mxu0 0.0
    %1734 = vmatprep.subr.mxu0 0.0
    %1735 = vmatpush1.msra.mxu0 0.0
    %1736 = vmatprep.mubr.f32.mxu0 0.0
    %1737 = vmatmul.mubr.f32.gmra.mrb[0].mxu0 %v1670
    %v1738 = vpop.f32.mrb[0].mxu0
    %v1739 = vadd.f32 0.0, %v1738
    %v1740 = vpop.f32.mrb[0].mxu0
    %v1741 = vadd.f32 0.0, %v1740
    %1742 = vdwg.mxu0
    %1744 = vrot.lane.b32.xlu0 %v1669, 32
    %v1745 = vpop.permute.xlu0 %1744
    %v1746 = vsel %vm115, %v1745, 0
    %1748 = vmatprep.subr.mxu0 %v81
    %1749 = vmatpush1.msra.mxu0 %v80
    %1750 = vmatprep.subr.mxu0 %v83
    %1751 = vmatpush1.msra.mxu0 %v82
    %1752 = vmatprep.subr.mxu0 %v85
    %1753 = vmatpush1.msra.mxu0 %v84
    %1754 = vmatprep.subr.mxu0 %v87
    %1755 = vmatpush1.msra.mxu0 %v86
    %1756 = vmatprep.subr.mxu0 0.0
    %1757 = vmatpush1.msra.mxu0 0.0
    %1758 = vmatprep.subr.mxu0 0.0
    %1759 = vmatpush1.msra.mxu0 0.0
    %1760 = vmatprep.subr.mxu0 0.0
    %1761 = vmatpush1.msra.mxu0 0.0
    %1762 = vmatprep.subr.mxu0 0.0
    %1763 = vmatpush1.msra.mxu0 0.0
    %1764 = vmatprep.subr.mxu0 0.0
    %1765 = vmatpush1.msra.mxu0 0.0
    %1766 = vmatprep.subr.mxu0 0.0
    %1767 = vmatpush1.msra.mxu0 0.0
    %1768 = vmatprep.subr.mxu0 0.0
    %1769 = vmatpush1.msra.mxu0 0.0
    %1770 = vmatprep.subr.mxu0 0.0
    %1771 = vmatpush1.msra.mxu0 0.0
    %1772 = vmatprep.subr.mxu0 0.0
    %1773 = vmatpush1.msra.mxu0 0.0
    %1774 = vmatprep.subr.mxu0 0.0
    %1775 = vmatpush1.msra.mxu0 0.0
    %1776 = vmatprep.subr.mxu0 0.0
    %1777 = vmatpush1.msra.mxu0 0.0
    %1778 = vmatprep.subr.mxu0 0.0
    %1779 = vmatpush1.msra.mxu0 0.0
    %1780 = vmatprep.subr.mxu0 0.0
    %1781 = vmatpush1.msra.mxu0 0.0
    %1782 = vmatprep.subr.mxu0 0.0
    %1783 = vmatpush1.msra.mxu0 0.0
    %1784 = vmatprep.subr.mxu0 0.0
    %1785 = vmatpush1.msra.mxu0 0.0
    %1786 = vmatprep.subr.mxu0 0.0
    %1787 = vmatpush1.msra.mxu0 0.0
    %1788 = vmatprep.subr.mxu0 0.0
    %1789 = vmatpush1.msra.mxu0 0.0
    %1790 = vmatprep.subr.mxu0 0.0
    %1791 = vmatpush1.msra.mxu0 0.0
    %1792 = vmatprep.subr.mxu0 0.0
    %1793 = vmatpush1.msra.mxu0 0.0
    %1794 = vmatprep.subr.mxu0 0.0
    %1795 = vmatpush1.msra.mxu0 0.0
    %1796 = vmatprep.subr.mxu0 0.0
    %1797 = vmatpush1.msra.mxu0 0.0
    %1798 = vmatprep.subr.mxu0 0.0
    %1799 = vmatpush1.msra.mxu0 0.0
    %1800 = vmatprep.subr.mxu0 0.0
    %1801 = vmatpush1.msra.mxu0 0.0
    %1802 = vmatprep.subr.mxu0 0.0
    %1803 = vmatpush1.msra.mxu0 0.0
    %1804 = vmatprep.subr.mxu0 0.0
    %1805 = vmatpush1.msra.mxu0 0.0
    %1806 = vmatprep.subr.mxu0 0.0
    %1807 = vmatpush1.msra.mxu0 0.0
    %1808 = vmatprep.subr.mxu0 0.0
    %1809 = vmatpush1.msra.mxu0 0.0
    %1810 = vmatprep.subr.mxu0 0.0
    %1811 = vmatpush1.msra.mxu0 0.0
    %1812 = vmatprep.mubr.f32.mxu0 0.0
    %1813 = vmatmul.mubr.f32.gmra.mrb[0].mxu0 %v1746
    %v1814 = vpop.f32.mrb[0].mxu0
    %v1815 = vadd.f32 %v1739, %v1814
    %v1816 = vpop.f32.mrb[0].mxu0
    %v1817 = vadd.f32 %v1741, %v1816
    %1818 = vdwg.mxu0
    %v1819 = vadd.f32 %v1815, %v194
    %v1820 = vadd.f32 %v1817, %v198
    %v1821 = vxor.u32 %v1819, 2147483648
    %v1822 = vmul.f32 %v1821, 1.442695
    %v1823 = vpow.pop %v1822
    %v1824 = vadd.f32 %v1823, 1.0
    %v1825 = vrcp.pop %v1824
    %v1826 = vmul.f32 1.0, %v1825
    %v1827 = vtanh.pop %v1820
    %v1828 = vxor.u32 %v1820, 2147483648
    %v1829 = vmul.f32 %v1828, 1.442695
    %v1830 = vpow.pop %v1829
    %v1831 = vadd.f32 %v1830, 1.0
    %v1832 = vrcp.pop %v1831
    %v1833 = vmul.f32 1.0, %v1832
    %v1834 = vmul.f32 %v1826, %v1566
    %v1835 = vmul.f32 %v1826, %v1827
    %1837 = vrot.lane.b32.xlu0 %v1835, 64
    %v1838 = vpop.permute.xlu0 %1837
    %v1840 = vadd.f32 %v1834, %v1838
    %v1841 = vtanh.pop %v1840
    %v1842 = vmul.f32 %v1833, %v1841
    %1844 = vrot.lane.b32.xlu0 %v1842, 64
    %v1845 = vpop.permute.xlu0 %1844
    %s1847 = scalar_lea.vmem [#allocation2], 10
    %1848 = vst.msk [vmem:[%s1847] sm:$0x3] %vm477, %v1845
    %1849 = vmatprep.subr.mxu0 0.0
    %1850 = vmatpush1.msra.mxu0 %v76
    %1851 = vmatprep.subr.mxu0 0.0
    %1852 = vmatpush1.msra.mxu0 %v77
    %1853 = vmatprep.subr.mxu0 0.0
    %1854 = vmatpush1.msra.mxu0 %v78
    %1855 = vmatprep.subr.mxu0 0.0
    %1856 = vmatpush1.msra.mxu0 %v79
    %1857 = vmatprep.subr.mxu0 0.0
    %1858 = vmatpush1.msra.mxu0 0.0
    %1859 = vmatprep.subr.mxu0 0.0
    %1860 = vmatpush1.msra.mxu0 0.0
    %1861 = vmatprep.subr.mxu0 0.0
    %1862 = vmatpush1.msra.mxu0 0.0
    %1863 = vmatprep.subr.mxu0 0.0
    %1864 = vmatpush1.msra.mxu0 0.0
    %1865 = vmatprep.subr.mxu0 0.0
    %1866 = vmatpush1.msra.mxu0 0.0
    %1867 = vmatprep.subr.mxu0 0.0
    %1868 = vmatpush1.msra.mxu0 0.0
    %1869 = vmatprep.subr.mxu0 0.0
    %1870 = vmatpush1.msra.mxu0 0.0
    %1871 = vmatprep.subr.mxu0 0.0
    %1872 = vmatpush1.msra.mxu0 0.0
    %1873 = vmatprep.subr.mxu0 0.0
    %1874 = vmatpush1.msra.mxu0 0.0
    %1875 = vmatprep.subr.mxu0 0.0
    %1876 = vmatpush1.msra.mxu0 0.0
    %1877 = vmatprep.subr.mxu0 0.0
    %1878 = vmatpush1.msra.mxu0 0.0
    %1879 = vmatprep.subr.mxu0 0.0
    %1880 = vmatpush1.msra.mxu0 0.0
    %1881 = vmatprep.subr.mxu0 0.0
    %1882 = vmatpush1.msra.mxu0 0.0
    %1883 = vmatprep.subr.mxu0 0.0
    %1884 = vmatpush1.msra.mxu0 0.0
    %1885 = vmatprep.subr.mxu0 0.0
    %1886 = vmatpush1.msra.mxu0 0.0
    %1887 = vmatprep.subr.mxu0 0.0
    %1888 = vmatpush1.msra.mxu0 0.0
    %1889 = vmatprep.subr.mxu0 0.0
    %1890 = vmatpush1.msra.mxu0 0.0
    %1891 = vmatprep.subr.mxu0 0.0
    %1892 = vmatpush1.msra.mxu0 0.0
    %1893 = vmatprep.subr.mxu0 0.0
    %1894 = vmatpush1.msra.mxu0 0.0
    %1895 = vmatprep.subr.mxu0 0.0
    %1896 = vmatpush1.msra.mxu0 0.0
    %1897 = vmatprep.subr.mxu0 0.0
    %1898 = vmatpush1.msra.mxu0 0.0
    %1899 = vmatprep.subr.mxu0 0.0
    %1900 = vmatpush1.msra.mxu0 0.0
    %1901 = vmatprep.subr.mxu0 0.0
    %1902 = vmatpush1.msra.mxu0 0.0
    %1903 = vmatprep.subr.mxu0 0.0
    %1904 = vmatpush1.msra.mxu0 0.0
    %1905 = vmatprep.subr.mxu0 0.0
    %1906 = vmatpush1.msra.mxu0 0.0
    %1907 = vmatprep.subr.mxu0 0.0
    %1908 = vmatpush1.msra.mxu0 0.0
    %1909 = vmatprep.subr.mxu0 0.0
    %1910 = vmatpush1.msra.mxu0 0.0
    %1911 = vmatprep.subr.mxu0 0.0
    %1912 = vmatpush1.msra.mxu0 0.0
    %1913 = vmatprep.mubr.f32.mxu0 0.0
    %1914 = vmatmul.mubr.f32.gmra.mrb[0].mxu0 %v1746
    %v1915 = vpop.f32.mrb[0].mxu0
    %v1916 = vadd.f32 0.0, %v1915
    %v1917 = vpop.f32.mrb[0].mxu0
    %1918 = vdwg.mxu0
    %v1919 = vadd.f32 %v186, %v1916
    %v1920 = vxor.u32 %v1919, 2147483648
    %v1921 = vmul.f32 %v1920, 1.442695
    %v1922 = vpow.pop %v1921
    %v1923 = vadd.f32 %v1922, 1.0
    %v1924 = vrcp.pop %v1923
    %v1925 = vmul.f32 1.0, %v1924
    %v1926 = vtanh.pop %v1919
    %v1927 = vmul.f32 %v1925, %v1663
    %1929 = vrot.lane.b32.xlu0 %v1926, 64
    %v1930 = vpop.permute.xlu0 %1929
    %v1932 = vmul.f32 %v1925, %v1930
    %1934 = vrot.lane.b32.xlu0 %v1932, 32
    %v1935 = vpop.permute.xlu0 %1934
    %v1937 = vadd.f32 %v1927, %v1935
    %v1938 = vtanh.pop %v1937
    %1940 = vrot.lane.b32.xlu0 %v1938, 64
    %v1941 = vpop.permute.xlu0 %1940
    %v1943 = vmul.f32 %v1925, %v1941
    %v1944 = vsel %vm299, %v1845, 0
    %1946 = vmatprep.subr.mxu0 %v89
    %1947 = vmatpush1.msra.mxu0 %v88
    %1948 = vmatprep.subr.mxu0 %v91
    %1949 = vmatpush1.msra.mxu0 %v90
    %1950 = vmatprep.subr.mxu0 %v93
    %1951 = vmatpush1.msra.mxu0 %v92
    %1952 = vmatprep.subr.mxu0 %v95
    %1953 = vmatpush1.msra.mxu0 %v94
    %1954 = vmatprep.subr.mxu0 %v97
    %1955 = vmatpush1.msra.mxu0 %v96
    %1956 = vmatprep.subr.mxu0 %v99
    %1957 = vmatpush1.msra.mxu0 %v98
    %1958 = vmatprep.subr.mxu0 %v101
    %1959 = vmatpush1.msra.mxu0 %v100
    %1960 = vmatprep.subr.mxu0 %v103
    %1961 = vmatpush1.msra.mxu0 %v102
    %1962 = vmatprep.subr.mxu0 0.0
    %1963 = vmatpush1.msra.mxu0 0.0
    %1964 = vmatprep.subr.mxu0 0.0
    %1965 = vmatpush1.msra.mxu0 0.0
    %1966 = vmatprep.subr.mxu0 0.0
    %1967 = vmatpush1.msra.mxu0 0.0
    %1968 = vmatprep.subr.mxu0 0.0
    %1969 = vmatpush1.msra.mxu0 0.0
    %1970 = vmatprep.subr.mxu0 0.0
    %1971 = vmatpush1.msra.mxu0 0.0
    %1972 = vmatprep.subr.mxu0 0.0
    %1973 = vmatpush1.msra.mxu0 0.0
    %1974 = vmatprep.subr.mxu0 0.0
    %1975 = vmatpush1.msra.mxu0 0.0
    %1976 = vmatprep.subr.mxu0 0.0
    %1977 = vmatpush1.msra.mxu0 0.0
    %1978 = vmatprep.subr.mxu0 0.0
    %1979 = vmatpush1.msra.mxu0 0.0
    %1980 = vmatprep.subr.mxu0 0.0
    %1981 = vmatpush1.msra.mxu0 0.0
    %1982 = vmatprep.subr.mxu0 0.0
    %1983 = vmatpush1.msra.mxu0 0.0
    %1984 = vmatprep.subr.mxu0 0.0
    %1985 = vmatpush1.msra.mxu0 0.0
    %1986 = vmatprep.subr.mxu0 0.0
    %1987 = vmatpush1.msra.mxu0 0.0
    %1988 = vmatprep.subr.mxu0 0.0
    %1989 = vmatpush1.msra.mxu0 0.0
    %1990 = vmatprep.subr.mxu0 0.0
    %1991 = vmatpush1.msra.mxu0 0.0
    %1992 = vmatprep.subr.mxu0 0.0
    %1993 = vmatpush1.msra.mxu0 0.0
    %1994 = vmatprep.subr.mxu0 0.0
    %1995 = vmatpush1.msra.mxu0 0.0
    %1996 = vmatprep.subr.mxu0 0.0
    %1997 = vmatpush1.msra.mxu0 0.0
    %1998 = vmatprep.subr.mxu0 0.0
    %1999 = vmatpush1.msra.mxu0 0.0
    %2000 = vmatprep.subr.mxu0 0.0
    %2001 = vmatpush1.msra.mxu0 0.0
    %2002 = vmatprep.subr.mxu0 0.0
    %2003 = vmatpush1.msra.mxu0 0.0
    %2004 = vmatprep.subr.mxu0 0.0
    %2005 = vmatpush1.msra.mxu0 0.0
    %2006 = vmatprep.subr.mxu0 0.0
    %2007 = vmatpush1.msra.mxu0 0.0
    %2008 = vmatprep.subr.mxu0 0.0
    %2009 = vmatpush1.msra.mxu0 0.0
    %2010 = vmatprep.mubr.f32.mxu0 0.0
    %2011 = vmatmul.mubr.f32.gmra.mrb[0].mxu0 %v1944
    %v2012 = vpop.f32.mrb[0].mxu0
    %v2013 = vadd.f32 0.0, %v2012
    %v2014 = vpop.f32.mrb[0].mxu0
    %v2015 = vadd.f32 0.0, %v2014
    %2016 = vdwg.mxu0
    %2018 = vrot.lane.b32.xlu0 %v1943, 32
    %v2019 = vpop.permute.xlu0 %2018
    %v2020 = vsel %vm115, %v2019, 0
    %2022 = vmatprep.subr.mxu0 %v81
    %2023 = vmatpush1.msra.mxu0 %v80
    %2024 = vmatprep.subr.mxu0 %v83
    %2025 = vmatpush1.msra.mxu0 %v82
    %2026 = vmatprep.subr.mxu0 %v85
    %2027 = vmatpush1.msra.mxu0 %v84
    %2028 = vmatprep.subr.mxu0 %v87
    %2029 = vmatpush1.msra.mxu0 %v86
    %2030 = vmatprep.subr.mxu0 0.0
    %2031 = vmatpush1.msra.mxu0 0.0
    %2032 = vmatprep.subr.mxu0 0.0
    %2033 = vmatpush1.msra.mxu0 0.0
    %2034 = vmatprep.subr.mxu0 0.0
    %2035 = vmatpush1.msra.mxu0 0.0
    %2036 = vmatprep.subr.mxu0 0.0
    %2037 = vmatpush1.msra.mxu0 0.0
    %2038 = vmatprep.subr.mxu0 0.0
    %2039 = vmatpush1.msra.mxu0 0.0
    %2040 = vmatprep.subr.mxu0 0.0
    %2041 = vmatpush1.msra.mxu0 0.0
    %2042 = vmatprep.subr.mxu0 0.0
    %2043 = vmatpush1.msra.mxu0 0.0
    %2044 = vmatprep.subr.mxu0 0.0
    %2045 = vmatpush1.msra.mxu0 0.0
    %2046 = vmatprep.subr.mxu0 0.0
    %2047 = vmatpush1.msra.mxu0 0.0
    %2048 = vmatprep.subr.mxu0 0.0
    %2049 = vmatpush1.msra.mxu0 0.0
    %2050 = vmatprep.subr.mxu0 0.0
    %2051 = vmatpush1.msra.mxu0 0.0
    %2052 = vmatprep.subr.mxu0 0.0
    %2053 = vmatpush1.msra.mxu0 0.0
    %2054 = vmatprep.subr.mxu0 0.0
    %2055 = vmatpush1.msra.mxu0 0.0
    %2056 = vmatprep.subr.mxu0 0.0
    %2057 = vmatpush1.msra.mxu0 0.0
    %2058 = vmatprep.subr.mxu0 0.0
    %2059 = vmatpush1.msra.mxu0 0.0
    %2060 = vmatprep.subr.mxu0 0.0
    %2061 = vmatpush1.msra.mxu0 0.0
    %2062 = vmatprep.subr.mxu0 0.0
    %2063 = vmatpush1.msra.mxu0 0.0
    %2064 = vmatprep.subr.mxu0 0.0
    %2065 = vmatpush1.msra.mxu0 0.0
    %2066 = vmatprep.subr.mxu0 0.0
    %2067 = vmatpush1.msra.mxu0 0.0
    %2068 = vmatprep.subr.mxu0 0.0
    %2069 = vmatpush1.msra.mxu0 0.0
    %2070 = vmatprep.subr.mxu0 0.0
    %2071 = vmatpush1.msra.mxu0 0.0
    %2072 = vmatprep.subr.mxu0 0.0
    %2073 = vmatpush1.msra.mxu0 0.0
    %2074 = vmatprep.subr.mxu0 0.0
    %2075 = vmatpush1.msra.mxu0 0.0
    %2076 = vmatprep.subr.mxu0 0.0
    %2077 = vmatpush1.msra.mxu0 0.0
    %2078 = vmatprep.subr.mxu0 0.0
    %2079 = vmatpush1.msra.mxu0 0.0
    %2080 = vmatprep.subr.mxu0 0.0
    %2081 = vmatpush1.msra.mxu0 0.0
    %2082 = vmatprep.subr.mxu0 0.0
    %2083 = vmatpush1.msra.mxu0 0.0
    %2084 = vmatprep.subr.mxu0 0.0
    %2085 = vmatpush1.msra.mxu0 0.0
    %2086 = vmatprep.mubr.f32.mxu0 0.0
    %2087 = vmatmul.mubr.f32.gmra.mrb[0].mxu0 %v2020
    %v2088 = vpop.f32.mrb[0].mxu0
    %v2089 = vadd.f32 %v2013, %v2088
    %v2090 = vpop.f32.mrb[0].mxu0
    %v2091 = vadd.f32 %v2015, %v2090
    %2092 = vdwg.mxu0
    %v2093 = vadd.f32 %v2089, %v194
    %v2094 = vadd.f32 %v2091, %v198
    %v2095 = vxor.u32 %v2093, 2147483648
    %v2096 = vmul.f32 %v2095, 1.442695
    %v2097 = vpow.pop %v2096
    %v2098 = vadd.f32 %v2097, 1.0
    %v2099 = vrcp.pop %v2098
    %v2100 = vmul.f32 1.0, %v2099
    %v2101 = vtanh.pop %v2094
    %v2102 = vxor.u32 %v2094, 2147483648
    %v2103 = vmul.f32 %v2102, 1.442695
    %v2104 = vpow.pop %v2103
    %v2105 = vadd.f32 %v2104, 1.0
    %v2106 = vrcp.pop %v2105
    %v2107 = vmul.f32 1.0, %v2106
    %v2108 = vmul.f32 %v2100, %v1840
    %v2109 = vmul.f32 %v2100, %v2101
    %2111 = vrot.lane.b32.xlu0 %v2109, 64
    %v2112 = vpop.permute.xlu0 %2111
    %v2114 = vadd.f32 %v2108, %v2112
    %v2115 = vtanh.pop %v2114
    %v2116 = vmul.f32 %v2107, %v2115
    %2118 = vrot.lane.b32.xlu0 %v2116, 64
    %v2119 = vpop.permute.xlu0 %2118
    %s2121 = scalar_lea.vmem [#allocation2], 12
    %2122 = vst.msk [vmem:[%s2121] sm:$0x3] %vm477, %v2119
    %2123 = vmatprep.subr.mxu0 0.0
    %2124 = vmatpush1.msra.mxu0 %v76
    %2125 = vmatprep.subr.mxu0 0.0
    %2126 = vmatpush1.msra.mxu0 %v77
    %2127 = vmatprep.subr.mxu0 0.0
    %2128 = vmatpush1.msra.mxu0 %v78
    %2129 = vmatprep.subr.mxu0 0.0
    %2130 = vmatpush1.msra.mxu0 %v79
    %2131 = vmatprep.subr.mxu0 0.0
    %2132 = vmatpush1.msra.mxu0 0.0
    %2133 = vmatprep.subr.mxu0 0.0
    %2134 = vmatpush1.msra.mxu0 0.0
    %2135 = vmatprep.subr.mxu0 0.0
    %2136 = vmatpush1.msra.mxu0 0.0
    %2137 = vmatprep.subr.mxu0 0.0
    %2138 = vmatpush1.msra.mxu0 0.0
    %2139 = vmatprep.subr.mxu0 0.0
    %2140 = vmatpush1.msra.mxu0 0.0
    %2141 = vmatprep.subr.mxu0 0.0
    %2142 = vmatpush1.msra.mxu0 0.0
    %2143 = vmatprep.subr.mxu0 0.0
    %2144 = vmatpush1.msra.mxu0 0.0
    %2145 = vmatprep.subr.mxu0 0.0
    %2146 = vmatpush1.msra.mxu0 0.0
    %2147 = vmatprep.subr.mxu0 0.0
    %2148 = vmatpush1.msra.mxu0 0.0
    %2149 = vmatprep.subr.mxu0 0.0
    %2150 = vmatpush1.msra.mxu0 0.0
    %2151 = vmatprep.subr.mxu0 0.0
    %2152 = vmatpush1.msra.mxu0 0.0
    %2153 = vmatprep.subr.mxu0 0.0
    %2154 = vmatpush1.msra.mxu0 0.0
    %2155 = vmatprep.subr.mxu0 0.0
    %2156 = vmatpush1.msra.mxu0 0.0
    %2157 = vmatprep.subr.mxu0 0.0
    %2158 = vmatpush1.msra.mxu0 0.0
    %2159 = vmatprep.subr.mxu0 0.0
    %2160 = vmatpush1.msra.mxu0 0.0
    %2161 = vmatprep.subr.mxu0 0.0
    %2162 = vmatpush1.msra.mxu0 0.0
    %2163 = vmatprep.subr.mxu0 0.0
    %2164 = vmatpush1.msra.mxu0 0.0
    %2165 = vmatprep.subr.mxu0 0.0
    %2166 = vmatpush1.msra.mxu0 0.0
    %2167 = vmatprep.subr.mxu0 0.0
    %2168 = vmatpush1.msra.mxu0 0.0
    %2169 = vmatprep.subr.mxu0 0.0
    %2170 = vmatpush1.msra.mxu0 0.0
    %2171 = vmatprep.subr.mxu0 0.0
    %2172 = vmatpush1.msra.mxu0 0.0
    %2173 = vmatprep.subr.mxu0 0.0
    %2174 = vmatpush1.msra.mxu0 0.0
    %2175 = vmatprep.subr.mxu0 0.0
    %2176 = vmatpush1.msra.mxu0 0.0
    %2177 = vmatprep.subr.mxu0 0.0
    %2178 = vmatpush1.msra.mxu0 0.0
    %2179 = vmatprep.subr.mxu0 0.0
    %2180 = vmatpush1.msra.mxu0 0.0
    %2181 = vmatprep.subr.mxu0 0.0
    %2182 = vmatpush1.msra.mxu0 0.0
    %2183 = vmatprep.subr.mxu0 0.0
    %2184 = vmatpush1.msra.mxu0 0.0
    %2185 = vmatprep.subr.mxu0 0.0
    %2186 = vmatpush1.msra.mxu0 0.0
    %2187 = vmatprep.mubr.f32.mxu0 0.0
    %2188 = vmatmul.mubr.f32.gmra.mrb[0].mxu0 %v2020
    %v2189 = vpop.f32.mrb[0].mxu0
    %v2190 = vadd.f32 0.0, %v2189
    %v2191 = vpop.f32.mrb[0].mxu0
    %2192 = vdwg.mxu0
    %v2193 = vadd.f32 %v186, %v2190
    %v2194 = vxor.u32 %v2193, 2147483648
    %v2195 = vmul.f32 %v2194, 1.442695
    %v2196 = vpow.pop %v2195
    %v2197 = vadd.f32 %v2196, 1.0
    %v2198 = vrcp.pop %v2197
    %v2199 = vmul.f32 1.0, %v2198
    %v2200 = vtanh.pop %v2193
    %v2201 = vmul.f32 %v2199, %v1937
    %2203 = vrot.lane.b32.xlu0 %v2200, 64
    %v2204 = vpop.permute.xlu0 %2203
    %v2206 = vmul.f32 %v2199, %v2204
    %2208 = vrot.lane.b32.xlu0 %v2206, 32
    %v2209 = vpop.permute.xlu0 %2208
    %v2211 = vadd.f32 %v2201, %v2209
    %v2212 = vtanh.pop %v2211
    %2214 = vrot.lane.b32.xlu0 %v2212, 64
    %v2215 = vpop.permute.xlu0 %2214
    %v2217 = vmul.f32 %v2199, %v2215
    %v2218 = vsel %vm299, %v2119, 0
    %2220 = vmatprep.subr.mxu0 %v89
    %2221 = vmatpush1.msra.mxu0 %v88
    %2222 = vmatprep.subr.mxu0 %v91
    %2223 = vmatpush1.msra.mxu0 %v90
    %2224 = vmatprep.subr.mxu0 %v93
    %2225 = vmatpush1.msra.mxu0 %v92
    %2226 = vmatprep.subr.mxu0 %v95
    %2227 = vmatpush1.msra.mxu0 %v94
    %2228 = vmatprep.subr.mxu0 %v97
    %2229 = vmatpush1.msra.mxu0 %v96
    %2230 = vmatprep.subr.mxu0 %v99
    %2231 = vmatpush1.msra.mxu0 %v98
    %2232 = vmatprep.subr.mxu0 %v101
    %2233 = vmatpush1.msra.mxu0 %v100
    %2234 = vmatprep.subr.mxu0 %v103
    %2235 = vmatpush1.msra.mxu0 %v102
    %2236 = vmatprep.subr.mxu0 0.0
    %2237 = vmatpush1.msra.mxu0 0.0
    %2238 = vmatprep.subr.mxu0 0.0
    %2239 = vmatpush1.msra.mxu0 0.0
    %2240 = vmatprep.subr.mxu0 0.0
    %2241 = vmatpush1.msra.mxu0 0.0
    %2242 = vmatprep.subr.mxu0 0.0
    %2243 = vmatpush1.msra.mxu0 0.0
    %2244 = vmatprep.subr.mxu0 0.0
    %2245 = vmatpush1.msra.mxu0 0.0
    %2246 = vmatprep.subr.mxu0 0.0
    %2247 = vmatpush1.msra.mxu0 0.0
    %2248 = vmatprep.subr.mxu0 0.0
    %2249 = vmatpush1.msra.mxu0 0.0
    %2250 = vmatprep.subr.mxu0 0.0
    %2251 = vmatpush1.msra.mxu0 0.0
    %2252 = vmatprep.subr.mxu0 0.0
    %2253 = vmatpush1.msra.mxu0 0.0
    %2254 = vmatprep.subr.mxu0 0.0
    %2255 = vmatpush1.msra.mxu0 0.0
    %2256 = vmatprep.subr.mxu0 0.0
    %2257 = vmatpush1.msra.mxu0 0.0
    %2258 = vmatprep.subr.mxu0 0.0
    %2259 = vmatpush1.msra.mxu0 0.0
    %2260 = vmatprep.subr.mxu0 0.0
    %2261 = vmatpush1.msra.mxu0 0.0
    %2262 = vmatprep.subr.mxu0 0.0
    %2263 = vmatpush1.msra.mxu0 0.0
    %2264 = vmatprep.subr.mxu0 0.0
    %2265 = vmatpush1.msra.mxu0 0.0
    %2266 = vmatprep.subr.mxu0 0.0
    %2267 = vmatpush1.msra.mxu0 0.0
    %2268 = vmatprep.subr.mxu0 0.0
    %2269 = vmatpush1.msra.mxu0 0.0
    %2270 = vmatprep.subr.mxu0 0.0
    %2271 = vmatpush1.msra.mxu0 0.0
    %2272 = vmatprep.subr.mxu0 0.0
    %2273 = vmatpush1.msra.mxu0 0.0
    %2274 = vmatprep.subr.mxu0 0.0
    %2275 = vmatpush1.msra.mxu0 0.0
    %2276 = vmatprep.subr.mxu0 0.0
    %2277 = vmatpush1.msra.mxu0 0.0
    %2278 = vmatprep.subr.mxu0 0.0
    %2279 = vmatpush1.msra.mxu0 0.0
    %2280 = vmatprep.subr.mxu0 0.0
    %2281 = vmatpush1.msra.mxu0 0.0
    %2282 = vmatprep.subr.mxu0 0.0
    %2283 = vmatpush1.msra.mxu0 0.0
    %2284 = vmatprep.mubr.f32.mxu0 0.0
    %2285 = vmatmul.mubr.f32.gmra.mrb[0].mxu0 %v2218
    %v2286 = vpop.f32.mrb[0].mxu0
    %v2287 = vadd.f32 0.0, %v2286
    %v2288 = vpop.f32.mrb[0].mxu0
    %v2289 = vadd.f32 0.0, %v2288
    %2290 = vdwg.mxu0
    %2292 = vrot.lane.b32.xlu0 %v2217, 32
    %v2293 = vpop.permute.xlu0 %2292
    %v2294 = vsel %vm115, %v2293, 0
    %2296 = vmatprep.subr.mxu0 %v81
    %2297 = vmatpush1.msra.mxu0 %v80
    %2298 = vmatprep.subr.mxu0 %v83
    %2299 = vmatpush1.msra.mxu0 %v82
    %2300 = vmatprep.subr.mxu0 %v85
    %2301 = vmatpush1.msra.mxu0 %v84
    %2302 = vmatprep.subr.mxu0 %v87
    %2303 = vmatpush1.msra.mxu0 %v86
    %2304 = vmatprep.subr.mxu0 0.0
    %2305 = vmatpush1.msra.mxu0 0.0
    %2306 = vmatprep.subr.mxu0 0.0
    %2307 = vmatpush1.msra.mxu0 0.0
    %2308 = vmatprep.subr.mxu0 0.0
    %2309 = vmatpush1.msra.mxu0 0.0
    %2310 = vmatprep.subr.mxu0 0.0
    %2311 = vmatpush1.msra.mxu0 0.0
    %2312 = vmatprep.subr.mxu0 0.0
    %2313 = vmatpush1.msra.mxu0 0.0
    %2314 = vmatprep.subr.mxu0 0.0
    %2315 = vmatpush1.msra.mxu0 0.0
    %2316 = vmatprep.subr.mxu0 0.0
    %2317 = vmatpush1.msra.mxu0 0.0
    %2318 = vmatprep.subr.mxu0 0.0
    %2319 = vmatpush1.msra.mxu0 0.0
    %2320 = vmatprep.subr.mxu0 0.0
    %2321 = vmatpush1.msra.mxu0 0.0
    %2322 = vmatprep.subr.mxu0 0.0
    %2323 = vmatpush1.msra.mxu0 0.0
    %2324 = vmatprep.subr.mxu0 0.0
    %2325 = vmatpush1.msra.mxu0 0.0
    %2326 = vmatprep.subr.mxu0 0.0
    %2327 = vmatpush1.msra.mxu0 0.0
    %2328 = vmatprep.subr.mxu0 0.0
    %2329 = vmatpush1.msra.mxu0 0.0
    %2330 = vmatprep.subr.mxu0 0.0
    %2331 = vmatpush1.msra.mxu0 0.0
    %2332 = vmatprep.subr.mxu0 0.0
    %2333 = vmatpush1.msra.mxu0 0.0
    %2334 = vmatprep.subr.mxu0 0.0
    %2335 = vmatpush1.msra.mxu0 0.0
    %2336 = vmatprep.subr.mxu0 0.0
    %2337 = vmatpush1.msra.mxu0 0.0
    %2338 = vmatprep.subr.mxu0 0.0
    %2339 = vmatpush1.msra.mxu0 0.0
    %2340 = vmatprep.subr.mxu0 0.0
    %2341 = vmatpush1.msra.mxu0 0.0
    %2342 = vmatprep.subr.mxu0 0.0
    %2343 = vmatpush1.msra.mxu0 0.0
    %2344 = vmatprep.subr.mxu0 0.0
    %2345 = vmatpush1.msra.mxu0 0.0
    %2346 = vmatprep.subr.mxu0 0.0
    %2347 = vmatpush1.msra.mxu0 0.0
    %2348 = vmatprep.subr.mxu0 0.0
    %2349 = vmatpush1.msra.mxu0 0.0
    %2350 = vmatprep.subr.mxu0 0.0
    %2351 = vmatpush1.msra.mxu0 0.0
    %2352 = vmatprep.subr.mxu0 0.0
    %2353 = vmatpush1.msra.mxu0 0.0
    %2354 = vmatprep.subr.mxu0 0.0
    %2355 = vmatpush1.msra.mxu0 0.0
    %2356 = vmatprep.subr.mxu0 0.0
    %2357 = vmatpush1.msra.mxu0 0.0
    %2358 = vmatprep.subr.mxu0 0.0
    %2359 = vmatpush1.msra.mxu0 0.0
    %2360 = vmatprep.mubr.f32.mxu0 0.0
    %2361 = vmatmul.mubr.f32.gmra.mrb[0].mxu0 %v2294
    %v2362 = vpop.f32.mrb[0].mxu0
    %v2363 = vadd.f32 %v2287, %v2362
    %v2364 = vpop.f32.mrb[0].mxu0
    %v2365 = vadd.f32 %v2289, %v2364
    %2366 = vdwg.mxu0
    %v2367 = vadd.f32 %v2363, %v194
    %v2368 = vadd.f32 %v2365, %v198
    %v2369 = vxor.u32 %v2367, 2147483648
    %v2370 = vmul.f32 %v2369, 1.442695
    %v2371 = vpow.pop %v2370
    %v2372 = vadd.f32 %v2371, 1.0
    %v2373 = vrcp.pop %v2372
    %v2374 = vmul.f32 1.0, %v2373
    %v2375 = vtanh.pop %v2368
    %v2376 = vxor.u32 %v2368, 2147483648
    %v2377 = vmul.f32 %v2376, 1.442695
    %v2378 = vpow.pop %v2377
    %v2379 = vadd.f32 %v2378, 1.0
    %v2380 = vrcp.pop %v2379
    %v2381 = vmul.f32 1.0, %v2380
    %v2382 = vmul.f32 %v2374, %v2114
    %v2383 = vmul.f32 %v2374, %v2375
    %2385 = vrot.lane.b32.xlu0 %v2383, 64
    %v2386 = vpop.permute.xlu0 %2385
    %v2388 = vadd.f32 %v2382, %v2386
    %v2389 = vtanh.pop %v2388
    %v2390 = vmul.f32 %v2381, %v2389
    %2392 = vrot.lane.b32.xlu0 %v2390, 64
    %v2393 = vpop.permute.xlu0 %2392
    %s2395 = scalar_lea.vmem [#allocation2], 14
    %2396 = vst.msk [vmem:[%s2395] sm:$0x3] %vm477, %v2393
    %v2397 = vld [vmem:[#allocation2] sm:$0x3]
    %v2398 = vld [vmem:[#allocation2 + $0x2] sm:$0x3]
    %v2399 = vld [vmem:[#allocation2 + $0x4] sm:$0x3]
    %v2400 = vld [vmem:[#allocation2 + $0x6] sm:$0x3]
    %v2401 = vld [vmem:[#allocation2 + $0x8] sm:$0x3]
    %v2402 = vld [vmem:[#allocation2 + $0xa] sm:$0x3]
    %v2403 = vld [vmem:[#allocation2 + $0xc] sm:$0x3]
    %v2404 = vld [vmem:[#allocation2 + $0xe] sm:$0x3]
    %v2405 = vld [vmem:[%s7] sm:$0xff]
    %v2406 = vld [vmem:[%s7 + $0x8] sm:$0xff]
    %v2407 = vld [vmem:[%s7 + $0x10] sm:$0xff]
    %v2408 = vld [vmem:[%s7 + $0x18] sm:$0xff]
    %v2409 = vld [vmem:[%s7 + $0x20] sm:$0xff]
    %v2410 = vld [vmem:[%s7 + $0x28] sm:$0xff]
    %v2411 = vld [vmem:[%s7 + $0x30] sm:$0xff]
    %v2412 = vld [vmem:[%s7 + $0x38] sm:$0xff]
    %v2413 = vld [vmem:[#allocation3] sm:$0x1]
    %v2415 = vlaneseq
    %v2416 = vshrl.u32 %v2415, 7
    %v2417 = vsub.s32 0, %v2416
    %v2418 = vrot.slane %v2413, %v2417
    %v2428 = vcombine.low %v2397, %v2398
    %v2429 = vcombine.low %v2399, %v2400
    %v2431 = vunpack.c.l.s4 1983009808
    %v2432 = vunpack.c.0.s8 %v2431
    %v2433 = vlaneseq
    %v2434 = vshrl.u32 %v2433, 7
    %v2435 = vsub.s32 %v2432, %v2434
    %v2436 = vrot.slane %v2428, %v2435
    %v2438 = vunpack.c.l.s4 1983009808
    %v2439 = vunpack.c.0.s8 %v2438
    %v2440 = vlaneseq
    %v2441 = vshrl.u32 %v2440, 7
    %v2442 = vsub.s32 %v2439, %v2441
    %v2443 = vrot.slane %v2429, %v2442
    %v2444 = vcombine.low %v2436, %v2443
    %v2445 = vcombine.low %v2401, %v2402
    %v2446 = vcombine.low %v2403, %v2404
    %v2448 = vunpack.c.l.s4 1983009808
    %v2449 = vunpack.c.0.s8 %v2448
    %v2450 = vlaneseq
    %v2451 = vshrl.u32 %v2450, 7
    %v2452 = vsub.s32 %v2449, %v2451
    %v2453 = vrot.slane %v2445, %v2452
    %v2455 = vunpack.c.l.s4 1983009808
    %v2456 = vunpack.c.0.s8 %v2455
    %v2457 = vlaneseq
    %v2458 = vshrl.u32 %v2457, 7
    %v2459 = vsub.s32 %v2456, %v2458
    %v2460 = vrot.slane %v2446, %v2459
    %v2461 = vcombine.low %v2453, %v2460
    %v2462 = vsel %vm299, %v2444, 0
    %v2464 = vsel %vm299, %v2461, 0
    %2466 = vmatprep.subr.mxu0 0.0
    %2467 = vmatpush1.msra.mxu0 %v2405
    %2468 = vmatprep.subr.mxu0 0.0
    %2469 = vmatpush1.msra.mxu0 %v2406
    %2470 = vmatprep.subr.mxu0 0.0
    %2471 = vmatpush1.msra.mxu0 %v2407
    %2472 = vmatprep.subr.mxu0 0.0
    %2473 = vmatpush1.msra.mxu0 %v2408
    %2474 = vmatprep.subr.mxu0 0.0
    %2475 = vmatpush1.msra.mxu0 %v2409
    %2476 = vmatprep.subr.mxu0 0.0
    %2477 = vmatpush1.msra.mxu0 %v2410
    %2478 = vmatprep.subr.mxu0 0.0
    %2479 = vmatpush1.msra.mxu0 %v2411
    %2480 = vmatprep.subr.mxu0 0.0
    %2481 = vmatpush1.msra.mxu0 %v2412
    %2482 = vmatprep.subr.mxu0 0.0
    %2483 = vmatpush1.msra.mxu0 0.0
    %2484 = vmatprep.subr.mxu0 0.0
    %2485 = vmatpush1.msra.mxu0 0.0
    %2486 = vmatprep.subr.mxu0 0.0
    %2487 = vmatpush1.msra.mxu0 0.0
    %2488 = vmatprep.subr.mxu0 0.0
    %2489 = vmatpush1.msra.mxu0 0.0
    %2490 = vmatprep.subr.mxu0 0.0
    %2491 = vmatpush1.msra.mxu0 0.0
    %2492 = vmatprep.subr.mxu0 0.0
    %2493 = vmatpush1.msra.mxu0 0.0
    %2494 = vmatprep.subr.mxu0 0.0
    %2495 = vmatpush1.msra.mxu0 0.0
    %2496 = vmatprep.subr.mxu0 0.0
    %2497 = vmatpush1.msra.mxu0 0.0
    %2498 = vmatprep.subr.mxu0 0.0
    %2499 = vmatpush1.msra.mxu0 0.0
    %2500 = vmatprep.subr.mxu0 0.0
    %2501 = vmatpush1.msra.mxu0 0.0
    %2502 = vmatprep.subr.mxu0 0.0
    %2503 = vmatpush1.msra.mxu0 0.0
    %2504 = vmatprep.subr.mxu0 0.0
    %2505 = vmatpush1.msra.mxu0 0.0
    %2506 = vmatprep.subr.mxu0 0.0
    %2507 = vmatpush1.msra.mxu0 0.0
    %2508 = vmatprep.subr.mxu0 0.0
    %2509 = vmatpush1.msra.mxu0 0.0
    %2510 = vmatprep.subr.mxu0 0.0
    %2511 = vmatpush1.msra.mxu0 0.0
    %2512 = vmatprep.subr.mxu0 0.0
    %2513 = vmatpush1.msra.mxu0 0.0
    %2514 = vmatprep.subr.mxu0 0.0
    %2515 = vmatpush1.msra.mxu0 0.0
    %2516 = vmatprep.subr.mxu0 0.0
    %2517 = vmatpush1.msra.mxu0 0.0
    %2518 = vmatprep.subr.mxu0 0.0
    %2519 = vmatpush1.msra.mxu0 0.0
    %2520 = vmatprep.subr.mxu0 0.0
    %2521 = vmatpush1.msra.mxu0 0.0
    %2522 = vmatprep.subr.mxu0 0.0
    %2523 = vmatpush1.msra.mxu0 0.0
    %2524 = vmatprep.subr.mxu0 0.0
    %2525 = vmatpush1.msra.mxu0 0.0
    %2526 = vmatprep.subr.mxu0 0.0
    %2527 = vmatpush1.msra.mxu0 0.0
    %2528 = vmatprep.subr.mxu0 0.0
    %2529 = vmatpush1.msra.mxu0 0.0
    %2530 = vmatprep.mubr.f32.mxu0 0.0
    %2531 = vmatmul.mubr.f32.gmra.mrb[0].mxu0 %v2462
    %v2532 = vpop.f32.mrb[0].mxu0
    %v2533 = vadd.f32 %v2418, %v2532
    %v2534 = vpop.f32.mrb[0].mxu0
    %2535 = vmatprep.mubr.f32.mxu0 0.0
    %2536 = vmatmul.mubr.f32.gmra.mrb[0].mxu0 %v2464
    %v2537 = vpop.f32.mrb[0].mxu0
    %v2538 = vadd.f32 %v2418, %v2537
    %v2539 = vpop.f32.mrb[0].mxu0
    %2540 = vdwg.mxu0
    %vm2541 = vcmask 7168
    %2542 = vst.msk [vmem:[%s9] sm:$0xff] %vm2541, %v2533
    %2543 = vst.msk [vmem:[%s9 + $0x8] sm:$0xff] %vm2541, %v2538
    // Predicated region
    $region50: #{tpu_custom_call.1} parent=1 // pred_check
      _
    $region51: #{tpu_custom_call.1} parent=1 // pred_check_branch
      %2545 = sbr.rel (0) target = $region53
    $region52: #{tpu_custom_call.1} parent=1 // pred_region
      _
    $region53: #{tpu_custom_call.1} parent=1 // pred_fallthru
      _
    // Predicated region
    $region54: #{tpu_custom_call.1} parent=1 // pred_check
      _
    $region55: #{tpu_custom_call.1} parent=1 // pred_check_branch
      %2547 = sbr.rel (0) target = $region57
    $region56: #{tpu_custom_call.1} parent=1 // pred_region
      _
    $region57: #{tpu_custom_call.1} parent=1 // pred_fallthru
      _
    %2548 = vsyncpa [#allocation5], 1
    %2549 = vsyncpa [#allocation7], 1

</llo_original>
